<compile_context>
chip_gen: v5e
topology: v5e:2x2
jax: 0.10.0
libtpu: 0.0.40
codegen_flags: <defaults>
</compile_context>

<pallas_src>
import functools

import jax
import jax.numpy as jnp
from jax.experimental import pallas as pl
from jax.experimental.pallas import tpu as pltpu

EXTRA_PAD = 1
EXT_PAD = 1
INITIAL_PASS = 25


# ----------------------------------------------------------------------------
# small helpers
# ----------------------------------------------------------------------------
def _full_spec(shape):
    nd = len(shape)
    return pl.BlockSpec(shape, lambda *_, nd=nd: (0,) * nd)


def _layer_spec(arr, num_layers):
    # Per-layer weight block; the layer index is clamped so the extra "head"
    # grid step (l == L) re-uses the previous block index (no extra DMA).
    nd = arr.ndim
    return pl.BlockSpec(
        (1,) + arr.shape[1:],
        lambda l, nd=nd, L=num_layers: (jnp.minimum(l, L - 1),)
        + (0,) * (nd - 1))


def _layernorm(x, g, b, eps=1e-5):
    mean = jnp.mean(x, axis=-1, keepdims=True)
    var = jnp.mean((x - mean) ** 2, axis=-1, keepdims=True)
    return (x - mean) * jax.lax.rsqrt(var + eps) * g + b


# ----------------------------------------------------------------------------
# Fused kernel: encoder stack (grid steps 0..L-1) + VQ head (grid step L)
# ----------------------------------------------------------------------------
def _fused_kernel(x_ref, bias_ref,
                  wqkv_ref, bqkv_ref, wo_ref, bo_ref,
                  ln1g_ref, ln1b_ref, w1_ref, b1_ref,
                  w2_ref, b2_ref, ln2g_ref, ln2b_ref,
                  lnfg_ref, lnfb_ref, dw_ref, db_ref, uw_ref, ub_ref, cb_ref,
                  out_ref, idx_ref, loss_ref,
                  act_ref, qkv_ref, attn_ref,
                  *, L, N, S, H, Dh, C, Kreal, use_vq, commitment_cost, scale):
    l = pl.program_id(0)
    E = H * Dh

    @pl.when(l == 0)
    def _init():
        act_ref[...] = x_ref[...].astype(jnp.float32)

    # ------------------------------------------------------------------
    # transformer encoder layer (post-LN, ReLU FFN)
    # ------------------------------------------------------------------
    @pl.when(l < L)
    def _layer():
        xf = act_ref[...]                       # (N*S, E) f32, VMEM resident
        bias = bias_ref[...]                    # (N, S)   0 / -1e9

        # fused QKV projection (bf16 MXU operands, f32 accumulation) -> scratch
        qkv_ref[...] = (
            jnp.dot(xf.astype(jnp.bfloat16), wqkv_ref[0],
                    preferred_element_type=jnp.float32) + bqkv_ref[0])

        # per-(batch, head) attention; N*H is tiny and static -> fully unrolled
        for n in range(N):
            r0 = n * S                                         # sublane-aligned
            bias_n = bias[n:n + 1, :]                          # (1, S) keys
            for h in range(H):
                c0 = h * Dh
                qh = qkv_ref[pl.ds(r0, S), pl.ds(c0, Dh)] * scale      # (S, Dh)
                kh = qkv_ref[pl.ds(r0, S), pl.ds(E + c0, Dh)]          # (S, Dh)
                vh = qkv_ref[pl.ds(r0, S), pl.ds(2 * E + c0, Dh)]      # (S, Dh)
                s = jax.lax.dot_general(qh, kh, (((1,), (1,)), ((), ())),
                                        preferred_element_type=jnp.float32)
                s = s + bias_n
                s = s - jnp.max(s, axis=-1, keepdims=True)
                p = jnp.exp(s)
                p = p / jnp.sum(p, axis=-1, keepdims=True)     # exact softmax
                attn_ref[pl.ds(r0, S), pl.ds(c0, Dh)] = jnp.dot(
                    p, vh, preferred_element_type=jnp.float32)

        attn = (jnp.dot(attn_ref[...].astype(jnp.bfloat16), wo_ref[0],
                        preferred_element_type=jnp.float32) + bo_ref[0])

        # residual + LN1 (fused), FFN (ReLU), residual + LN2 (fused)
        h1 = _layernorm(xf + attn, ln1g_ref[0], ln1b_ref[0])
        ff = jnp.maximum(
            jnp.dot(h1.astype(jnp.bfloat16), w1_ref[0],
                    preferred_element_type=jnp.float32) + b1_ref[0], 0.0)
        ff = (jnp.dot(ff.astype(jnp.bfloat16), w2_ref[0],
                      preferred_element_type=jnp.float32) + b2_ref[0])
        act_ref[...] = _layernorm(h1 + ff, ln2g_ref[0], ln2b_ref[0])

    # ------------------------------------------------------------------
    # head: final LN -> slice code rows -> down -> VQ -> up
    # ------------------------------------------------------------------
    @pl.when(l == L)
    def _head():
        # first C (code) rows of every batch slab, read straight from scratch
        z = jnp.concatenate([act_ref[pl.ds(n * S, C), :] for n in range(N)],
                            axis=0)                            # (N*C, E)
        z = _layernorm(z, lnfg_ref[...], lnfb_ref[...])        # encoder_norm
        z_down = (jnp.dot(z, dw_ref[...], preferred_element_type=jnp.float32)
                  + db_ref[...])                               # (N*C, D)

        if use_vq:
            e = cb_ref[...]                                    # (Kpad, D)
            M = N * C
            Kpad = e.shape[0]
            x2 = jnp.sum(z_down * z_down, axis=1, keepdims=True)       # (M,1)
            e2 = jnp.sum(e * e, axis=1)[None, :]                        # (1,K)
            xe = jax.lax.dot_general(z_down, e, (((1,), (1,)), ((), ())),
                                     preferred_element_type=jnp.float32)
            d = x2 + e2 - 2.0 * xe
            col = jax.lax.broadcasted_iota(jnp.int32, (M, Kpad), 1)
            d = jnp.where(col < Kreal, d, 1e30)        # mask codebook pad rows
            dmin = jnp.min(d, axis=1, keepdims=True)
            # first-occurrence argmin (matches torch.argmin)
            idx = jnp.min(jnp.where(d <= dmin, col, Kpad), axis=1,
                          keepdims=True)
            onehot = (col == idx).astype(jnp.float32)
            quant = jnp.dot(onehot, e, preferred_element_type=jnp.float32)
            loss = commitment_cost * jnp.mean((quant - z_down) ** 2)
            idx_ref[...] = idx.astype(jnp.int32)
            loss_ref[...] = jnp.full((1, 1), loss, jnp.float32)
            # straight-through estimator is a value-no-op in the forward pass
        else:
            quant = z_down
            idx_ref[...] = jnp.zeros(idx_ref.shape, idx_ref.dtype)
            loss_ref[...] = jnp.zeros(loss_ref.shape, loss_ref.dtype)

        out_ref[...] = (jnp.dot(quant, uw_ref[...],
                                preferred_element_type=jnp.float32)
                        + ub_ref[...]).astype(out_ref.dtype)   # (N*C, E)


def encoder_fused_call(xf, bias, params, cfg, *, N, S, use_vq):
    NS, E = xf.shape
    C = cfg["code_len"]
    H = cfg["num_heads"]
    Hid = cfg["hidden_dim"]
    D = cfg["codebook_dim"]
    Kreal = cfg["num_code"]
    sp = params["stack"]
    L = sp["wqkv"].shape[0]
    Dh = E // H
    M = N * C
    Kpad = params["codebook"].shape[0]

    layer_names = ["wqkv", "bqkv", "wo", "bo", "ln1_g", "ln1_b",
                   "w1", "b1", "w2", "b2", "ln2_g", "ln2_b"]
    head_arrays = [params["lnf_g"].reshape(1, E), params["lnf_b"].reshape(1, E),
                   params["down_w"], params["down_b"].reshape(1, D),
                   params["up_w"], params["up_b"].reshape(1, E),
                   params["codebook"]]

    in_specs = [_full_spec((NS, E)), _full_spec((N, S))]
    in_specs += [_layer_spec(sp[name], L) for name in layer_names]
    in_specs += [_full_spec(tuple(a.shape)) for a in head_arrays]

    out_specs = (_full_spec((M, E)), _full_spec((M, 1)), _full_spec((1, 1)))
    out_shape = (jax.ShapeDtypeStruct((M, E), jnp.float32),
                 jax.ShapeDtypeStruct((M, 1), jnp.int32),
                 jax.ShapeDtypeStruct((1, 1), jnp.float32))

    inputs = [xf, bias] + [sp[name] for name in layer_names] + head_arrays

    # advisory cost estimate so XLA can overlap the surrounding gathers
    flops = int(L * (2 * NS * E * 3 * E          # qkv projection
                     + 4 * N * H * S * S * Dh    # scores + P.V
                     + 2 * NS * E * E            # output projection
                     + 4 * NS * E * Hid)         # FFN
                + 2 * M * E * D + 4 * M * Kpad * D + 2 * M * D * E)
    transcendentals = int(L * (N * H * S * S + 2 * NS) + 2 * M)
    bytes_accessed = int(sum(int(a.size) * a.dtype.itemsize for a in inputs)
                         + M * E * 4 + M * 4 + 4)

    return pl.pallas_call(
        functools.partial(_fused_kernel, L=L, N=N, S=S, H=H, Dh=Dh, C=C,
                          Kreal=Kreal, use_vq=use_vq,
                          commitment_cost=0.25, scale=Dh ** -0.5),
        grid=(L + 1,),
        in_specs=in_specs,
        out_specs=out_specs,
        out_shape=out_shape,
        scratch_shapes=[pltpu.VMEM((NS, E), jnp.float32),      # activation
                        pltpu.VMEM((NS, 3 * E), jnp.float32),  # fused qkv
                        pltpu.VMEM((NS, E), jnp.float32)],     # attn heads
        compiler_params=pltpu.CompilerParams(
            dimension_semantics=("arbitrary",)),
        cost_estimate=pl.CostEstimate(flops=flops,
                                      transcendentals=transcendentals,
                                      bytes_accessed=bytes_accessed),
    )(*inputs)


# ----------------------------------------------------------------------------
# Model glue (plain JAX: embedding gathers, mask bias, reshapes)
# ----------------------------------------------------------------------------
def ext_encoder_forward(params, cfg, ext_seq, flag_seq, mask, epoch):
    bs = ext_seq.shape[0]
    E = cfg["embed_dim"]
    C = cfg["code_len"]

    ext_embeds = jnp.take(params["ext_embed"], ext_seq, axis=0)   # (bs, L, E)
    flag_embeds = jnp.take(params["flag_embed"], flag_seq, axis=0)
    embeddings = ext_embeds + flag_embeds                          # batch-major

    z_embed = jnp.broadcast_to(params["const_embed"][None, :, :], (bs, C, E))
    x = jnp.concatenate([z_embed, embeddings], axis=1)             # (bs, S0, E)
    S0 = x.shape[1]
    x = x + params["pos_embed"][:S0][None, :, :]                   # pos-enc
    # dropout == identity (eval mode)

    # pad seq axis to a multiple of 8 sublanes; pad keys are masked out below.
    Sp = ((S0 + 7) // 8) * 8
    pad = Sp - S0
    if pad:
        x = jnp.concatenate([x, jnp.zeros((bs, pad, E), x.dtype)], axis=1)

    if mask is not None:
        full_mask = jnp.concatenate(
            [jnp.zeros((bs, C), dtype=bool), mask,
             jnp.ones((bs, pad), dtype=bool)], axis=1)             # (bs, Sp)
    else:
        full_mask = jnp.concatenate(
            [jnp.zeros((bs, S0), dtype=bool),
             jnp.ones((bs, pad), dtype=bool)], axis=1)
    # -1e9 bias is safe: the C code positions are never masked, so no query row
    # is ever fully masked.
    bias = jnp.where(full_mask, -1e9, 0.0).astype(jnp.float32)

    xf = x.reshape(bs * Sp, E).astype(jnp.float32)
    use_vq = epoch >= INITIAL_PASS

    out, idx, loss = encoder_fused_call(xf, bias, params, cfg,
                                        N=bs, S=Sp, use_vq=use_vq)
    quantized_up = out.reshape(bs, C, E)                           # (bs, C, E)

    if use_vq:
        vq_loss = loss[0, 0]
        # reorder batch-major (n, c) -> PyTorch's (c, n) flattening
        selection = idx.reshape(bs, C).T.reshape(C * bs, 1)
    else:
        vq_loss = 0.0
        selection = None
    return quantized_up, vq_loss, selection


# ----------------------------------------------------------------------------
# Deterministic parameter initialization
# ----------------------------------------------------------------------------
def init_params(key, cfg):
    E = cfg["embed_dim"]
    Hid = cfg["hidden_dim"]
    L = cfg["num_layers"]
    D = cfg["codebook_dim"]
    K = cfg["num_code"]
    Kpad = ((K + 127) // 128) * 128
    ext_vocab = 2 ** cfg["bits"] + EXT_PAD + EXTRA_PAD
    keys = iter(jax.random.split(key, 128))

    def nrm(shape, std=0.02):
        return (std * jax.random.normal(next(keys), shape)).astype(jnp.float32)

    def zeros(shape):
        return jnp.zeros(shape, jnp.float32)

    def ones(shape):
        return jnp.ones(shape, jnp.float32)

    layers = []
    for _ in range(L):
        wq, wk, wv = nrm((E, E)), nrm((E, E)), nrm((E, E))
        layers.append({
            # MXU weight operands stored bf16 (halves the dominant HBM weight
            # stream); biases / LN params stay f32 (all VPU math stays f32).
            "wqkv": jnp.concatenate([wq, wk, wv], axis=1).astype(jnp.bfloat16),
            "bqkv": zeros((1, 3 * E)),
            "wo": nrm((E, E)).astype(jnp.bfloat16), "bo": zeros((1, E)),
            "ln1_g": ones((1, E)), "ln1_b": zeros((1, E)),
            "w1": nrm((E, Hid)).astype(jnp.bfloat16), "b1": zeros((1, Hid)),
            "w2": nrm((Hid, E)).astype(jnp.bfloat16), "b2": zeros((1, E)),
            "ln2_g": ones((1, E)), "ln2_b": zeros((1, E)),
        })
    stack = {k: jnp.stack([lp[k] for lp in layers], axis=0) for k in layers[0]}

    codebook = nrm((K, D), 1.0)                          # weight.data.normal_()
    codebook = jnp.concatenate(
        [codebook, jnp.zeros((Kpad - K, D), jnp.float32)], axis=0)  # lane pad

    params = {
        "ext_embed": nrm((ext_vocab, E), 1.0),
        "flag_embed": nrm((8, E), 1.0),
        "const_embed": nrm((cfg["code_len"], E), 1.0),
        "pos_embed": nrm((cfg["max_len"] + cfg["code_len"], E),
                         (2.0 / E) ** 0.5),              # kaiming fan_in
        "down_w": nrm((E, D)), "down_b": zeros((D,)),
        "up_w": nrm((D, E)), "up_b": zeros((E,)),
        "codebook": codebook,                            # (128, D) padded
        "lnf_g": jnp.ones((E,), jnp.float32), "lnf_b": zeros((E,)),
        "stack": stack,
    }
    return params


# ----------------------------------------------------------------------------
if __name__ == "__main__":
    cfg = dict(embed_dim=256,       # fixed: self.down = nn.Linear(256, 128)
               num_heads=4,
               hidden_dim=512,
               num_layers=2,
               dropout_rate=0.1,
               code_len=4,
               codebook_dim=128,
               num_code=100,
               max_len=80,
               bits=6)

    root = jax.random.PRNGKey(0)
    k_param, k_ext, k_flag = jax.random.split(root, 3)
    params = init_params(k_param, cfg)

    bs, seqlen = 2, 8
    ext_vocab = 2 ** cfg["bits"] + EXT_PAD + EXTRA_PAD
    ext_seq = jax.random.randint(k_ext, (bs, seqlen), 0, ext_vocab, jnp.int32)
    flag_seq = jax.random.randint(k_flag, (bs, seqlen), 0, 8, jnp.int32)
    lengths = jnp.array([8, 5])
    mask = jnp.arange(seqlen)[None, :] >= lengths[:, None]   # True = padding

    epoch = 30  # >= INITIAL_PASS -> exercise the VQ-VAE path
    quantized_up, vq_loss, selection = ext_encoder_forward(
        params, cfg, ext_seq, flag_seq, mask, epoch)
    jax.block_until_ready((quantized_up, vq_loss, selection))

    assert quantized_up.shape == (bs, cfg["code_len"], cfg["embed_dim"])
    assert selection.shape == (cfg["code_len"] * bs, 1)
    assert int(jnp.max(selection)) < cfg["num_code"]   # pad rows never win

    # also smoke-test the pre-VQ path (epoch < INITIAL_PASS)
    q2, l2, s2 = ext_encoder_forward(params, cfg, ext_seq, flag_seq, mask, 0)
    jax.block_until_ready(q2)
    assert q2.shape == (bs, cfg["code_len"], cfg["embed_dim"])
    assert l2 == 0.0 and s2 is None

    print("KERNEL_OK")
</pallas_src>

<mosaic_0001>
module attributes {stable_mosaic.version = 11 : i64} {
  func.func @_fused_kernel(%arg0: i32, %arg1: memref<32x256xf32, #tpu.memory_space<vmem>>, %arg2: memref<2x16xf32, #tpu.memory_space<vmem>>, %arg3: memref<1x256x768xbf16, #tpu.memory_space<vmem>>, %arg4: memref<1x1x768xf32, #tpu.memory_space<vmem>>, %arg5: memref<1x256x256xbf16, #tpu.memory_space<vmem>>, %arg6: memref<1x1x256xf32, #tpu.memory_space<vmem>>, %arg7: memref<1x1x256xf32, #tpu.memory_space<vmem>>, %arg8: memref<1x1x256xf32, #tpu.memory_space<vmem>>, %arg9: memref<1x256x512xbf16, #tpu.memory_space<vmem>>, %arg10: memref<1x1x512xf32, #tpu.memory_space<vmem>>, %arg11: memref<1x512x256xbf16, #tpu.memory_space<vmem>>, %arg12: memref<1x1x256xf32, #tpu.memory_space<vmem>>, %arg13: memref<1x1x256xf32, #tpu.memory_space<vmem>>, %arg14: memref<1x1x256xf32, #tpu.memory_space<vmem>>, %arg15: memref<1x256xf32, #tpu.memory_space<vmem>>, %arg16: memref<1x256xf32, #tpu.memory_space<vmem>>, %arg17: memref<256x128xf32, #tpu.memory_space<vmem>>, %arg18: memref<1x128xf32, #tpu.memory_space<vmem>>, %arg19: memref<128x256xf32, #tpu.memory_space<vmem>>, %arg20: memref<1x256xf32, #tpu.memory_space<vmem>>, %arg21: memref<128x128xf32, #tpu.memory_space<vmem>>, %arg22: memref<8x256xf32, #tpu.memory_space<vmem>>, %arg23: memref<8x1xi32, #tpu.memory_space<vmem>>, %arg24: memref<1x1xf32, #tpu.memory_space<vmem>>, %arg25: memref<32x256xf32, #tpu.memory_space<vmem>>, %arg26: memref<32x768xf32, #tpu.memory_space<vmem>>, %arg27: memref<32x256xf32, #tpu.memory_space<vmem>>) attributes {dimension_semantics = [#tpu.dimension_semantics<arbitrary>], iteration_bounds = array<i64: 3>, scalar_prefetch = 0 : i64, scratch_operands = 3 : i64, tpu.core_type = #tpu.core_type<tc>, window_params = [{pipeline_mode = #tpu.pipeline_mode<synchronous>, transform_indices = @transform_0, window_bounds = array<i64: 32, 256>}, {pipeline_mode = #tpu.pipeline_mode<synchronous>, transform_indices = @transform_1, window_bounds = array<i64: 2, 16>}, {transform_indices = @transform_2, window_bounds = array<i64: 1, 256, 768>}, {transform_indices = @transform_3, window_bounds = array<i64: 1, 1, 768>}, {transform_indices = @transform_4, window_bounds = array<i64: 1, 256, 256>}, {transform_indices = @transform_5, window_bounds = array<i64: 1, 1, 256>}, {transform_indices = @transform_6, window_bounds = array<i64: 1, 1, 256>}, {transform_indices = @transform_7, window_bounds = array<i64: 1, 1, 256>}, {transform_indices = @transform_8, window_bounds = array<i64: 1, 256, 512>}, {transform_indices = @transform_9, window_bounds = array<i64: 1, 1, 512>}, {transform_indices = @transform_10, window_bounds = array<i64: 1, 512, 256>}, {transform_indices = @transform_11, window_bounds = array<i64: 1, 1, 256>}, {transform_indices = @transform_12, window_bounds = array<i64: 1, 1, 256>}, {transform_indices = @transform_13, window_bounds = array<i64: 1, 1, 256>}, {pipeline_mode = #tpu.pipeline_mode<synchronous>, transform_indices = @transform_14, window_bounds = array<i64: 1, 256>}, {pipeline_mode = #tpu.pipeline_mode<synchronous>, transform_indices = @transform_15, window_bounds = array<i64: 1, 256>}, {pipeline_mode = #tpu.pipeline_mode<synchronous>, transform_indices = @transform_16, window_bounds = array<i64: 256, 128>}, {pipeline_mode = #tpu.pipeline_mode<synchronous>, transform_indices = @transform_17, window_bounds = array<i64: 1, 128>}, {pipeline_mode = #tpu.pipeline_mode<synchronous>, transform_indices = @transform_18, window_bounds = array<i64: 128, 256>}, {pipeline_mode = #tpu.pipeline_mode<synchronous>, transform_indices = @transform_19, window_bounds = array<i64: 1, 256>}, {pipeline_mode = #tpu.pipeline_mode<synchronous>, transform_indices = @transform_20, window_bounds = array<i64: 128, 128>}, {pipeline_mode = #tpu.pipeline_mode<synchronous>, transform_indices = @transform_21, window_bounds = array<i64: 8, 256>}, {pipeline_mode = #tpu.pipeline_mode<synchronous>, transform_indices = @transform_22, window_bounds = array<i64: 8, 1>}, {pipeline_mode = #tpu.pipeline_mode<synchronous>, transform_indices = @transform_23, window_bounds = array<i64: 1, 1>}]} {
    %c0_i32 = arith.constant 0 : i32
    %0 = arith.cmpi eq, %arg0, %c0_i32 : i32
    %1 = arith.extui %0 : i1 to i32
    %c0_i32_0 = arith.constant 0 : i32
    %2 = arith.cmpi ne, %1, %c0_i32_0 : i32
    scf.if %2 {
      %c0 = arith.constant 0 : index
      %c0_4 = arith.constant 0 : index
      %9 = vector.load %arg1[%c0, %c0_4] : memref<32x256xf32, #tpu.memory_space<vmem>>, vector<32x256xf32>
      %c0_5 = arith.constant 0 : index
      %c0_6 = arith.constant 0 : index
      %10 = vector.load %arg25[%c0_5, %c0_6] : memref<32x256xf32, #tpu.memory_space<vmem>>, vector<32x256xf32>
      tpu.vector_store %arg25[%c0_5, %c0_6], %9 {strides = array<i32>} : memref<32x256xf32, #tpu.memory_space<vmem>>, vector<32x256xf32>,
    } else {
    }
    %c2_i32 = arith.constant 2 : i32
    %3 = arith.cmpi slt, %arg0, %c2_i32 : i32
    %4 = arith.extui %3 : i1 to i32
    %c0_i32_1 = arith.constant 0 : i32
    %5 = arith.cmpi ne, %4, %c0_i32_1 : i32
    scf.if %5 {
      %c0 = arith.constant 0 : index
      %c0_4 = arith.constant 0 : index
      %9 = vector.load %arg25[%c0, %c0_4] : memref<32x256xf32, #tpu.memory_space<vmem>>, vector<32x256xf32>
      %c0_5 = arith.constant 0 : index
      %c0_6 = arith.constant 0 : index
      %10 = vector.load %arg2[%c0_5, %c0_6] : memref<2x16xf32, #tpu.memory_space<vmem>>, vector<2x16xf32>
      %11 = arith.truncf %9 : vector<32x256xf32> to vector<32x256xbf16>
      %c0_7 = arith.constant 0 : index
      %c0_8 = arith.constant 0 : index
      %c0_9 = arith.constant 0 : index
      %12 = vector.load %arg3[%c0_7, %c0_8, %c0_9] : memref<1x256x768xbf16, #tpu.memory_space<vmem>>, vector<1x256x768xbf16>
      %13 = vector.shape_cast %12 : vector<1x256x768xbf16> to vector<256x768xbf16>
      %cst = arith.constant dense<0.000000e+00> : vector<32x768xf32>
      %14 = tpu.matmul %11, %13, %cst {dimension_numbers = #tpu.dot_dimension_numbers<[1], [0], [0], [1], [0, 0, 1, 1], [], []>} : vector<32x256xbf16>, vector<256x768xbf16>, vector<32x768xf32> -> vector<32x768xf32>
      %c0_10 = arith.constant 0 : index
      %c0_11 = arith.constant 0 : index
      %c0_12 = arith.constant 0 : index
      %15 = vector.load %arg4[%c0_10, %c0_11, %c0_12] : memref<1x1x768xf32, #tpu.memory_space<vmem>>, vector<1x1x768xf32>
      %16 = vector.shape_cast %15 : vector<1x1x768xf32> to vector<1x768xf32>
      %17 = vector.broadcast %16 : vector<1x768xf32> to vector<32x768xf32>
      %18 = arith.addf %14, %17 : vector<32x768xf32>
      %c0_13 = arith.constant 0 : index
      %c0_14 = arith.constant 0 : index
      %19 = vector.load %arg26[%c0_13, %c0_14] : memref<32x768xf32, #tpu.memory_space<vmem>>, vector<32x768xf32>
      tpu.vector_store %arg26[%c0_13, %c0_14], %18 {strides = array<i32>} : memref<32x768xf32, #tpu.memory_space<vmem>>, vector<32x768xf32>,
      %20 = vector.extract_strided_slice %10 {offsets = [0, 0], sizes = [1, 16], strides = [1, 1]} : vector<2x16xf32> to vector<1x16xf32>
      %c0_15 = arith.constant 0 : index
      %c0_16 = arith.constant 0 : index
      %21 = vector.load %arg26[%c0_15, %c0_16] : memref<32x768xf32, #tpu.memory_space<vmem>>, vector<16x64xf32>
      %cst_17 = arith.constant 1.250000e-01 : f32
      %22 = vector.broadcast %cst_17 : f32 to vector<16x64xf32>
      %23 = arith.mulf %21, %22 : vector<16x64xf32>
      %c0_18 = arith.constant 0 : index
      %c256 = arith.constant 256 : index
      %24 = vector.load %arg26[%c0_18, %c256] : memref<32x768xf32, #tpu.memory_space<vmem>>, vector<16x64xf32>
      %c0_19 = arith.constant 0 : index
      %c512 = arith.constant 512 : index
      %25 = vector.load %arg26[%c0_19, %c512] : memref<32x768xf32, #tpu.memory_space<vmem>>, vector<16x64xf32>
      %cst_20 = arith.constant dense<0.000000e+00> : vector<16x16xf32>
      %26 = tpu.matmul %23, %24, %cst_20 {dimension_numbers = #tpu.dot_dimension_numbers<[1], [1], [0], [0], [0, 0, 1, 0], [], []>} : vector<16x64xf32>, vector<16x64xf32>, vector<16x16xf32> -> vector<16x16xf32>
      %27 = vector.broadcast %20 : vector<1x16xf32> to vector<16x16xf32>
      %28 = arith.addf %26, %27 : vector<16x16xf32>
      %cst_21 = arith.constant dense<0xFF800000> : vector<16xf32>
      %29 = vector.multi_reduction <maximumf>, %28, %cst_21 [1] : vector<16x16xf32> to vector<16xf32>
      %30 = vector.shape_cast %29 : vector<16xf32> to vector<16x1xf32>
      %31 = vector.broadcast %30 : vector<16x1xf32> to vector<16x16xf32>
      %32 = arith.subf %28, %31 : vector<16x16xf32>
      %33 = math.exp %32 : vector<16x16xf32>
      %cst_22 = arith.constant dense<0.000000e+00> : vector<16xf32>
      %34 = vector.multi_reduction <add>, %33, %cst_22 [1] : vector<16x16xf32> to vector<16xf32>
      %35 = vector.shape_cast %34 : vector<16xf32> to vector<16x1xf32>
      %36 = vector.broadcast %35 : vector<16x1xf32> to vector<16x16xf32>
      %37 = arith.divf %33, %36 : vector<16x16xf32>
      %cst_23 = arith.constant dense<0.000000e+00> : vector<16x64xf32>
      %38 = tpu.matmul %37, %25, %cst_23 {dimension_numbers = #tpu.dot_dimension_numbers<[1], [0], [0], [1], [0, 0, 1, 1], [], []>} : vector<16x16xf32>, vector<16x64xf32>, vector<16x64xf32> -> vector<16x64xf32>
      %c0_24 = arith.constant 0 : index
      %c0_25 = arith.constant 0 : index
      %39 = vector.load %arg27[%c0_24, %c0_25] : memref<32x256xf32, #tpu.memory_space<vmem>>, vector<16x64xf32>
      tpu.vector_store %arg27[%c0_24, %c0_25], %38 {strides = array<i32>} : memref<32x256xf32, #tpu.memory_space<vmem>>, vector<16x64xf32>,
      %c0_26 = arith.constant 0 : index
      %c64 = arith.constant 64 : index
      %40 = vector.load %arg26[%c0_26, %c64] : memref<32x768xf32, #tpu.memory_space<vmem>>, vector<16x64xf32>
      %cst_27 = arith.constant 1.250000e-01 : f32
      %41 = vector.broadcast %cst_27 : f32 to vector<16x64xf32>
      %42 = arith.mulf %40, %41 : vector<16x64xf32>
      %c0_28 = arith.constant 0 : index
      %c320 = arith.constant 320 : index
      %43 = vector.load %arg26[%c0_28, %c320] : memref<32x768xf32, #tpu.memory_space<vmem>>, vector<16x64xf32>
      %c0_29 = arith.constant 0 : index
      %c576 = arith.constant 576 : index
      %44 = vector.load %arg26[%c0_29, %c576] : memref<32x768xf32, #tpu.memory_space<vmem>>, vector<16x64xf32>
      %cst_30 = arith.constant dense<0.000000e+00> : vector<16x16xf32>
      %45 = tpu.matmul %42, %43, %cst_30 {dimension_numbers = #tpu.dot_dimension_numbers<[1], [1], [0], [0], [0, 0, 1, 0], [], []>} : vector<16x64xf32>, vector<16x64xf32>, vector<16x16xf32> -> vector<16x16xf32>
      %46 = vector.broadcast %20 : vector<1x16xf32> to vector<16x16xf32>
      %47 = arith.addf %45, %46 : vector<16x16xf32>
      %cst_31 = arith.constant dense<0xFF800000> : vector<16xf32>
      %48 = vector.multi_reduction <maximumf>, %47, %cst_31 [1] : vector<16x16xf32> to vector<16xf32>
      %49 = vector.shape_cast %48 : vector<16xf32> to vector<16x1xf32>
      %50 = vector.broadcast %49 : vector<16x1xf32> to vector<16x16xf32>
      %51 = arith.subf %47, %50 : vector<16x16xf32>
      %52 = math.exp %51 : vector<16x16xf32>
      %cst_32 = arith.constant dense<0.000000e+00> : vector<16xf32>
      %53 = vector.multi_reduction <add>, %52, %cst_32 [1] : vector<16x16xf32> to vector<16xf32>
      %54 = vector.shape_cast %53 : vector<16xf32> to vector<16x1xf32>
      %55 = vector.broadcast %54 : vector<16x1xf32> to vector<16x16xf32>
      %56 = arith.divf %52, %55 : vector<16x16xf32>
      %cst_33 = arith.constant dense<0.000000e+00> : vector<16x64xf32>
      %57 = tpu.matmul %56, %44, %cst_33 {dimension_numbers = #tpu.dot_dimension_numbers<[1], [0], [0], [1], [0, 0, 1, 1], [], []>} : vector<16x16xf32>, vector<16x64xf32>, vector<16x64xf32> -> vector<16x64xf32>
      %c0_34 = arith.constant 0 : index
      %c64_35 = arith.constant 64 : index
      %58 = vector.load %arg27[%c0_34, %c64_35] : memref<32x256xf32, #tpu.memory_space<vmem>>, vector<16x64xf32>
      tpu.vector_store %arg27[%c0_34, %c64_35], %57 {strides = array<i32>} : memref<32x256xf32, #tpu.memory_space<vmem>>, vector<16x64xf32>,
      %c0_36 = arith.constant 0 : index
      %c128 = arith.constant 128 : index
      %59 = vector.load %arg26[%c0_36, %c128] : memref<32x768xf32, #tpu.memory_space<vmem>>, vector<16x64xf32>
      %cst_37 = arith.constant 1.250000e-01 : f32
      %60 = vector.broadcast %cst_37 : f32 to vector<16x64xf32>
      %61 = arith.mulf %59, %60 : vector<16x64xf32>
      %c0_38 = arith.constant 0 : index
      %c384 = arith.constant 384 : index
      %62 = vector.load %arg26[%c0_38, %c384] : memref<32x768xf32, #tpu.memory_space<vmem>>, vector<16x64xf32>
      %c0_39 = arith.constant 0 : index
      %c640 = arith.constant 640 : index
      %63 = vector.load %arg26[%c0_39, %c640] : memref<32x768xf32, #tpu.memory_space<vmem>>, vector<16x64xf32>
      %cst_40 = arith.constant dense<0.000000e+00> : vector<16x16xf32>
      %64 = tpu.matmul %61, %62, %cst_40 {dimension_numbers = #tpu.dot_dimension_numbers<[1], [1], [0], [0], [0, 0, 1, 0], [], []>} : vector<16x64xf32>, vector<16x64xf32>, vector<16x16xf32> -> vector<16x16xf32>
      %65 = vector.broadcast %20 : vector<1x16xf32> to vector<16x16xf32>
      %66 = arith.addf %64, %65 : vector<16x16xf32>
      %cst_41 = arith.constant dense<0xFF800000> : vector<16xf32>
      %67 = vector.multi_reduction <maximumf>, %66, %cst_41 [1] : vector<16x16xf32> to vector<16xf32>
      %68 = vector.shape_cast %67 : vector<16xf32> to vector<16x1xf32>
      %69 = vector.broadcast %68 : vector<16x1xf32> to vector<16x16xf32>
      %70 = arith.subf %66, %69 : vector<16x16xf32>
      %71 = math.exp %70 : vector<16x16xf32>
      %cst_42 = arith.constant dense<0.000000e+00> : vector<16xf32>
      %72 = vector.multi_reduction <add>, %71, %cst_42 [1] : vector<16x16xf32> to vector<16xf32>
      %73 = vector.shape_cast %72 : vector<16xf32> to vector<16x1xf32>
      %74 = vector.broadcast %73 : vector<16x1xf32> to vector<16x16xf32>
      %75 = arith.divf %71, %74 : vector<16x16xf32>
      %cst_43 = arith.constant dense<0.000000e+00> : vector<16x64xf32>
      %76 = tpu.matmul %75, %63, %cst_43 {dimension_numbers = #tpu.dot_dimension_numbers<[1], [0], [0], [1], [0, 0, 1, 1], [], []>} : vector<16x16xf32>, vector<16x64xf32>, vector<16x64xf32> -> vector<16x64xf32>
      %c0_44 = arith.constant 0 : index
      %c128_45 = arith.constant 128 : index
      %77 = vector.load %arg27[%c0_44, %c128_45] : memref<32x256xf32, #tpu.memory_space<vmem>>, vector<16x64xf32>
      tpu.vector_store %arg27[%c0_44, %c128_45], %76 {strides = array<i32>} : memref<32x256xf32, #tpu.memory_space<vmem>>, vector<16x64xf32>,
      %c0_46 = arith.constant 0 : index
      %c192 = arith.constant 192 : index
      %78 = vector.load %arg26[%c0_46, %c192] : memref<32x768xf32, #tpu.memory_space<vmem>>, vector<16x64xf32>
      %cst_47 = arith.constant 1.250000e-01 : f32
      %79 = vector.broadcast %cst_47 : f32 to vector<16x64xf32>
      %80 = arith.mulf %78, %79 : vector<16x64xf32>
      %c0_48 = arith.constant 0 : index
      %c448 = arith.constant 448 : index
      %81 = vector.load %arg26[%c0_48, %c448] : memref<32x768xf32, #tpu.memory_space<vmem>>, vector<16x64xf32>
      %c0_49 = arith.constant 0 : index
      %c704 = arith.constant 704 : index
      %82 = vector.load %arg26[%c0_49, %c704] : memref<32x768xf32, #tpu.memory_space<vmem>>, vector<16x64xf32>
      %cst_50 = arith.constant dense<0.000000e+00> : vector<16x16xf32>
      %83 = tpu.matmul %80, %81, %cst_50 {dimension_numbers = #tpu.dot_dimension_numbers<[1], [1], [0], [0], [0, 0, 1, 0], [], []>} : vector<16x64xf32>, vector<16x64xf32>, vector<16x16xf32> -> vector<16x16xf32>
      %84 = vector.broadcast %20 : vector<1x16xf32> to vector<16x16xf32>
      %85 = arith.addf %83, %84 : vector<16x16xf32>
      %cst_51 = arith.constant dense<0xFF800000> : vector<16xf32>
      %86 = vector.multi_reduction <maximumf>, %85, %cst_51 [1] : vector<16x16xf32> to vector<16xf32>
      %87 = vector.shape_cast %86 : vector<16xf32> to vector<16x1xf32>
      %88 = vector.broadcast %87 : vector<16x1xf32> to vector<16x16xf32>
      %89 = arith.subf %85, %88 : vector<16x16xf32>
      %90 = math.exp %89 : vector<16x16xf32>
      %cst_52 = arith.constant dense<0.000000e+00> : vector<16xf32>
      %91 = vector.multi_reduction <add>, %90, %cst_52 [1] : vector<16x16xf32> to vector<16xf32>
      %92 = vector.shape_cast %91 : vector<16xf32> to vector<16x1xf32>
      %93 = vector.broadcast %92 : vector<16x1xf32> to vector<16x16xf32>
      %94 = arith.divf %90, %93 : vector<16x16xf32>
      %cst_53 = arith.constant dense<0.000000e+00> : vector<16x64xf32>
      %95 = tpu.matmul %94, %82, %cst_53 {dimension_numbers = #tpu.dot_dimension_numbers<[1], [0], [0], [1], [0, 0, 1, 1], [], []>} : vector<16x16xf32>, vector<16x64xf32>, vector<16x64xf32> -> vector<16x64xf32>
      %c0_54 = arith.constant 0 : index
      %c192_55 = arith.constant 192 : index
      %96 = vector.load %arg27[%c0_54, %c192_55] : memref<32x256xf32, #tpu.memory_space<vmem>>, vector<16x64xf32>
      tpu.vector_store %arg27[%c0_54, %c192_55], %95 {strides = array<i32>} : memref<32x256xf32, #tpu.memory_space<vmem>>, vector<16x64xf32>,
      %97 = vector.extract_strided_slice %10 {offsets = [1, 0], sizes = [1, 16], strides = [1, 1]} : vector<2x16xf32> to vector<1x16xf32>
      %c16 = arith.constant 16 : index
      %c0_56 = arith.constant 0 : index
      %98 = vector.load %arg26[%c16, %c0_56] : memref<32x768xf32, #tpu.memory_space<vmem>>, vector<16x64xf32>
      %cst_57 = arith.constant 1.250000e-01 : f32
      %99 = vector.broadcast %cst_57 : f32 to vector<16x64xf32>
      %100 = arith.mulf %98, %99 : vector<16x64xf32>
      %c16_58 = arith.constant 16 : index
      %c256_59 = arith.constant 256 : index
      %101 = vector.load %arg26[%c16_58, %c256_59] : memref<32x768xf32, #tpu.memory_space<vmem>>, vector<16x64xf32>
      %c16_60 = arith.constant 16 : index
      %c512_61 = arith.constant 512 : index
      %102 = vector.load %arg26[%c16_60, %c512_61] : memref<32x768xf32, #tpu.memory_space<vmem>>, vector<16x64xf32>
      %cst_62 = arith.constant dense<0.000000e+00> : vector<16x16xf32>
      %103 = tpu.matmul %100, %101, %cst_62 {dimension_numbers = #tpu.dot_dimension_numbers<[1], [1], [0], [0], [0, 0, 1, 0], [], []>} : vector<16x64xf32>, vector<16x64xf32>, vector<16x16xf32> -> vector<16x16xf32>
      %104 = vector.broadcast %97 : vector<1x16xf32> to vector<16x16xf32>
      %105 = arith.addf %103, %104 : vector<16x16xf32>
      %cst_63 = arith.constant dense<0xFF800000> : vector<16xf32>
      %106 = vector.multi_reduction <maximumf>, %105, %cst_63 [1] : vector<16x16xf32> to vector<16xf32>
      %107 = vector.shape_cast %106 : vector<16xf32> to vector<16x1xf32>
      %108 = vector.broadcast %107 : vector<16x1xf32> to vector<16x16xf32>
      %109 = arith.subf %105, %108 : vector<16x16xf32>
      %110 = math.exp %109 : vector<16x16xf32>
      %cst_64 = arith.constant dense<0.000000e+00> : vector<16xf32>
      %111 = vector.multi_reduction <add>, %110, %cst_64 [1] : vector<16x16xf32> to vector<16xf32>
      %112 = vector.shape_cast %111 : vector<16xf32> to vector<16x1xf32>
      %113 = vector.broadcast %112 : vector<16x1xf32> to vector<16x16xf32>
      %114 = arith.divf %110, %113 : vector<16x16xf32>
      %cst_65 = arith.constant dense<0.000000e+00> : vector<16x64xf32>
      %115 = tpu.matmul %114, %102, %cst_65 {dimension_numbers = #tpu.dot_dimension_numbers<[1], [0], [0], [1], [0, 0, 1, 1], [], []>} : vector<16x16xf32>, vector<16x64xf32>, vector<16x64xf32> -> vector<16x64xf32>
      %c16_66 = arith.constant 16 : index
      %c0_67 = arith.constant 0 : index
      %116 = vector.load %arg27[%c16_66, %c0_67] : memref<32x256xf32, #tpu.memory_space<vmem>>, vector<16x64xf32>
      tpu.vector_store %arg27[%c16_66, %c0_67], %115 {strides = array<i32>} : memref<32x256xf32, #tpu.memory_space<vmem>>, vector<16x64xf32>,
      %c16_68 = arith.constant 16 : index
      %c64_69 = arith.constant 64 : index
      %117 = vector.load %arg26[%c16_68, %c64_69] : memref<32x768xf32, #tpu.memory_space<vmem>>, vector<16x64xf32>
      %cst_70 = arith.constant 1.250000e-01 : f32
      %118 = vector.broadcast %cst_70 : f32 to vector<16x64xf32>
      %119 = arith.mulf %117, %118 : vector<16x64xf32>
      %c16_71 = arith.constant 16 : index
      %c320_72 = arith.constant 320 : index
      %120 = vector.load %arg26[%c16_71, %c320_72] : memref<32x768xf32, #tpu.memory_space<vmem>>, vector<16x64xf32>
      %c16_73 = arith.constant 16 : index
      %c576_74 = arith.constant 576 : index
      %121 = vector.load %arg26[%c16_73, %c576_74] : memref<32x768xf32, #tpu.memory_space<vmem>>, vector<16x64xf32>
      %cst_75 = arith.constant dense<0.000000e+00> : vector<16x16xf32>
      %122 = tpu.matmul %119, %120, %cst_75 {dimension_numbers = #tpu.dot_dimension_numbers<[1], [1], [0], [0], [0, 0, 1, 0], [], []>} : vector<16x64xf32>, vector<16x64xf32>, vector<16x16xf32> -> vector<16x16xf32>
      %123 = vector.broadcast %97 : vector<1x16xf32> to vector<16x16xf32>
      %124 = arith.addf %122, %123 : vector<16x16xf32>
      %cst_76 = arith.constant dense<0xFF800000> : vector<16xf32>
      %125 = vector.multi_reduction <maximumf>, %124, %cst_76 [1] : vector<16x16xf32> to vector<16xf32>
      %126 = vector.shape_cast %125 : vector<16xf32> to vector<16x1xf32>
      %127 = vector.broadcast %126 : vector<16x1xf32> to vector<16x16xf32>
      %128 = arith.subf %124, %127 : vector<16x16xf32>
      %129 = math.exp %128 : vector<16x16xf32>
      %cst_77 = arith.constant dense<0.000000e+00> : vector<16xf32>
      %130 = vector.multi_reduction <add>, %129, %cst_77 [1] : vector<16x16xf32> to vector<16xf32>
      %131 = vector.shape_cast %130 : vector<16xf32> to vector<16x1xf32>
      %132 = vector.broadcast %131 : vector<16x1xf32> to vector<16x16xf32>
      %133 = arith.divf %129, %132 : vector<16x16xf32>
      %cst_78 = arith.constant dense<0.000000e+00> : vector<16x64xf32>
      %134 = tpu.matmul %133, %121, %cst_78 {dimension_numbers = #tpu.dot_dimension_numbers<[1], [0], [0], [1], [0, 0, 1, 1], [], []>} : vector<16x16xf32>, vector<16x64xf32>, vector<16x64xf32> -> vector<16x64xf32>
      %c16_79 = arith.constant 16 : index
      %c64_80 = arith.constant 64 : index
      %135 = vector.load %arg27[%c16_79, %c64_80] : memref<32x256xf32, #tpu.memory_space<vmem>>, vector<16x64xf32>
      tpu.vector_store %arg27[%c16_79, %c64_80], %134 {strides = array<i32>} : memref<32x256xf32, #tpu.memory_space<vmem>>, vector<16x64xf32>,
      %c16_81 = arith.constant 16 : index
      %c128_82 = arith.constant 128 : index
      %136 = vector.load %arg26[%c16_81, %c128_82] : memref<32x768xf32, #tpu.memory_space<vmem>>, vector<16x64xf32>
      %cst_83 = arith.constant 1.250000e-01 : f32
      %137 = vector.broadcast %cst_83 : f32 to vector<16x64xf32>
      %138 = arith.mulf %136, %137 : vector<16x64xf32>
      %c16_84 = arith.constant 16 : index
      %c384_85 = arith.constant 384 : index
      %139 = vector.load %arg26[%c16_84, %c384_85] : memref<32x768xf32, #tpu.memory_space<vmem>>, vector<16x64xf32>
      %c16_86 = arith.constant 16 : index
      %c640_87 = arith.constant 640 : index
      %140 = vector.load %arg26[%c16_86, %c640_87] : memref<32x768xf32, #tpu.memory_space<vmem>>, vector<16x64xf32>
      %cst_88 = arith.constant dense<0.000000e+00> : vector<16x16xf32>
      %141 = tpu.matmul %138, %139, %cst_88 {dimension_numbers = #tpu.dot_dimension_numbers<[1], [1], [0], [0], [0, 0, 1, 0], [], []>} : vector<16x64xf32>, vector<16x64xf32>, vector<16x16xf32> -> vector<16x16xf32>
      %142 = vector.broadcast %97 : vector<1x16xf32> to vector<16x16xf32>
      %143 = arith.addf %141, %142 : vector<16x16xf32>
      %cst_89 = arith.constant dense<0xFF800000> : vector<16xf32>
      %144 = vector.multi_reduction <maximumf>, %143, %cst_89 [1] : vector<16x16xf32> to vector<16xf32>
      %145 = vector.shape_cast %144 : vector<16xf32> to vector<16x1xf32>
      %146 = vector.broadcast %145 : vector<16x1xf32> to vector<16x16xf32>
      %147 = arith.subf %143, %146 : vector<16x16xf32>
      %148 = math.exp %147 : vector<16x16xf32>
      %cst_90 = arith.constant dense<0.000000e+00> : vector<16xf32>
      %149 = vector.multi_reduction <add>, %148, %cst_90 [1] : vector<16x16xf32> to vector<16xf32>
      %150 = vector.shape_cast %149 : vector<16xf32> to vector<16x1xf32>
      %151 = vector.broadcast %150 : vector<16x1xf32> to vector<16x16xf32>
      %152 = arith.divf %148, %151 : vector<16x16xf32>
      %cst_91 = arith.constant dense<0.000000e+00> : vector<16x64xf32>
      %153 = tpu.matmul %152, %140, %cst_91 {dimension_numbers = #tpu.dot_dimension_numbers<[1], [0], [0], [1], [0, 0, 1, 1], [], []>} : vector<16x16xf32>, vector<16x64xf32>, vector<16x64xf32> -> vector<16x64xf32>
      %c16_92 = arith.constant 16 : index
      %c128_93 = arith.constant 128 : index
      %154 = vector.load %arg27[%c16_92, %c128_93] : memref<32x256xf32, #tpu.memory_space<vmem>>, vector<16x64xf32>
      tpu.vector_store %arg27[%c16_92, %c128_93], %153 {strides = array<i32>} : memref<32x256xf32, #tpu.memory_space<vmem>>, vector<16x64xf32>,
      %c16_94 = arith.constant 16 : index
      %c192_95 = arith.constant 192 : index
      %155 = vector.load %arg26[%c16_94, %c192_95] : memref<32x768xf32, #tpu.memory_space<vmem>>, vector<16x64xf32>
      %cst_96 = arith.constant 1.250000e-01 : f32
      %156 = vector.broadcast %cst_96 : f32 to vector<16x64xf32>
      %157 = arith.mulf %155, %156 : vector<16x64xf32>
      %c16_97 = arith.constant 16 : index
      %c448_98 = arith.constant 448 : index
      %158 = vector.load %arg26[%c16_97, %c448_98] : memref<32x768xf32, #tpu.memory_space<vmem>>, vector<16x64xf32>
      %c16_99 = arith.constant 16 : index
      %c704_100 = arith.constant 704 : index
      %159 = vector.load %arg26[%c16_99, %c704_100] : memref<32x768xf32, #tpu.memory_space<vmem>>, vector<16x64xf32>
      %cst_101 = arith.constant dense<0.000000e+00> : vector<16x16xf32>
      %160 = tpu.matmul %157, %158, %cst_101 {dimension_numbers = #tpu.dot_dimension_numbers<[1], [1], [0], [0], [0, 0, 1, 0], [], []>} : vector<16x64xf32>, vector<16x64xf32>, vector<16x16xf32> -> vector<16x16xf32>
      %161 = vector.broadcast %97 : vector<1x16xf32> to vector<16x16xf32>
      %162 = arith.addf %160, %161 : vector<16x16xf32>
      %cst_102 = arith.constant dense<0xFF800000> : vector<16xf32>
      %163 = vector.multi_reduction <maximumf>, %162, %cst_102 [1] : vector<16x16xf32> to vector<16xf32>
      %164 = vector.shape_cast %163 : vector<16xf32> to vector<16x1xf32>
      %165 = vector.broadcast %164 : vector<16x1xf32> to vector<16x16xf32>
      %166 = arith.subf %162, %165 : vector<16x16xf32>
      %167 = math.exp %166 : vector<16x16xf32>
      %cst_103 = arith.constant dense<0.000000e+00> : vector<16xf32>
      %168 = vector.multi_reduction <add>, %167, %cst_103 [1] : vector<16x16xf32> to vector<16xf32>
      %169 = vector.shape_cast %168 : vector<16xf32> to vector<16x1xf32>
      %170 = vector.broadcast %169 : vector<16x1xf32> to vector<16x16xf32>
      %171 = arith.divf %167, %170 : vector<16x16xf32>
      %cst_104 = arith.constant dense<0.000000e+00> : vector<16x64xf32>
      %172 = tpu.matmul %171, %159, %cst_104 {dimension_numbers = #tpu.dot_dimension_numbers<[1], [0], [0], [1], [0, 0, 1, 1], [], []>} : vector<16x16xf32>, vector<16x64xf32>, vector<16x64xf32> -> vector<16x64xf32>
      %c16_105 = arith.constant 16 : index
      %c192_106 = arith.constant 192 : index
      %173 = vector.load %arg27[%c16_105, %c192_106] : memref<32x256xf32, #tpu.memory_space<vmem>>, vector<16x64xf32>
      tpu.vector_store %arg27[%c16_105, %c192_106], %172 {strides = array<i32>} : memref<32x256xf32, #tpu.memory_space<vmem>>, vector<16x64xf32>,
      %c0_107 = arith.constant 0 : index
      %c0_108 = arith.constant 0 : index
      %174 = vector.load %arg27[%c0_107, %c0_108] : memref<32x256xf32, #tpu.memory_space<vmem>>, vector<32x256xf32>
      %175 = arith.truncf %174 : vector<32x256xf32> to vector<32x256xbf16>
      %c0_109 = arith.constant 0 : index
      %c0_110 = arith.constant 0 : index
      %c0_111 = arith.constant 0 : index
      %176 = vector.load %arg5[%c0_109, %c0_110, %c0_111] : memref<1x256x256xbf16, #tpu.memory_space<vmem>>, vector<1x256x256xbf16>
      %177 = vector.shape_cast %176 : vector<1x256x256xbf16> to vector<256x256xbf16>
      %cst_112 = arith.constant dense<0.000000e+00> : vector<32x256xf32>
      %178 = tpu.matmul %175, %177, %cst_112 {dimension_numbers = #tpu.dot_dimension_numbers<[1], [0], [0], [1], [0, 0, 1, 1], [], []>} : vector<32x256xbf16>, vector<256x256xbf16>, vector<32x256xf32> -> vector<32x256xf32>
      %c0_113 = arith.constant 0 : index
      %c0_114 = arith.constant 0 : index
      %c0_115 = arith.constant 0 : index
      %179 = vector.load %arg6[%c0_113, %c0_114, %c0_115] : memref<1x1x256xf32, #tpu.memory_space<vmem>>, vector<1x1x256xf32>
      %180 = vector.shape_cast %179 : vector<1x1x256xf32> to vector<1x256xf32>
      %181 = vector.broadcast %180 : vector<1x256xf32> to vector<32x256xf32>
      %182 = arith.addf %178, %181 : vector<32x256xf32>
      %183 = arith.addf %9, %182 : vector<32x256xf32>
      %c0_116 = arith.constant 0 : index
      %c0_117 = arith.constant 0 : index
      %c0_118 = arith.constant 0 : index
      %184 = vector.load %arg7[%c0_116, %c0_117, %c0_118] : memref<1x1x256xf32, #tpu.memory_space<vmem>>, vector<1x1x256xf32>
      %185 = vector.shape_cast %184 : vector<1x1x256xf32> to vector<1x256xf32>
      %c0_119 = arith.constant 0 : index
      %c0_120 = arith.constant 0 : index
      %c0_121 = arith.constant 0 : index
      %186 = vector.load %arg8[%c0_119, %c0_120, %c0_121] : memref<1x1x256xf32, #tpu.memory_space<vmem>>, vector<1x1x256xf32>
      %187 = vector.shape_cast %186 : vector<1x1x256xf32> to vector<1x256xf32>
      %cst_122 = arith.constant dense<0.000000e+00> : vector<32xf32>
      %188 = vector.multi_reduction <add>, %183, %cst_122 [1] : vector<32x256xf32> to vector<32xf32>
      %189 = vector.shape_cast %188 : vector<32xf32> to vector<32x1xf32>
      %cst_123 = arith.constant 2.560000e+02 : f32
      %190 = vector.broadcast %cst_123 : f32 to vector<32x1xf32>
      %191 = arith.divf %189, %190 : vector<32x1xf32>
      %192 = vector.broadcast %191 : vector<32x1xf32> to vector<32x256xf32>
      %193 = arith.subf %183, %192 : vector<32x256xf32>
      %194 = arith.mulf %193, %193 : vector<32x256xf32>
      %cst_124 = arith.constant dense<0.000000e+00> : vector<32xf32>
      %195 = vector.multi_reduction <add>, %194, %cst_124 [1] : vector<32x256xf32> to vector<32xf32>
      %196 = vector.shape_cast %195 : vector<32xf32> to vector<32x1xf32>
      %cst_125 = arith.constant 2.560000e+02 : f32
      %197 = vector.broadcast %cst_125 : f32 to vector<32x1xf32>
      %198 = arith.divf %196, %197 : vector<32x1xf32>
      %199 = vector.broadcast %191 : vector<32x1xf32> to vector<32x256xf32>
      %200 = arith.subf %183, %199 : vector<32x256xf32>
      %cst_126 = arith.constant 9.99999974E-6 : f32
      %201 = vector.broadcast %cst_126 : f32 to vector<32x1xf32>
      %202 = arith.addf %198, %201 : vector<32x1xf32>
      %203 = math.rsqrt %202 : vector<32x1xf32>
      %204 = vector.broadcast %203 : vector<32x1xf32> to vector<32x256xf32>
      %205 = arith.mulf %200, %204 : vector<32x256xf32>
      %206 = vector.broadcast %185 : vector<1x256xf32> to vector<32x256xf32>
      %207 = arith.mulf %205, %206 : vector<32x256xf32>
      %208 = vector.broadcast %187 : vector<1x256xf32> to vector<32x256xf32>
      %209 = arith.addf %207, %208 : vector<32x256xf32>
      %210 = arith.truncf %209 : vector<32x256xf32> to vector<32x256xbf16>
      %c0_127 = arith.constant 0 : index
      %c0_128 = arith.constant 0 : index
      %c0_129 = arith.constant 0 : index
      %211 = vector.load %arg9[%c0_127, %c0_128, %c0_129] : memref<1x256x512xbf16, #tpu.memory_space<vmem>>, vector<1x256x512xbf16>
      %212 = vector.shape_cast %211 : vector<1x256x512xbf16> to vector<256x512xbf16>
      %cst_130 = arith.constant dense<0.000000e+00> : vector<32x512xf32>
      %213 = tpu.matmul %210, %212, %cst_130 {dimension_numbers = #tpu.dot_dimension_numbers<[1], [0], [0], [1], [0, 0, 1, 1], [], []>} : vector<32x256xbf16>, vector<256x512xbf16>, vector<32x512xf32> -> vector<32x512xf32>
      %c0_131 = arith.constant 0 : index
      %c0_132 = arith.constant 0 : index
      %c0_133 = arith.constant 0 : index
      %214 = vector.load %arg10[%c0_131, %c0_132, %c0_133] : memref<1x1x512xf32, #tpu.memory_space<vmem>>, vector<1x1x512xf32>
      %215 = vector.shape_cast %214 : vector<1x1x512xf32> to vector<1x512xf32>
      %216 = vector.broadcast %215 : vector<1x512xf32> to vector<32x512xf32>
      %217 = arith.addf %213, %216 : vector<32x512xf32>
      %cst_134 = arith.constant 0.000000e+00 : f32
      %218 = vector.broadcast %cst_134 : f32 to vector<32x512xf32>
      %219 = arith.maximumf %217, %218 : vector<32x512xf32>
      %220 = arith.truncf %219 : vector<32x512xf32> to vector<32x512xbf16>
      %c0_135 = arith.constant 0 : index
      %c0_136 = arith.constant 0 : index
      %c0_137 = arith.constant 0 : index
      %221 = vector.load %arg11[%c0_135, %c0_136, %c0_137] : memref<1x512x256xbf16, #tpu.memory_space<vmem>>, vector<1x512x256xbf16>
      %222 = vector.shape_cast %221 : vector<1x512x256xbf16> to vector<512x256xbf16>
      %cst_138 = arith.constant dense<0.000000e+00> : vector<32x256xf32>
      %223 = tpu.matmul %220, %222, %cst_138 {dimension_numbers = #tpu.dot_dimension_numbers<[1], [0], [0], [1], [0, 0, 1, 1], [], []>} : vector<32x512xbf16>, vector<512x256xbf16>, vector<32x256xf32> -> vector<32x256xf32>
      %c0_139 = arith.constant 0 : index
      %c0_140 = arith.constant 0 : index
      %c0_141 = arith.constant 0 : index
      %224 = vector.load %arg12[%c0_139, %c0_140, %c0_141] : memref<1x1x256xf32, #tpu.memory_space<vmem>>, vector<1x1x256xf32>
      %225 = vector.shape_cast %224 : vector<1x1x256xf32> to vector<1x256xf32>
      %226 = vector.broadcast %225 : vector<1x256xf32> to vector<32x256xf32>
      %227 = arith.addf %223, %226 : vector<32x256xf32>
      %228 = arith.addf %209, %227 : vector<32x256xf32>
      %c0_142 = arith.constant 0 : index
      %c0_143 = arith.constant 0 : index
      %c0_144 = arith.constant 0 : index
      %229 = vector.load %arg13[%c0_142, %c0_143, %c0_144] : memref<1x1x256xf32, #tpu.memory_space<vmem>>, vector<1x1x256xf32>
      %230 = vector.shape_cast %229 : vector<1x1x256xf32> to vector<1x256xf32>
      %c0_145 = arith.constant 0 : index
      %c0_146 = arith.constant 0 : index
      %c0_147 = arith.constant 0 : index
      %231 = vector.load %arg14[%c0_145, %c0_146, %c0_147] : memref<1x1x256xf32, #tpu.memory_space<vmem>>, vector<1x1x256xf32>
      %232 = vector.shape_cast %231 : vector<1x1x256xf32> to vector<1x256xf32>
      %cst_148 = arith.constant dense<0.000000e+00> : vector<32xf32>
      %233 = vector.multi_reduction <add>, %228, %cst_148 [1] : vector<32x256xf32> to vector<32xf32>
      %234 = vector.shape_cast %233 : vector<32xf32> to vector<32x1xf32>
      %cst_149 = arith.constant 2.560000e+02 : f32
      %235 = vector.broadcast %cst_149 : f32 to vector<32x1xf32>
      %236 = arith.divf %234, %235 : vector<32x1xf32>
      %237 = vector.broadcast %236 : vector<32x1xf32> to vector<32x256xf32>
      %238 = arith.subf %228, %237 : vector<32x256xf32>
      %239 = arith.mulf %238, %238 : vector<32x256xf32>
      %cst_150 = arith.constant dense<0.000000e+00> : vector<32xf32>
      %240 = vector.multi_reduction <add>, %239, %cst_150 [1] : vector<32x256xf32> to vector<32xf32>
      %241 = vector.shape_cast %240 : vector<32xf32> to vector<32x1xf32>
      %cst_151 = arith.constant 2.560000e+02 : f32
      %242 = vector.broadcast %cst_151 : f32 to vector<32x1xf32>
      %243 = arith.divf %241, %242 : vector<32x1xf32>
      %244 = vector.broadcast %236 : vector<32x1xf32> to vector<32x256xf32>
      %245 = arith.subf %228, %244 : vector<32x256xf32>
      %cst_152 = arith.constant 9.99999974E-6 : f32
      %246 = vector.broadcast %cst_152 : f32 to vector<32x1xf32>
      %247 = arith.addf %243, %246 : vector<32x1xf32>
      %248 = math.rsqrt %247 : vector<32x1xf32>
      %249 = vector.broadcast %248 : vector<32x1xf32> to vector<32x256xf32>
      %250 = arith.mulf %245, %249 : vector<32x256xf32>
      %251 = vector.broadcast %230 : vector<1x256xf32> to vector<32x256xf32>
      %252 = arith.mulf %250, %251 : vector<32x256xf32>
      %253 = vector.broadcast %232 : vector<1x256xf32> to vector<32x256xf32>
      %254 = arith.addf %252, %253 : vector<32x256xf32>
      %c0_153 = arith.constant 0 : index
      %c0_154 = arith.constant 0 : index
      %255 = vector.load %arg25[%c0_153, %c0_154] : memref<32x256xf32, #tpu.memory_space<vmem>>, vector<32x256xf32>
      tpu.vector_store %arg25[%c0_153, %c0_154], %254 {strides = array<i32>} : memref<32x256xf32, #tpu.memory_space<vmem>>, vector<32x256xf32>,
    } else {
    }
    %c2_i32_2 = arith.constant 2 : i32
    %6 = arith.cmpi eq, %arg0, %c2_i32_2 : i32
    %7 = arith.extui %6 : i1 to i32
    %c0_i32_3 = arith.constant 0 : i32
    %8 = arith.cmpi ne, %7, %c0_i32_3 : i32
    scf.if %8 {
      %c0 = arith.constant 0 : index
      %c0_4 = arith.constant 0 : index
      %9 = vector.load %arg25[%c0, %c0_4] : memref<32x256xf32, #tpu.memory_space<vmem>>, vector<4x256xf32>
      %c16 = arith.constant 16 : index
      %c0_5 = arith.constant 0 : index
      %10 = vector.load %arg25[%c16, %c0_5] : memref<32x256xf32, #tpu.memory_space<vmem>>, vector<4x256xf32>
      %11 = tpu.concatenate %9, %10 in 0 : vector<4x256xf32>, vector<4x256xf32> -> vector<8x256xf32>
      %c0_6 = arith.constant 0 : index
      %c0_7 = arith.constant 0 : index
      %12 = vector.load %arg15[%c0_6, %c0_7] : memref<1x256xf32, #tpu.memory_space<vmem>>, vector<1x256xf32>
      %c0_8 = arith.constant 0 : index
      %c0_9 = arith.constant 0 : index
      %13 = vector.load %arg16[%c0_8, %c0_9] : memref<1x256xf32, #tpu.memory_space<vmem>>, vector<1x256xf32>
      %cst = arith.constant dense<0.000000e+00> : vector<8xf32>
      %14 = vector.multi_reduction <add>, %11, %cst [1] : vector<8x256xf32> to vector<8xf32>
      %15 = vector.shape_cast %14 : vector<8xf32> to vector<8x1xf32>
      %cst_10 = arith.constant 2.560000e+02 : f32
      %16 = vector.broadcast %cst_10 : f32 to vector<8x1xf32>
      %17 = arith.divf %15, %16 : vector<8x1xf32>
      %18 = vector.broadcast %17 : vector<8x1xf32> to vector<8x256xf32>
      %19 = arith.subf %11, %18 : vector<8x256xf32>
      %20 = arith.mulf %19, %19 : vector<8x256xf32>
      %cst_11 = arith.constant dense<0.000000e+00> : vector<8xf32>
      %21 = vector.multi_reduction <add>, %20, %cst_11 [1] : vector<8x256xf32> to vector<8xf32>
      %22 = vector.shape_cast %21 : vector<8xf32> to vector<8x1xf32>
      %cst_12 = arith.constant 2.560000e+02 : f32
      %23 = vector.broadcast %cst_12 : f32 to vector<8x1xf32>
      %24 = arith.divf %22, %23 : vector<8x1xf32>
      %25 = vector.broadcast %17 : vector<8x1xf32> to vector<8x256xf32>
      %26 = arith.subf %11, %25 : vector<8x256xf32>
      %cst_13 = arith.constant 9.99999974E-6 : f32
      %27 = vector.broadcast %cst_13 : f32 to vector<8x1xf32>
      %28 = arith.addf %24, %27 : vector<8x1xf32>
      %29 = math.rsqrt %28 : vector<8x1xf32>
      %30 = vector.broadcast %29 : vector<8x1xf32> to vector<8x256xf32>
      %31 = arith.mulf %26, %30 : vector<8x256xf32>
      %32 = vector.broadcast %12 : vector<1x256xf32> to vector<8x256xf32>
      %33 = arith.mulf %31, %32 : vector<8x256xf32>
      %34 = vector.broadcast %13 : vector<1x256xf32> to vector<8x256xf32>
      %35 = arith.addf %33, %34 : vector<8x256xf32>
      %c0_14 = arith.constant 0 : index
      %c0_15 = arith.constant 0 : index
      %36 = vector.load %arg17[%c0_14, %c0_15] : memref<256x128xf32, #tpu.memory_space<vmem>>, vector<256x128xf32>
      %cst_16 = arith.constant dense<0.000000e+00> : vector<8x128xf32>
      %37 = tpu.matmul %35, %36, %cst_16 {dimension_numbers = #tpu.dot_dimension_numbers<[1], [0], [0], [1], [0, 0, 1, 1], [], []>} : vector<8x256xf32>, vector<256x128xf32>, vector<8x128xf32> -> vector<8x128xf32>
      %c0_17 = arith.constant 0 : index
      %c0_18 = arith.constant 0 : index
      %38 = vector.load %arg18[%c0_17, %c0_18] : memref<1x128xf32, #tpu.memory_space<vmem>>, vector<1x128xf32>
      %39 = vector.broadcast %38 : vector<1x128xf32> to vector<8x128xf32>
      %40 = arith.addf %37, %39 : vector<8x128xf32>
      %c0_19 = arith.constant 0 : index
      %c0_20 = arith.constant 0 : index
      %41 = vector.load %arg21[%c0_19, %c0_20] : memref<128x128xf32, #tpu.memory_space<vmem>>, vector<128x128xf32>
      %42 = arith.mulf %40, %40 : vector<8x128xf32>
      %cst_21 = arith.constant dense<0.000000e+00> : vector<8xf32>
      %43 = vector.multi_reduction <add>, %42, %cst_21 [1] : vector<8x128xf32> to vector<8xf32>
      %44 = vector.shape_cast %43 : vector<8xf32> to vector<8x1xf32>
      %45 = arith.mulf %41, %41 : vector<128x128xf32>
      %cst_22 = arith.constant dense<0.000000e+00> : vector<128xf32>
      %46 = vector.multi_reduction <add>, %45, %cst_22 [1] : vector<128x128xf32> to vector<128xf32>
      %47 = vector.shape_cast %46 : vector<128xf32> to vector<1x128xf32>
      %cst_23 = arith.constant dense<0.000000e+00> : vector<8x128xf32>
      %48 = tpu.matmul %40, %41, %cst_23 {dimension_numbers = #tpu.dot_dimension_numbers<[1], [1], [0], [0], [0, 0, 1, 0], [], []>} : vector<8x128xf32>, vector<128x128xf32>, vector<8x128xf32> -> vector<8x128xf32>
      %49 = vector.broadcast %44 : vector<8x1xf32> to vector<8x128xf32>
      %50 = vector.broadcast %47 : vector<1x128xf32> to vector<8x128xf32>
      %51 = arith.addf %49, %50 : vector<8x128xf32>
      %cst_24 = arith.constant 2.000000e+00 : f32
      %52 = vector.broadcast %cst_24 : f32 to vector<8x128xf32>
      %53 = arith.mulf %52, %48 : vector<8x128xf32>
      %54 = arith.subf %51, %53 : vector<8x128xf32>
      %55 = tpu.iota {dimensions = array<i32: 1>} : vector<8x128xi32>
      %c100_i32 = arith.constant 100 : i32
      %56 = vector.broadcast %c100_i32 : i32 to vector<8x128xi32>
      %57 = arith.cmpi slt, %55, %56 : vector<8x128xi32>
      %cst_25 = arith.constant 1.000000e+30 : f32
      %58 = vector.broadcast %cst_25 : f32 to vector<8x128xf32>
      %59 = arith.select %57, %54, %58 : vector<8x128xi1>, vector<8x128xf32>
      %cst_26 = arith.constant dense<0x7F800000> : vector<8xf32>
      %60 = vector.multi_reduction <minimumf>, %59, %cst_26 [1] : vector<8x128xf32> to vector<8xf32>
      %61 = vector.shape_cast %60 : vector<8xf32> to vector<8x1xf32>
      %62 = vector.broadcast %61 : vector<8x1xf32> to vector<8x128xf32>
      %63 = arith.cmpf ole, %59, %62 : vector<8x128xf32>
      %c128_i32 = arith.constant 128 : i32
      %64 = vector.broadcast %c128_i32 : i32 to vector<8x128xi32>
      %65 = arith.select %63, %55, %64 : vector<8x128xi1>, vector<8x128xi32>
      %cst_27 = arith.constant dense<2147483647> : vector<8xi32>
      %66 = vector.multi_reduction <minsi>, %65, %cst_27 [1] : vector<8x128xi32> to vector<8xi32>
      %67 = vector.shape_cast %66 : vector<8xi32> to vector<8x1xi32>
      %68 = vector.broadcast %67 : vector<8x1xi32> to vector<8x128xi32>
      %69 = arith.cmpi eq, %55, %68 : vector<8x128xi32>
      %70 = arith.extui %69 : vector<8x128xi1> to vector<8x128xi32>
      %71 = arith.sitofp %70 : vector<8x128xi32> to vector<8x128xf32>
      %cst_28 = arith.constant dense<0.000000e+00> : vector<8x128xf32>
      %72 = tpu.matmul %71, %41, %cst_28 {dimension_numbers = #tpu.dot_dimension_numbers<[1], [0], [0], [1], [0, 0, 1, 1], [], []>} : vector<8x128xf32>, vector<128x128xf32>, vector<8x128xf32> -> vector<8x128xf32>
      %73 = arith.subf %72, %40 : vector<8x128xf32>
      %74 = arith.mulf %73, %73 : vector<8x128xf32>
      %75 = vector.shape_cast %74 : vector<8x128xf32> to vector<1x8x128xf32>
      %cst_29 = arith.constant dense<0.000000e+00> : vector<1xf32>
      %76 = vector.multi_reduction <add>, %75, %cst_29 [1, 2] : vector<1x8x128xf32> to vector<1xf32>
      %77 = vector.shape_cast %76 : vector<1xf32> to vector<1x1x1xf32>
      %78 = vector.extract %77[0, 0, 0] : f32 from vector<1x1x1xf32>
      %cst_30 = arith.constant 1.024000e+03 : f32
      %79 = arith.divf %78, %cst_30 : f32
      %cst_31 = arith.constant 2.500000e-01 : f32
      %80 = arith.mulf %cst_31, %79 : f32
      %c0_32 = arith.constant 0 : index
      %c0_33 = arith.constant 0 : index
      %81 = vector.load %arg23[%c0_32, %c0_33] : memref<8x1xi32, #tpu.memory_space<vmem>>, vector<8x1xi32>
      tpu.vector_store %arg23[%c0_32, %c0_33], %67 {strides = array<i32>} : memref<8x1xi32, #tpu.memory_space<vmem>>, vector<8x1xi32>,
      %82 = vector.broadcast %80 : f32 to vector<1x1xf32>
      %c0_34 = arith.constant 0 : index
      %c0_35 = arith.constant 0 : index
      %83 = vector.load %arg24[%c0_34, %c0_35] : memref<1x1xf32, #tpu.memory_space<vmem>>, vector<1x1xf32>
      tpu.vector_store %arg24[%c0_34, %c0_35], %82 {strides = array<i32>} : memref<1x1xf32, #tpu.memory_space<vmem>>, vector<1x1xf32>,
      %c0_36 = arith.constant 0 : index
      %c0_37 = arith.constant 0 : index
      %84 = vector.load %arg19[%c0_36, %c0_37] : memref<128x256xf32, #tpu.memory_space<vmem>>, vector<128x256xf32>
      %cst_38 = arith.constant dense<0.000000e+00> : vector<8x256xf32>
      %85 = tpu.matmul %72, %84, %cst_38 {dimension_numbers = #tpu.dot_dimension_numbers<[1], [0], [0], [1], [0, 0, 1, 1], [], []>} : vector<8x128xf32>, vector<128x256xf32>, vector<8x256xf32> -> vector<8x256xf32>
      %c0_39 = arith.constant 0 : index
      %c0_40 = arith.constant 0 : index
      %86 = vector.load %arg20[%c0_39, %c0_40] : memref<1x256xf32, #tpu.memory_space<vmem>>, vector<1x256xf32>
      %87 = vector.broadcast %86 : vector<1x256xf32> to vector<8x256xf32>
      %88 = arith.addf %85, %87 : vector<8x256xf32>
      %c0_41 = arith.constant 0 : index
      %c0_42 = arith.constant 0 : index
      %89 = vector.load %arg22[%c0_41, %c0_42] : memref<8x256xf32, #tpu.memory_space<vmem>>, vector<8x256xf32>
      tpu.vector_store %arg22[%c0_41, %c0_42], %88 {strides = array<i32>} : memref<8x256xf32, #tpu.memory_space<vmem>>, vector<8x256xf32>,
    } else {
    }
    return
  }
  func.func @transform_0(%arg0: i32) -> (i32, i32) {
    %c0_i32 = arith.constant 0 : i32
    %c0_i32_0 = arith.constant 0 : i32
    %c0_i32_1 = arith.constant 0 : i32
    return %c0_i32, %c0_i32_0 : i32, i32
  }
  func.func @transform_1(%arg0: i32) -> (i32, i32) {
    %c0_i32 = arith.constant 0 : i32
    %c0_i32_0 = arith.constant 0 : i32
    %c0_i32_1 = arith.constant 0 : i32
    return %c0_i32, %c0_i32_0 : i32, i32
  }
  func.func @transform_2(%arg0: i32) -> (i32, i32, i32) {
    %c1_i32 = arith.constant 1 : i32
    %0 = arith.minsi %arg0, %c1_i32 : i32
    %c0_i32 = arith.constant 0 : i32
    %c0_i32_0 = arith.constant 0 : i32
    %c0_i32_1 = arith.constant 0 : i32
    return %0, %c0_i32, %c0_i32_0 : i32, i32, i32
  }
  func.func @transform_3(%arg0: i32) -> (i32, i32, i32) {
    %c1_i32 = arith.constant 1 : i32
    %0 = arith.minsi %arg0, %c1_i32 : i32
    %c0_i32 = arith.constant 0 : i32
    %c0_i32_0 = arith.constant 0 : i32
    %c0_i32_1 = arith.constant 0 : i32
    return %0, %c0_i32, %c0_i32_0 : i32, i32, i32
  }
  func.func @transform_4(%arg0: i32) -> (i32, i32, i32) {
    %c1_i32 = arith.constant 1 : i32
    %0 = arith.minsi %arg0, %c1_i32 : i32
    %c0_i32 = arith.constant 0 : i32
    %c0_i32_0 = arith.constant 0 : i32
    %c0_i32_1 = arith.constant 0 : i32
    return %0, %c0_i32, %c0_i32_0 : i32, i32, i32
  }
  func.func @transform_5(%arg0: i32) -> (i32, i32, i32) {
    %c1_i32 = arith.constant 1 : i32
    %0 = arith.minsi %arg0, %c1_i32 : i32
    %c0_i32 = arith.constant 0 : i32
    %c0_i32_0 = arith.constant 0 : i32
    %c0_i32_1 = arith.constant 0 : i32
    return %0, %c0_i32, %c0_i32_0 : i32, i32, i32
  }
  func.func @transform_6(%arg0: i32) -> (i32, i32, i32) {
    %c1_i32 = arith.constant 1 : i32
    %0 = arith.minsi %arg0, %c1_i32 : i32
    %c0_i32 = arith.constant 0 : i32
    %c0_i32_0 = arith.constant 0 : i32
    %c0_i32_1 = arith.constant 0 : i32
    return %0, %c0_i32, %c0_i32_0 : i32, i32, i32
  }
  func.func @transform_7(%arg0: i32) -> (i32, i32, i32) {
    %c1_i32 = arith.constant 1 : i32
    %0 = arith.minsi %arg0, %c1_i32 : i32
    %c0_i32 = arith.constant 0 : i32
    %c0_i32_0 = arith.constant 0 : i32
    %c0_i32_1 = arith.constant 0 : i32
    return %0, %c0_i32, %c0_i32_0 : i32, i32, i32
  }
  func.func @transform_8(%arg0: i32) -> (i32, i32, i32) {
    %c1_i32 = arith.constant 1 : i32
    %0 = arith.minsi %arg0, %c1_i32 : i32
    %c0_i32 = arith.constant 0 : i32
    %c0_i32_0 = arith.constant 0 : i32
    %c0_i32_1 = arith.constant 0 : i32
    return %0, %c0_i32, %c0_i32_0 : i32, i32, i32
  }
  func.func @transform_9(%arg0: i32) -> (i32, i32, i32) {
    %c1_i32 = arith.constant 1 : i32
    %0 = arith.minsi %arg0, %c1_i32 : i32
    %c0_i32 = arith.constant 0 : i32
    %c0_i32_0 = arith.constant 0 : i32
    %c0_i32_1 = arith.constant 0 : i32
    return %0, %c0_i32, %c0_i32_0 : i32, i32, i32
  }
  func.func @transform_10(%arg0: i32) -> (i32, i32, i32) {
    %c1_i32 = arith.constant 1 : i32
    %0 = arith.minsi %arg0, %c1_i32 : i32
    %c0_i32 = arith.constant 0 : i32
    %c0_i32_0 = arith.constant 0 : i32
    %c0_i32_1 = arith.constant 0 : i32
    return %0, %c0_i32, %c0_i32_0 : i32, i32, i32
  }
  func.func @transform_11(%arg0: i32) -> (i32, i32, i32) {
    %c1_i32 = arith.constant 1 : i32
    %0 = arith.minsi %arg0, %c1_i32 : i32
    %c0_i32 = arith.constant 0 : i32
    %c0_i32_0 = arith.constant 0 : i32
    %c0_i32_1 = arith.constant 0 : i32
    return %0, %c0_i32, %c0_i32_0 : i32, i32, i32
  }
  func.func @transform_12(%arg0: i32) -> (i32, i32, i32) {
    %c1_i32 = arith.constant 1 : i32
    %0 = arith.minsi %arg0, %c1_i32 : i32
    %c0_i32 = arith.constant 0 : i32
    %c0_i32_0 = arith.constant 0 : i32
    %c0_i32_1 = arith.constant 0 : i32
    return %0, %c0_i32, %c0_i32_0 : i32, i32, i32
  }
  func.func @transform_13(%arg0: i32) -> (i32, i32, i32) {
    %c1_i32 = arith.constant 1 : i32
    %0 = arith.minsi %arg0, %c1_i32 : i32
    %c0_i32 = arith.constant 0 : i32
    %c0_i32_0 = arith.constant 0 : i32
    %c0_i32_1 = arith.constant 0 : i32
    return %0, %c0_i32, %c0_i32_0 : i32, i32, i32
  }
  func.func @transform_14(%arg0: i32) -> (i32, i32) {
    %c0_i32 = arith.constant 0 : i32
    %c0_i32_0 = arith.constant 0 : i32
    %c0_i32_1 = arith.constant 0 : i32
    return %c0_i32, %c0_i32_0 : i32, i32
  }
  func.func @transform_15(%arg0: i32) -> (i32, i32) {
    %c0_i32 = arith.constant 0 : i32
    %c0_i32_0 = arith.constant 0 : i32
    %c0_i32_1 = arith.constant 0 : i32
    return %c0_i32, %c0_i32_0 : i32, i32
  }
  func.func @transform_16(%arg0: i32) -> (i32, i32) {
    %c0_i32 = arith.constant 0 : i32
    %c0_i32_0 = arith.constant 0 : i32
    %c0_i32_1 = arith.constant 0 : i32
    return %c0_i32, %c0_i32_0 : i32, i32
  }
  func.func @transform_17(%arg0: i32) -> (i32, i32) {
    %c0_i32 = arith.constant 0 : i32
    %c0_i32_0 = arith.constant 0 : i32
    %c0_i32_1 = arith.constant 0 : i32
    return %c0_i32, %c0_i32_0 : i32, i32
  }
  func.func @transform_18(%arg0: i32) -> (i32, i32) {
    %c0_i32 = arith.constant 0 : i32
    %c0_i32_0 = arith.constant 0 : i32
    %c0_i32_1 = arith.constant 0 : i32
    return %c0_i32, %c0_i32_0 : i32, i32
  }
  func.func @transform_19(%arg0: i32) -> (i32, i32) {
    %c0_i32 = arith.constant 0 : i32
    %c0_i32_0 = arith.constant 0 : i32
    %c0_i32_1 = arith.constant 0 : i32
    return %c0_i32, %c0_i32_0 : i32, i32
  }
  func.func @transform_20(%arg0: i32) -> (i32, i32) {
    %c0_i32 = arith.constant 0 : i32
    %c0_i32_0 = arith.constant 0 : i32
    %c0_i32_1 = arith.constant 0 : i32
    return %c0_i32, %c0_i32_0 : i32, i32
  }
  func.func @transform_21(%arg0: i32) -> (i32, i32) {
    %c0_i32 = arith.constant 0 : i32
    %c0_i32_0 = arith.constant 0 : i32
    %c0_i32_1 = arith.constant 0 : i32
    return %c0_i32, %c0_i32_0 : i32, i32
  }
  func.func @transform_22(%arg0: i32) -> (i32, i32) {
    %c0_i32 = arith.constant 0 : i32
    %c0_i32_0 = arith.constant 0 : i32
    %c0_i32_1 = arith.constant 0 : i32
    return %c0_i32, %c0_i32_0 : i32, i32
  }
  func.func @transform_23(%arg0: i32) -> (i32, i32) {
    %c0_i32 = arith.constant 0 : i32
    %c0_i32_0 = arith.constant 0 : i32
    %c0_i32_1 = arith.constant 0 : i32
    return %c0_i32, %c0_i32_0 : i32, i32
  }
}

</mosaic_0001>

<llo_original>
// kernel: tpu_custom_call.1
$region0: #{tpu_custom_call.1}
  #allocation0 [shape = 'u32[]', space=smem, size = 0x4, offset = 0x4, fixed_abs, tag = 'smem constant byte address 0x4 - core index']
  #allocation1 [shape = 'u32[72,128]{1,0:T(1,128)}', space=vmem, size = 0x9000, scoped, tag = 'internal scratch']
  #allocation2 [shape = 'f32[32,256]{1,0:T(8,128)}', space=vmem, size = 0x8000, scoped, tag = 'scratch operand']
  #allocation3 [shape = 'f32[32,768]{1,0:T(8,128)}', space=vmem, size = 0x18000, scoped, tag = 'scratch operand']
  #allocation4 [shape = 'f32[32,256]{1,0:T(8,128)}', space=vmem, size = 0x8000, scoped, tag = 'scratch operand']
  %s0 = inlined_call_operand.hbm [shape: f32[32,256], index: 0, kind: input, shape index: {}]
  %s1 = inlined_call_operand.hbm [shape: f32[2,16], index: 1, kind: input, shape index: {}]
  %s2 = inlined_call_operand.hbm [shape: bf16[2,256,768], index: 2, kind: input, shape index: {}]
  %s3 = inlined_call_operand.hbm [shape: f32[2,1,768], index: 3, kind: input, shape index: {}]
  %s4 = inlined_call_operand.hbm [shape: bf16[2,256,256], index: 4, kind: input, shape index: {}]
  %s5 = inlined_call_operand.hbm [shape: f32[2,1,256], index: 5, kind: input, shape index: {}]
  %s6 = inlined_call_operand.hbm [shape: f32[2,1,256], index: 6, kind: input, shape index: {}]
  %s7 = inlined_call_operand.hbm [shape: f32[2,1,256], index: 7, kind: input, shape index: {}]
  %s8 = inlined_call_operand.hbm [shape: bf16[2,256,512], index: 8, kind: input, shape index: {}]
  %s9 = inlined_call_operand.vmem [shape: f32[2,1,512], index: 9, kind: input, shape index: {}]
  %s10 = inlined_call_operand.hbm [shape: bf16[2,512,256], index: 10, kind: input, shape index: {}]
  %s11 = inlined_call_operand.hbm [shape: f32[2,1,256], index: 11, kind: input, shape index: {}]
  %s12 = inlined_call_operand.hbm [shape: f32[2,1,256], index: 12, kind: input, shape index: {}]
  %s13 = inlined_call_operand.vmem [shape: f32[2,1,256], index: 13, kind: input, shape index: {}]
  %s14 = inlined_call_operand.hbm [shape: f32[1,256], index: 14, kind: input, shape index: {}]
  %s15 = inlined_call_operand.vmem [shape: f32[1,256], index: 15, kind: input, shape index: {}]
  %s16 = inlined_call_operand.hbm [shape: f32[256,128], index: 16, kind: input, shape index: {}]
  %s17 = inlined_call_operand.hbm [shape: f32[1,128], index: 17, kind: input, shape index: {}]
  %s18 = inlined_call_operand.hbm [shape: f32[128,256], index: 18, kind: input, shape index: {}]
  %s19 = inlined_call_operand.vmem [shape: f32[1,256], index: 19, kind: input, shape index: {}]
  %s20 = inlined_call_operand.hbm [shape: f32[128,128], index: 20, kind: input, shape index: {}]
  %s21 = inlined_call_operand.hbm [shape: f32[8,256], index: 21, kind: output, shape index: {0}]
  %s22 = inlined_call_operand.vmem [shape: s32[8,1], index: 22, kind: output, shape index: {1}]
  %s23 = inlined_call_operand.hbm [shape: f32[1,1], index: 23, kind: output, shape index: {2}]
  %24 = xla_tuple %s21, %s22, %s23
  %s25 = sld [smem:[#allocation0]]
  $region213: #{tpu_custom_call.1} parent=0
    _
  %s27 = ssub.s32 1, %s25
  %s28 = scalar_select 0, %s27, %s25
  $region1: #{tpu_custom_call.1} parent=0
    #allocation5 [shape = 'u8[32768]{0}', space=vmem, size = 0x8000, scoped, tag = 'input window, operand 0, single buffered']
    #allocation6 [shape = 's32[2]{0}', space=sflag, size = 0x8, scoped, tag = 'scoped memory for tpu_custom_call.1']
    #allocation7 [shape = 's32[2]{0}', space=sflag, size = 0x8, scoped, tag = 'scoped memory for tpu_custom_call.1']
    #allocation8 [shape = 'u8[1024]{0}', space=vmem, size = 0x400, scoped, tag = 'input window, operand 1, single buffered']
    #allocation9 [shape = 's32[1]{0}', space=sflag, size = 0x4, scoped, tag = 'scoped memory for tpu_custom_call.1']
    #allocation10 [shape = 'u8[786432]{0}', space=vmem, size = 0xc0000, scoped, tag = 'input window, operand 2']
    #allocation11 [shape = 'u8[6144]{0}', space=vmem, size = 0x1800, scoped, tag = 'input window, operand 3']
    #allocation12 [shape = 'u8[262144]{0}', space=vmem, size = 0x40000, scoped, tag = 'input window, operand 4']
    #allocation13 [shape = 'u8[2048]{0}', space=vmem, size = 0x800, scoped, tag = 'input window, operand 5']
    #allocation14 [shape = 'u8[2048]{0}', space=vmem, size = 0x800, scoped, tag = 'input window, operand 6']
    #allocation15 [shape = 'u8[2048]{0}', space=vmem, size = 0x800, scoped, tag = 'input window, operand 7']
    #allocation16 [shape = 'u8[524288]{0}', space=vmem, size = 0x80000, scoped, tag = 'input window, operand 8']
    #allocation17 [shape = 'u8[524288]{0}', space=vmem, size = 0x80000, scoped, tag = 'input window, operand 10']
    #allocation18 [shape = 'u8[2048]{0}', space=vmem, size = 0x800, scoped, tag = 'input window, operand 11']
    #allocation19 [shape = 'u8[2048]{0}', space=vmem, size = 0x800, scoped, tag = 'input window, operand 12']
    #allocation20 [shape = 'u8[1024]{0}', space=vmem, size = 0x400, scoped, tag = 'input window, operand 14, single buffered']
    #allocation21 [shape = 'u8[131072]{0}', space=vmem, size = 0x20000, scoped, tag = 'input window, operand 16, single buffered']
    #allocation22 [shape = 's32[1]{0}', space=sflag, size = 0x4, scoped, tag = 'scoped memory for tpu_custom_call.1']
    #allocation23 [shape = 'u8[512]{0}', space=vmem, size = 0x400, scoped, tag = 'input window, operand 17, single buffered']
    #allocation24 [shape = 'u8[131072]{0}', space=vmem, size = 0x20000, scoped, tag = 'input window, operand 18, single buffered']
    #allocation25 [shape = 's32[1]{0}', space=sflag, size = 0x4, scoped, tag = 'scoped memory for tpu_custom_call.1']
    #allocation26 [shape = 'u8[65536]{0}', space=vmem, size = 0x10000, scoped, tag = 'input window, operand 20, single buffered']
    #allocation27 [shape = 'u8[8192]{0}', space=vmem, size = 0x2000, scoped, tag = 'output window, operand 0, single buffered']
    #allocation28 [shape = 'u8[512]{0}', space=vmem, size = 0x400, scoped, tag = 'output window, operand 2, single buffered']
    #allocation29 [shape = 's32[1]{0}', space=sflag, size = 0x4, scoped, tag = 'scoped memory for tpu_custom_call.1']
    %29 = vsyncpa [#allocation6], 0
    %30 = vsyncpa [#allocation9], 0
    %31 = vsyncpa [#allocation22], 0
    %32 = vsyncpa [#allocation25], 0
    %33 = vsyncpa [#allocation7], 0
    %34 = vsyncpa [#allocation29], 0
    loop: start=0, step=1, limit=5
    $region2: #{tpu_custom_call.1} parent=1 // loop_pre_header
      _
    $region3: #{tpu_custom_call.1} parent=1 // loop_header
      %s36 = sphi 0, %s40
      %p37 = scmp.ge.s32.totalorder %s36, 5
      %s44 = sphi 0, %s44
      %s46 = sphi 0, %s44
      %s47 = sphi 0, %s46
      %s61 = sphi 0, %s47
      %s65 = sphi 0, %s65
      %s67 = sphi 0, %s65
      %s68 = sphi 0, %s67
      %s82 = sphi 0, %s68
      %s92 = sphi 0, %s94
      %s95 = sphi 0, %s92
      %s96 = sphi 0, %s95
      %s112 = sphi 0, %s96
      %s122 = sphi 0, %s124
      %s125 = sphi 0, %s122
      %s126 = sphi 0, %s125
      %s142 = sphi 0, %s126
      %s152 = sphi 0, %s154
      %s155 = sphi 0, %s152
      %s156 = sphi 0, %s155
      %s172 = sphi 0, %s156
      %s182 = sphi 0, %s184
      %s185 = sphi 0, %s182
      %s186 = sphi 0, %s185
      %s202 = sphi 0, %s186
      %s212 = sphi 0, %s214
      %s215 = sphi 0, %s212
      %s216 = sphi 0, %s215
      %s232 = sphi 0, %s216
      %s242 = sphi 0, %s244
      %s245 = sphi 0, %s242
      %s246 = sphi 0, %s245
      %s262 = sphi 0, %s246
      %s272 = sphi 0, %s274
      %s275 = sphi 0, %s272
      %s276 = sphi 0, %s275
      %s292 = sphi 0, %s276
      %s302 = sphi 0, %s304
      %s305 = sphi 0, %s302
      %s306 = sphi 0, %s305
      %s322 = sphi 0, %s306
      %s332 = sphi 0, %s334
      %s335 = sphi 0, %s332
      %s336 = sphi 0, %s335
      %s352 = sphi 0, %s336
      %s362 = sphi 0, %s364
      %s365 = sphi 0, %s362
      %s366 = sphi 0, %s365
      %s382 = sphi 0, %s366
      %s392 = sphi 0, %s394
      %s395 = sphi 0, %s392
      %s396 = sphi 0, %s395
      %s412 = sphi 0, %s396
      %s422 = sphi 0, %s424
      %s425 = sphi 0, %s422
      %s426 = sphi 0, %s425
      %s442 = sphi 0, %s426
      %s446 = sphi 0, %s446
      %s448 = sphi 0, %s446
      %s449 = sphi 0, %s448
      %s463 = sphi 0, %s449
      %s467 = sphi 0, %s467
      %s469 = sphi 0, %s467
      %s470 = sphi 0, %s469
      %s484 = sphi 0, %s470
      %s488 = sphi 0, %s488
      %s490 = sphi 0, %s488
      %s491 = sphi 0, %s490
      %s505 = sphi 0, %s491
      %s509 = sphi 0, %s509
      %s511 = sphi 0, %s509
      %s512 = sphi 0, %s511
      %s526 = sphi 0, %s512
      %s530 = sphi 0, %s530
      %s532 = sphi 0, %s530
      %s533 = sphi 0, %s532
      %s547 = sphi 0, %s533
      %s551 = sphi 0, %s551
      %s553 = sphi 0, %s551
      %s554 = sphi 0, %s553
      %s568 = sphi 0, %s554
      %s572 = sphi 0, %s572
      %s574 = sphi 0, %s572
      %s575 = sphi 0, %s574
      %s589 = sphi 0, %s575
      %s593 = sphi 0, %s593
      %s595 = sphi 0, %s593
      %s596 = sphi 0, %s595
      %s610 = sphi 0, %s596
      %s614 = sphi 0, %s614
      %s616 = sphi 0, %s614
      %s617 = sphi 0, %s616
      %s631 = sphi 0, %s617
      %s635 = sphi 0, %s635
      %s637 = sphi 0, %s635
      %s638 = sphi 0, %s637
      %s652 = sphi 0, %s638
    $region4: #{tpu_custom_call.1} parent=1 // loop_header_branch
      %39 = sbr.rel (%p37) target = $region8
    $region5: #{tpu_custom_call.1} parent=1 // loop_body
      %s41 = ssub.s32 %s36, 1
      %s42 = ssub.s32 %s36, 2
      %s43 = sadd.s32 %s36, 1
      %s45 = sadd.s32 %s44, 1
      %p48 = scmp.eq.s32.totalorder %s36, 2
      %p49 = scmp.ne.s32.totalorder %s44, %s46
      %p50 = scmp.eq.s32.totalorder %s36, 0
      %p51 = por %p49, %p50
      %p52 = scmp.ne.s32.totalorder %s44, %s46
      %p53 = scmp.eq.s32.totalorder %s41, 2
      %p54 = por %p52, %p53
      %p55 = scmp.ne.s32.totalorder %s46, %s47
      %p56 = scmp.eq.s32.totalorder %s41, 0
      %p57 = por %p55, %p56
      %p58 = scmp.ne.s32.totalorder %s46, %s47
      %p59 = scmp.eq.s32.totalorder %s42, 2
      %p60 = por %p58, %p59
      %p62 = scmp.ne.s32.totalorder %s47, %s61
      %p63 = scmp.eq.s32.totalorder %s42, 0
      %p64 = por %p62, %p63
      %s66 = sadd.s32 %s65, 1
      %p69 = scmp.eq.s32.totalorder %s36, 2
      %p70 = scmp.ne.s32.totalorder %s65, %s67
      %p71 = scmp.eq.s32.totalorder %s36, 0
      %p72 = por %p70, %p71
      %p73 = scmp.ne.s32.totalorder %s65, %s67
      %p74 = scmp.eq.s32.totalorder %s41, 2
      %p75 = por %p73, %p74
      %p76 = scmp.ne.s32.totalorder %s67, %s68
      %p77 = scmp.eq.s32.totalorder %s41, 0
      %p78 = por %p76, %p77
      %p79 = scmp.ne.s32.totalorder %s67, %s68
      %p80 = scmp.eq.s32.totalorder %s42, 2
      %p81 = por %p79, %p80
      %p83 = scmp.ne.s32.totalorder %s68, %s82
      %p84 = scmp.eq.s32.totalorder %s42, 0
      %p85 = por %p83, %p84
      %p86 = scmp.lt.s32.totalorder %s36, 1
      %s87 = scalar_select %p86, %s36, 1
      %p88 = scmp.lt.s32.totalorder %s43, 1
      %s89 = scalar_select %p88, %s43, 1
      %s90 = ssub.s32 %s87, %s89
      %p91 = scmp.eq.s32.totalorder %s90, 0
      %s93 = sadd.s32 %s92, 1
      %s94 = scalar_select %p91, %s92, %s93
      %p97 = pneg %p91
      %p98 = scmp.eq.s32.totalorder %s36, 2
      %p99 = por %p97, %p98
      %p100 = scmp.ne.s32.totalorder %s92, %s95
      %p101 = scmp.eq.s32.totalorder %s36, 0
      %p102 = por %p100, %p101
      %p103 = scmp.ne.s32.totalorder %s92, %s95
      %p104 = scmp.eq.s32.totalorder %s41, 2
      %p105 = por %p103, %p104
      %p106 = scmp.ne.s32.totalorder %s95, %s96
      %p107 = scmp.eq.s32.totalorder %s41, 0
      %p108 = por %p106, %p107
      %p109 = scmp.ne.s32.totalorder %s95, %s96
      %p110 = scmp.eq.s32.totalorder %s42, 2
      %p111 = por %p109, %p110
      %p113 = scmp.ne.s32.totalorder %s96, %s112
      %p114 = scmp.eq.s32.totalorder %s42, 0
      %p115 = por %p113, %p114
      %p116 = scmp.lt.s32.totalorder %s36, 1
      %s117 = scalar_select %p116, %s36, 1
      %p118 = scmp.lt.s32.totalorder %s43, 1
      %s119 = scalar_select %p118, %s43, 1
      %s120 = ssub.s32 %s117, %s119
      %p121 = scmp.eq.s32.totalorder %s120, 0
      %s123 = sadd.s32 %s122, 1
      %s124 = scalar_select %p121, %s122, %s123
      %p127 = pneg %p121
      %p128 = scmp.eq.s32.totalorder %s36, 2
      %p129 = por %p127, %p128
      %p130 = scmp.ne.s32.totalorder %s122, %s125
      %p131 = scmp.eq.s32.totalorder %s36, 0
      %p132 = por %p130, %p131
      %p133 = scmp.ne.s32.totalorder %s122, %s125
      %p134 = scmp.eq.s32.totalorder %s41, 2
      %p135 = por %p133, %p134
      %p136 = scmp.ne.s32.totalorder %s125, %s126
      %p137 = scmp.eq.s32.totalorder %s41, 0
      %p138 = por %p136, %p137
      %p139 = scmp.ne.s32.totalorder %s125, %s126
      %p140 = scmp.eq.s32.totalorder %s42, 2
      %p141 = por %p139, %p140
      %p143 = scmp.ne.s32.totalorder %s126, %s142
      %p144 = scmp.eq.s32.totalorder %s42, 0
      %p145 = por %p143, %p144
      %p146 = scmp.lt.s32.totalorder %s36, 1
      %s147 = scalar_select %p146, %s36, 1
      %p148 = scmp.lt.s32.totalorder %s43, 1
      %s149 = scalar_select %p148, %s43, 1
      %s150 = ssub.s32 %s147, %s149
      %p151 = scmp.eq.s32.totalorder %s150, 0
      %s153 = sadd.s32 %s152, 1
      %s154 = scalar_select %p151, %s152, %s153
      %p157 = pneg %p151
      %p158 = scmp.eq.s32.totalorder %s36, 2
      %p159 = por %p157, %p158
      %p160 = scmp.ne.s32.totalorder %s152, %s155
      %p161 = scmp.eq.s32.totalorder %s36, 0
      %p162 = por %p160, %p161
      %p163 = scmp.ne.s32.totalorder %s152, %s155
      %p164 = scmp.eq.s32.totalorder %s41, 2
      %p165 = por %p163, %p164
      %p166 = scmp.ne.s32.totalorder %s155, %s156
      %p167 = scmp.eq.s32.totalorder %s41, 0
      %p168 = por %p166, %p167
      %p169 = scmp.ne.s32.totalorder %s155, %s156
      %p170 = scmp.eq.s32.totalorder %s42, 2
      %p171 = por %p169, %p170
      %p173 = scmp.ne.s32.totalorder %s156, %s172
      %p174 = scmp.eq.s32.totalorder %s42, 0
      %p175 = por %p173, %p174
      %p176 = scmp.lt.s32.totalorder %s36, 1
      %s177 = scalar_select %p176, %s36, 1
      %p178 = scmp.lt.s32.totalorder %s43, 1
      %s179 = scalar_select %p178, %s43, 1
      %s180 = ssub.s32 %s177, %s179
      %p181 = scmp.eq.s32.totalorder %s180, 0
      %s183 = sadd.s32 %s182, 1
      %s184 = scalar_select %p181, %s182, %s183
      %p187 = pneg %p181
      %p188 = scmp.eq.s32.totalorder %s36, 2
      %p189 = por %p187, %p188
      %p190 = scmp.ne.s32.totalorder %s182, %s185
      %p191 = scmp.eq.s32.totalorder %s36, 0
      %p192 = por %p190, %p191
      %p193 = scmp.ne.s32.totalorder %s182, %s185
      %p194 = scmp.eq.s32.totalorder %s41, 2
      %p195 = por %p193, %p194
      %p196 = scmp.ne.s32.totalorder %s185, %s186
      %p197 = scmp.eq.s32.totalorder %s41, 0
      %p198 = por %p196, %p197
      %p199 = scmp.ne.s32.totalorder %s185, %s186
      %p200 = scmp.eq.s32.totalorder %s42, 2
      %p201 = por %p199, %p200
      %p203 = scmp.ne.s32.totalorder %s186, %s202
      %p204 = scmp.eq.s32.totalorder %s42, 0
      %p205 = por %p203, %p204
      %p206 = scmp.lt.s32.totalorder %s36, 1
      %s207 = scalar_select %p206, %s36, 1
      %p208 = scmp.lt.s32.totalorder %s43, 1
      %s209 = scalar_select %p208, %s43, 1
      %s210 = ssub.s32 %s207, %s209
      %p211 = scmp.eq.s32.totalorder %s210, 0
      %s213 = sadd.s32 %s212, 1
      %s214 = scalar_select %p211, %s212, %s213
      %p217 = pneg %p211
      %p218 = scmp.eq.s32.totalorder %s36, 2
      %p219 = por %p217, %p218
      %p220 = scmp.ne.s32.totalorder %s212, %s215
      %p221 = scmp.eq.s32.totalorder %s36, 0
      %p222 = por %p220, %p221
      %p223 = scmp.ne.s32.totalorder %s212, %s215
      %p224 = scmp.eq.s32.totalorder %s41, 2
      %p225 = por %p223, %p224
      %p226 = scmp.ne.s32.totalorder %s215, %s216
      %p227 = scmp.eq.s32.totalorder %s41, 0
      %p228 = por %p226, %p227
      %p229 = scmp.ne.s32.totalorder %s215, %s216
      %p230 = scmp.eq.s32.totalorder %s42, 2
      %p231 = por %p229, %p230
      %p233 = scmp.ne.s32.totalorder %s216, %s232
      %p234 = scmp.eq.s32.totalorder %s42, 0
      %p235 = por %p233, %p234
      %p236 = scmp.lt.s32.totalorder %s36, 1
      %s237 = scalar_select %p236, %s36, 1
      %p238 = scmp.lt.s32.totalorder %s43, 1
      %s239 = scalar_select %p238, %s43, 1
      %s240 = ssub.s32 %s237, %s239
      %p241 = scmp.eq.s32.totalorder %s240, 0
      %s243 = sadd.s32 %s242, 1
      %s244 = scalar_select %p241, %s242, %s243
      %p247 = pneg %p241
      %p248 = scmp.eq.s32.totalorder %s36, 2
      %p249 = por %p247, %p248
      %p250 = scmp.ne.s32.totalorder %s242, %s245
      %p251 = scmp.eq.s32.totalorder %s36, 0
      %p252 = por %p250, %p251
      %p253 = scmp.ne.s32.totalorder %s242, %s245
      %p254 = scmp.eq.s32.totalorder %s41, 2
      %p255 = por %p253, %p254
      %p256 = scmp.ne.s32.totalorder %s245, %s246
      %p257 = scmp.eq.s32.totalorder %s41, 0
      %p258 = por %p256, %p257
      %p259 = scmp.ne.s32.totalorder %s245, %s246
      %p260 = scmp.eq.s32.totalorder %s42, 2
      %p261 = por %p259, %p260
      %p263 = scmp.ne.s32.totalorder %s246, %s262
      %p264 = scmp.eq.s32.totalorder %s42, 0
      %p265 = por %p263, %p264
      %p266 = scmp.lt.s32.totalorder %s36, 1
      %s267 = scalar_select %p266, %s36, 1
      %p268 = scmp.lt.s32.totalorder %s43, 1
      %s269 = scalar_select %p268, %s43, 1
      %s270 = ssub.s32 %s267, %s269
      %p271 = scmp.eq.s32.totalorder %s270, 0
      %s273 = sadd.s32 %s272, 1
      %s274 = scalar_select %p271, %s272, %s273
      %p277 = pneg %p271
      %p278 = scmp.eq.s32.totalorder %s36, 2
      %p279 = por %p277, %p278
      %p280 = scmp.ne.s32.totalorder %s272, %s275
      %p281 = scmp.eq.s32.totalorder %s36, 0
      %p282 = por %p280, %p281
      %p283 = scmp.ne.s32.totalorder %s272, %s275
      %p284 = scmp.eq.s32.totalorder %s41, 2
      %p285 = por %p283, %p284
      %p286 = scmp.ne.s32.totalorder %s275, %s276
      %p287 = scmp.eq.s32.totalorder %s41, 0
      %p288 = por %p286, %p287
      %p289 = scmp.ne.s32.totalorder %s275, %s276
      %p290 = scmp.eq.s32.totalorder %s42, 2
      %p291 = por %p289, %p290
      %p293 = scmp.ne.s32.totalorder %s276, %s292
      %p294 = scmp.eq.s32.totalorder %s42, 0
      %p295 = por %p293, %p294
      %p296 = scmp.lt.s32.totalorder %s36, 1
      %s297 = scalar_select %p296, %s36, 1
      %p298 = scmp.lt.s32.totalorder %s43, 1
      %s299 = scalar_select %p298, %s43, 1
      %s300 = ssub.s32 %s297, %s299
      %p301 = scmp.eq.s32.totalorder %s300, 0
      %s303 = sadd.s32 %s302, 1
      %s304 = scalar_select %p301, %s302, %s303
      %p307 = pneg %p301
      %p308 = scmp.eq.s32.totalorder %s36, 2
      %p309 = por %p307, %p308
      %p310 = scmp.ne.s32.totalorder %s302, %s305
      %p311 = scmp.eq.s32.totalorder %s36, 0
      %p312 = por %p310, %p311
      %p313 = scmp.ne.s32.totalorder %s302, %s305
      %p314 = scmp.eq.s32.totalorder %s41, 2
      %p315 = por %p313, %p314
      %p316 = scmp.ne.s32.totalorder %s305, %s306
      %p317 = scmp.eq.s32.totalorder %s41, 0
      %p318 = por %p316, %p317
      %p319 = scmp.ne.s32.totalorder %s305, %s306
      %p320 = scmp.eq.s32.totalorder %s42, 2
      %p321 = por %p319, %p320
      %p323 = scmp.ne.s32.totalorder %s306, %s322
      %p324 = scmp.eq.s32.totalorder %s42, 0
      %p325 = por %p323, %p324
      %p326 = scmp.lt.s32.totalorder %s36, 1
      %s327 = scalar_select %p326, %s36, 1
      %p328 = scmp.lt.s32.totalorder %s43, 1
      %s329 = scalar_select %p328, %s43, 1
      %s330 = ssub.s32 %s327, %s329
      %p331 = scmp.eq.s32.totalorder %s330, 0
      %s333 = sadd.s32 %s332, 1
      %s334 = scalar_select %p331, %s332, %s333
      %p337 = pneg %p331
      %p338 = scmp.eq.s32.totalorder %s36, 2
      %p339 = por %p337, %p338
      %p340 = scmp.ne.s32.totalorder %s332, %s335
      %p341 = scmp.eq.s32.totalorder %s36, 0
      %p342 = por %p340, %p341
      %p343 = scmp.ne.s32.totalorder %s332, %s335
      %p344 = scmp.eq.s32.totalorder %s41, 2
      %p345 = por %p343, %p344
      %p346 = scmp.ne.s32.totalorder %s335, %s336
      %p347 = scmp.eq.s32.totalorder %s41, 0
      %p348 = por %p346, %p347
      %p349 = scmp.ne.s32.totalorder %s335, %s336
      %p350 = scmp.eq.s32.totalorder %s42, 2
      %p351 = por %p349, %p350
      %p353 = scmp.ne.s32.totalorder %s336, %s352
      %p354 = scmp.eq.s32.totalorder %s42, 0
      %p355 = por %p353, %p354
      %p356 = scmp.lt.s32.totalorder %s36, 1
      %s357 = scalar_select %p356, %s36, 1
      %p358 = scmp.lt.s32.totalorder %s43, 1
      %s359 = scalar_select %p358, %s43, 1
      %s360 = ssub.s32 %s357, %s359
      %p361 = scmp.eq.s32.totalorder %s360, 0
      %s363 = sadd.s32 %s362, 1
      %s364 = scalar_select %p361, %s362, %s363
      %p367 = pneg %p361
      %p368 = scmp.eq.s32.totalorder %s36, 2
      %p369 = por %p367, %p368
      %p370 = scmp.ne.s32.totalorder %s362, %s365
      %p371 = scmp.eq.s32.totalorder %s36, 0
      %p372 = por %p370, %p371
      %p373 = scmp.ne.s32.totalorder %s362, %s365
      %p374 = scmp.eq.s32.totalorder %s41, 2
      %p375 = por %p373, %p374
      %p376 = scmp.ne.s32.totalorder %s365, %s366
      %p377 = scmp.eq.s32.totalorder %s41, 0
      %p378 = por %p376, %p377
      %p379 = scmp.ne.s32.totalorder %s365, %s366
      %p380 = scmp.eq.s32.totalorder %s42, 2
      %p381 = por %p379, %p380
      %p383 = scmp.ne.s32.totalorder %s366, %s382
      %p384 = scmp.eq.s32.totalorder %s42, 0
      %p385 = por %p383, %p384
      %p386 = scmp.lt.s32.totalorder %s36, 1
      %s387 = scalar_select %p386, %s36, 1
      %p388 = scmp.lt.s32.totalorder %s43, 1
      %s389 = scalar_select %p388, %s43, 1
      %s390 = ssub.s32 %s387, %s389
      %p391 = scmp.eq.s32.totalorder %s390, 0
      %s393 = sadd.s32 %s392, 1
      %s394 = scalar_select %p391, %s392, %s393
      %p397 = pneg %p391
      %p398 = scmp.eq.s32.totalorder %s36, 2
      %p399 = por %p397, %p398
      %p400 = scmp.ne.s32.totalorder %s392, %s395
      %p401 = scmp.eq.s32.totalorder %s36, 0
      %p402 = por %p400, %p401
      %p403 = scmp.ne.s32.totalorder %s392, %s395
      %p404 = scmp.eq.s32.totalorder %s41, 2
      %p405 = por %p403, %p404
      %p406 = scmp.ne.s32.totalorder %s395, %s396
      %p407 = scmp.eq.s32.totalorder %s41, 0
      %p408 = por %p406, %p407
      %p409 = scmp.ne.s32.totalorder %s395, %s396
      %p410 = scmp.eq.s32.totalorder %s42, 2
      %p411 = por %p409, %p410
      %p413 = scmp.ne.s32.totalorder %s396, %s412
      %p414 = scmp.eq.s32.totalorder %s42, 0
      %p415 = por %p413, %p414
      %p416 = scmp.lt.s32.totalorder %s36, 1
      %s417 = scalar_select %p416, %s36, 1
      %p418 = scmp.lt.s32.totalorder %s43, 1
      %s419 = scalar_select %p418, %s43, 1
      %s420 = ssub.s32 %s417, %s419
      %p421 = scmp.eq.s32.totalorder %s420, 0
      %s423 = sadd.s32 %s422, 1
      %s424 = scalar_select %p421, %s422, %s423
      %p427 = pneg %p421
      %p428 = scmp.eq.s32.totalorder %s36, 2
      %p429 = por %p427, %p428
      %p430 = scmp.ne.s32.totalorder %s422, %s425
      %p431 = scmp.eq.s32.totalorder %s36, 0
      %p432 = por %p430, %p431
      %p433 = scmp.ne.s32.totalorder %s422, %s425
      %p434 = scmp.eq.s32.totalorder %s41, 2
      %p435 = por %p433, %p434
      %p436 = scmp.ne.s32.totalorder %s425, %s426
      %p437 = scmp.eq.s32.totalorder %s41, 0
      %p438 = por %p436, %p437
      %p439 = scmp.ne.s32.totalorder %s425, %s426
      %p440 = scmp.eq.s32.totalorder %s42, 2
      %p441 = por %p439, %p440
      %p443 = scmp.ne.s32.totalorder %s426, %s442
      %p444 = scmp.eq.s32.totalorder %s42, 0
      %p445 = por %p443, %p444
      %s447 = sadd.s32 %s446, 1
      %p450 = scmp.eq.s32.totalorder %s36, 2
      %p451 = scmp.ne.s32.totalorder %s446, %s448
      %p452 = scmp.eq.s32.totalorder %s36, 0
      %p453 = por %p451, %p452
      %p454 = scmp.ne.s32.totalorder %s446, %s448
      %p455 = scmp.eq.s32.totalorder %s41, 2
      %p456 = por %p454, %p455
      %p457 = scmp.ne.s32.totalorder %s448, %s449
      %p458 = scmp.eq.s32.totalorder %s41, 0
      %p459 = por %p457, %p458
      %p460 = scmp.ne.s32.totalorder %s448, %s449
      %p461 = scmp.eq.s32.totalorder %s42, 2
      %p462 = por %p460, %p461
      %p464 = scmp.ne.s32.totalorder %s449, %s463
      %p465 = scmp.eq.s32.totalorder %s42, 0
      %p466 = por %p464, %p465
      %s468 = sadd.s32 %s467, 1
      %p471 = scmp.eq.s32.totalorder %s36, 2
      %p472 = scmp.ne.s32.totalorder %s467, %s469
      %p473 = scmp.eq.s32.totalorder %s36, 0
      %p474 = por %p472, %p473
      %p475 = scmp.ne.s32.totalorder %s467, %s469
      %p476 = scmp.eq.s32.totalorder %s41, 2
      %p477 = por %p475, %p476
      %p478 = scmp.ne.s32.totalorder %s469, %s470
      %p479 = scmp.eq.s32.totalorder %s41, 0
      %p480 = por %p478, %p479
      %p481 = scmp.ne.s32.totalorder %s469, %s470
      %p482 = scmp.eq.s32.totalorder %s42, 2
      %p483 = por %p481, %p482
      %p485 = scmp.ne.s32.totalorder %s470, %s484
      %p486 = scmp.eq.s32.totalorder %s42, 0
      %p487 = por %p485, %p486
      %s489 = sadd.s32 %s488, 1
      %p492 = scmp.eq.s32.totalorder %s36, 2
      %p493 = scmp.ne.s32.totalorder %s488, %s490
      %p494 = scmp.eq.s32.totalorder %s36, 0
      %p495 = por %p493, %p494
      %p496 = scmp.ne.s32.totalorder %s488, %s490
      %p497 = scmp.eq.s32.totalorder %s41, 2
      %p498 = por %p496, %p497
      %p499 = scmp.ne.s32.totalorder %s490, %s491
      %p500 = scmp.eq.s32.totalorder %s41, 0
      %p501 = por %p499, %p500
      %p502 = scmp.ne.s32.totalorder %s490, %s491
      %p503 = scmp.eq.s32.totalorder %s42, 2
      %p504 = por %p502, %p503
      %p506 = scmp.ne.s32.totalorder %s491, %s505
      %p507 = scmp.eq.s32.totalorder %s42, 0
      %p508 = por %p506, %p507
      %s510 = sadd.s32 %s509, 1
      %p513 = scmp.eq.s32.totalorder %s36, 2
      %p514 = scmp.ne.s32.totalorder %s509, %s511
      %p515 = scmp.eq.s32.totalorder %s36, 0
      %p516 = por %p514, %p515
      %p517 = scmp.ne.s32.totalorder %s509, %s511
      %p518 = scmp.eq.s32.totalorder %s41, 2
      %p519 = por %p517, %p518
      %p520 = scmp.ne.s32.totalorder %s511, %s512
      %p521 = scmp.eq.s32.totalorder %s41, 0
      %p522 = por %p520, %p521
      %p523 = scmp.ne.s32.totalorder %s511, %s512
      %p524 = scmp.eq.s32.totalorder %s42, 2
      %p525 = por %p523, %p524
      %p527 = scmp.ne.s32.totalorder %s512, %s526
      %p528 = scmp.eq.s32.totalorder %s42, 0
      %p529 = por %p527, %p528
      %s531 = sadd.s32 %s530, 1
      %p534 = scmp.eq.s32.totalorder %s36, 2
      %p535 = scmp.ne.s32.totalorder %s530, %s532
      %p536 = scmp.eq.s32.totalorder %s36, 0
      %p537 = por %p535, %p536
      %p538 = scmp.ne.s32.totalorder %s530, %s532
      %p539 = scmp.eq.s32.totalorder %s41, 2
      %p540 = por %p538, %p539
      %p541 = scmp.ne.s32.totalorder %s532, %s533
      %p542 = scmp.eq.s32.totalorder %s41, 0
      %p543 = por %p541, %p542
      %p544 = scmp.ne.s32.totalorder %s532, %s533
      %p545 = scmp.eq.s32.totalorder %s42, 2
      %p546 = por %p544, %p545
      %p548 = scmp.ne.s32.totalorder %s533, %s547
      %p549 = scmp.eq.s32.totalorder %s42, 0
      %p550 = por %p548, %p549
      %s552 = sadd.s32 %s551, 1
      %p555 = scmp.eq.s32.totalorder %s36, 2
      %p556 = scmp.ne.s32.totalorder %s551, %s553
      %p557 = scmp.eq.s32.totalorder %s36, 0
      %p558 = por %p556, %p557
      %p559 = scmp.ne.s32.totalorder %s551, %s553
      %p560 = scmp.eq.s32.totalorder %s41, 2
      %p561 = por %p559, %p560
      %p562 = scmp.ne.s32.totalorder %s553, %s554
      %p563 = scmp.eq.s32.totalorder %s41, 0
      %p564 = por %p562, %p563
      %p565 = scmp.ne.s32.totalorder %s553, %s554
      %p566 = scmp.eq.s32.totalorder %s42, 2
      %p567 = por %p565, %p566
      %p569 = scmp.ne.s32.totalorder %s554, %s568
      %p570 = scmp.eq.s32.totalorder %s42, 0
      %p571 = por %p569, %p570
      %s573 = sadd.s32 %s572, 1
      %p576 = scmp.eq.s32.totalorder %s36, 2
      %p577 = scmp.ne.s32.totalorder %s572, %s574
      %p578 = scmp.eq.s32.totalorder %s36, 0
      %p579 = por %p577, %p578
      %p580 = scmp.ne.s32.totalorder %s572, %s574
      %p581 = scmp.eq.s32.totalorder %s41, 2
      %p582 = por %p580, %p581
      %p583 = scmp.ne.s32.totalorder %s574, %s575
      %p584 = scmp.eq.s32.totalorder %s41, 0
      %p585 = por %p583, %p584
      %p586 = scmp.ne.s32.totalorder %s574, %s575
      %p587 = scmp.eq.s32.totalorder %s42, 2
      %p588 = por %p586, %p587
      %p590 = scmp.ne.s32.totalorder %s575, %s589
      %p591 = scmp.eq.s32.totalorder %s42, 0
      %p592 = por %p590, %p591
      %s594 = sadd.s32 %s593, 1
      %p597 = scmp.eq.s32.totalorder %s36, 2
      %p598 = scmp.ne.s32.totalorder %s593, %s595
      %p599 = scmp.eq.s32.totalorder %s36, 0
      %p600 = por %p598, %p599
      %p601 = scmp.ne.s32.totalorder %s593, %s595
      %p602 = scmp.eq.s32.totalorder %s41, 2
      %p603 = por %p601, %p602
      %p604 = scmp.ne.s32.totalorder %s595, %s596
      %p605 = scmp.eq.s32.totalorder %s41, 0
      %p606 = por %p604, %p605
      %p607 = scmp.ne.s32.totalorder %s595, %s596
      %p608 = scmp.eq.s32.totalorder %s42, 2
      %p609 = por %p607, %p608
      %p611 = scmp.ne.s32.totalorder %s596, %s610
      %p612 = scmp.eq.s32.totalorder %s42, 0
      %p613 = por %p611, %p612
      %s615 = sadd.s32 %s614, 1
      %p618 = scmp.eq.s32.totalorder %s36, 2
      %p619 = scmp.ne.s32.totalorder %s614, %s616
      %p620 = scmp.eq.s32.totalorder %s36, 0
      %p621 = por %p619, %p620
      %p622 = scmp.ne.s32.totalorder %s614, %s616
      %p623 = scmp.eq.s32.totalorder %s41, 2
      %p624 = por %p622, %p623
      %p625 = scmp.ne.s32.totalorder %s616, %s617
      %p626 = scmp.eq.s32.totalorder %s41, 0
      %p627 = por %p625, %p626
      %p628 = scmp.ne.s32.totalorder %s616, %s617
      %p629 = scmp.eq.s32.totalorder %s42, 2
      %p630 = por %p628, %p629
      %p632 = scmp.ne.s32.totalorder %s617, %s631
      %p633 = scmp.eq.s32.totalorder %s42, 0
      %p634 = por %p632, %p633
      %s636 = sadd.s32 %s635, 1
      %p639 = scmp.eq.s32.totalorder %s36, 2
      %p640 = scmp.ne.s32.totalorder %s635, %s637
      %p641 = scmp.eq.s32.totalorder %s36, 0
      %p642 = por %p640, %p641
      %p643 = scmp.ne.s32.totalorder %s635, %s637
      %p644 = scmp.eq.s32.totalorder %s41, 2
      %p645 = por %p643, %p644
      %p646 = scmp.ne.s32.totalorder %s637, %s638
      %p647 = scmp.eq.s32.totalorder %s41, 0
      %p648 = por %p646, %p647
      %p649 = scmp.ne.s32.totalorder %s637, %s638
      %p650 = scmp.eq.s32.totalorder %s42, 2
      %p651 = por %p649, %p650
      %p653 = scmp.ne.s32.totalorder %s638, %s652
      %p654 = scmp.eq.s32.totalorder %s42, 0
      %p655 = por %p653, %p654
      %p656 = scmp.le.s32.totalorder 1, %s36
      %p657 = scmp.lt.s32.totalorder %s36, 4
      %p658 = pnand %p656, %p657
      %p659 = pneg %p658
      // Predicated region
      $region9: #{tpu_custom_call.1} parent=5 // pred_check
        _
      $region10: #{tpu_custom_call.1} parent=5 // pred_check_branch
        %661 = sbr.rel (%p658) target = $region12
      $region11: #{tpu_custom_call.1} parent=5 // pred_region
        %s662 = ssub.s32 %s36, 1
        // Predicated region
        $region13: #{tpu_custom_call.1} parent=11 // pred_check
          %p663 = pneg %p57
        $region14: #{tpu_custom_call.1} parent=11 // pred_check_branch
          %665 = sbr.rel (%p663) target = $region16
        $region15: #{tpu_custom_call.1} parent=11 // pred_region
          %667 = vsyncadd [#allocation6], 0
          %s668 = sshll.u32 %s0, 4
          %s669 = int_to_ptr.hbm [resolvable:$true] %s668
          %s670 = sshll.u32 [#allocation5], 4
          %s671 = int_to_ptr.vmem [resolvable:$true] %s670
          %676 = dma.hbm_to_vmem [thread:$0]  %s669, 1024, %s671, [#allocation6], 256, 256, 16
        $region16: #{tpu_custom_call.1} parent=11 // pred_fallthru
          _
        // Predicated region
        $region17: #{tpu_custom_call.1} parent=11 // pred_check
          %p677 = pneg %p78
        $region18: #{tpu_custom_call.1} parent=11 // pred_check_branch
          %679 = sbr.rel (%p677) target = $region20
        $region19: #{tpu_custom_call.1} parent=11 // pred_region
          %681 = vsyncadd [#allocation9], 0
          %s683 = sshll.u32 %s1, 4
          %s684 = int_to_ptr.hbm [resolvable:$true] %s683
          %s685 = sshll.u32 [#allocation8], 4
          %s686 = int_to_ptr.vmem [resolvable:$true] %s685
          %688 = dma.hbm_to_vmem [thread:$0]  %s684, 32, %s686, [#allocation9]
        $region20: #{tpu_custom_call.1} parent=11 // pred_fallthru
          _
        // Predicated region
        $region21: #{tpu_custom_call.1} parent=11 // pred_check
          %p689 = pneg %p459
        $region22: #{tpu_custom_call.1} parent=11 // pred_check_branch
          %691 = sbr.rel (%p689) target = $region24
        $region23: #{tpu_custom_call.1} parent=11 // pred_region
          %693 = vsyncadd [#allocation9], 0
          %s695 = sshll.u32 %s14, 4
          %s696 = int_to_ptr.hbm [resolvable:$true] %s695
          %s697 = sshll.u32 [#allocation20], 4
          %s698 = int_to_ptr.vmem [resolvable:$true] %s697
          %700 = dma.hbm_to_vmem [thread:$0]  %s696, 32, %s698, [#allocation9]
        $region24: #{tpu_custom_call.1} parent=11 // pred_fallthru
          _
        // Predicated region
        $region25: #{tpu_custom_call.1} parent=11 // pred_check
          %p701 = pneg %p480
        $region26: #{tpu_custom_call.1} parent=11 // pred_check_branch
          %703 = sbr.rel (%p701) target = $region28
        $region27: #{tpu_custom_call.1} parent=11 // pred_region
          _
        $region28: #{tpu_custom_call.1} parent=11 // pred_fallthru
          _
        // Predicated region
        $region29: #{tpu_custom_call.1} parent=11 // pred_check
          %p704 = pneg %p501
        $region30: #{tpu_custom_call.1} parent=11 // pred_check_branch
          %706 = sbr.rel (%p704) target = $region32
        $region31: #{tpu_custom_call.1} parent=11 // pred_region
          %708 = vsyncadd [#allocation22], 0
          %s709 = sshll.u32 %s16, 4
          %s710 = int_to_ptr.hbm [resolvable:$true] %s709
          %s711 = sshll.u32 [#allocation21], 4
          %s712 = int_to_ptr.vmem [resolvable:$true] %s711
          %717 = dma.hbm_to_vmem [thread:$0]  %s710, 4096, %s712, [#allocation22], 128, 128, 8
        $region32: #{tpu_custom_call.1} parent=11 // pred_fallthru
          _
        // Predicated region
        $region33: #{tpu_custom_call.1} parent=11 // pred_check
          %p718 = pneg %p522
        $region34: #{tpu_custom_call.1} parent=11 // pred_check_branch
          %720 = sbr.rel (%p718) target = $region36
        $region35: #{tpu_custom_call.1} parent=11 // pred_region
          %722 = vsyncadd [#allocation22], 0
          %s724 = sshll.u32 %s17, 4
          %s725 = int_to_ptr.hbm [resolvable:$true] %s724
          %s726 = sshll.u32 [#allocation23], 4
          %s727 = int_to_ptr.vmem [resolvable:$true] %s726
          %729 = dma.hbm_to_vmem [thread:$0]  %s725, 16, %s727, [#allocation22]
        $region36: #{tpu_custom_call.1} parent=11 // pred_fallthru
          _
        // Predicated region
        $region37: #{tpu_custom_call.1} parent=11 // pred_check
          %p730 = pneg %p543
        $region38: #{tpu_custom_call.1} parent=11 // pred_check_branch
          %732 = sbr.rel (%p730) target = $region40
        $region39: #{tpu_custom_call.1} parent=11 // pred_region
          %734 = vsyncadd [#allocation25], 0
          %s735 = sshll.u32 %s18, 4
          %s736 = int_to_ptr.hbm [resolvable:$true] %s735
          %s737 = sshll.u32 [#allocation24], 4
          %s738 = int_to_ptr.vmem [resolvable:$true] %s737
          %743 = dma.hbm_to_vmem [thread:$0]  %s736, 4096, %s738, [#allocation25], 256, 256, 16
        $region40: #{tpu_custom_call.1} parent=11 // pred_fallthru
          _
        // Predicated region
        $region41: #{tpu_custom_call.1} parent=11 // pred_check
          %p744 = pneg %p564
        $region42: #{tpu_custom_call.1} parent=11 // pred_check_branch
          %746 = sbr.rel (%p744) target = $region44
        $region43: #{tpu_custom_call.1} parent=11 // pred_region
          _
        $region44: #{tpu_custom_call.1} parent=11 // pred_fallthru
          _
        // Predicated region
        $region45: #{tpu_custom_call.1} parent=11 // pred_check
          %p747 = pneg %p585
        $region46: #{tpu_custom_call.1} parent=11 // pred_check_branch
          %749 = sbr.rel (%p747) target = $region48
        $region47: #{tpu_custom_call.1} parent=11 // pred_region
          %751 = vsyncadd [#allocation25], 0
          %s752 = sshll.u32 %s20, 4
          %s753 = int_to_ptr.hbm [resolvable:$true] %s752
          %s754 = sshll.u32 [#allocation26], 4
          %s755 = int_to_ptr.vmem [resolvable:$true] %s754
          %760 = dma.hbm_to_vmem [thread:$0]  %s753, 2048, %s755, [#allocation25], 128, 128, 8
        $region48: #{tpu_custom_call.1} parent=11 // pred_fallthru
          _
      $region12: #{tpu_custom_call.1} parent=5 // pred_fallthru
        _
      %p761 = scmp.lt.s32.totalorder %s36, 3
      // Predicated region
      $region49: #{tpu_custom_call.1} parent=5 // pred_check
        %p762 = pneg %p761
      $region50: #{tpu_custom_call.1} parent=5 // pred_check_branch
        %764 = sbr.rel (%p762) target = $region52
      $region51: #{tpu_custom_call.1} parent=5 // pred_region
        // Predicated region
        $region53: #{tpu_custom_call.1} parent=51 // pred_check
          %p765 = pneg %p102
        $region54: #{tpu_custom_call.1} parent=51 // pred_check_branch
          %767 = sbr.rel (%p765) target = $region56
        $region55: #{tpu_custom_call.1} parent=51 // pred_region
          %s768 = sand.u32 %s36, 1
          %s769 = scalar_lea.sflag [#allocation6], %s768
          %s770 = sand.u32 %s92, 1
          %s771 = smul.addr %s770, 768
          %s772 = scalar_lea.vmem [#allocation10], %s771
          %p773 = scmp.lt.s32.totalorder %s36, 1
          %s774 = scalar_select %p773, %s36, 1
          %776 = vsyncadd %s769, 0
          %s777 = smul.addr %s774, 192
          %s778 = smul.addr %s777, 4
          %s779 = scalar_lea.hbm %s2, %s778
          %s780 = sshll.u32 %s779, 4
          %s781 = int_to_ptr.hbm [resolvable:$true] %s780
          %s782 = sshll.u32 %s772, 4
          %s783 = int_to_ptr.vmem [resolvable:$true] %s782
          %788 = dma.hbm_to_vmem [thread:$0]  %s781, 12288, %s783, %s769, 384, 384, 24
        $region56: #{tpu_custom_call.1} parent=51 // pred_fallthru
          _
        // Predicated region
        $region57: #{tpu_custom_call.1} parent=51 // pred_check
          %p789 = pneg %p132
        $region58: #{tpu_custom_call.1} parent=51 // pred_check_branch
          %791 = sbr.rel (%p789) target = $region60
        $region59: #{tpu_custom_call.1} parent=51 // pred_region
          %s792 = sand.u32 %s36, 1
          %s793 = scalar_lea.sflag [#allocation6], %s792
          %s794 = sand.u32 %s122, 1
          %s795 = smul.addr %s794, 6
          %s796 = scalar_lea.vmem [#allocation11], %s795
          %p797 = scmp.lt.s32.totalorder %s36, 1
          %s798 = scalar_select %p797, %s36, 1
          %800 = vsyncadd %s793, 0
          %s801 = smul.addr %s798, 6
          %s802 = scalar_lea.hbm %s3, %s801
          %s804 = sshll.u32 %s802, 4
          %s805 = int_to_ptr.hbm [resolvable:$true] %s804
          %s806 = sshll.u32 %s796, 4
          %s807 = int_to_ptr.vmem [resolvable:$true] %s806
          %809 = dma.hbm_to_vmem [thread:$0]  %s805, 96, %s807, %s793
        $region60: #{tpu_custom_call.1} parent=51 // pred_fallthru
          _
        // Predicated region
        $region61: #{tpu_custom_call.1} parent=51 // pred_check
          %p810 = pneg %p162
        $region62: #{tpu_custom_call.1} parent=51 // pred_check_branch
          %812 = sbr.rel (%p810) target = $region64
        $region63: #{tpu_custom_call.1} parent=51 // pred_region
          %s813 = sand.u32 %s36, 1
          %s814 = scalar_lea.sflag [#allocation6], %s813
          %s815 = sand.u32 %s152, 1
          %s816 = smul.addr %s815, 256
          %s817 = scalar_lea.vmem [#allocation12], %s816
          %p818 = scmp.lt.s32.totalorder %s36, 1
          %s819 = scalar_select %p818, %s36, 1
          %821 = vsyncadd %s814, 0
          %s822 = smul.addr %s819, 64
          %s823 = smul.addr %s822, 4
          %s824 = scalar_lea.hbm %s4, %s823
          %s825 = sshll.u32 %s824, 4
          %s826 = int_to_ptr.hbm [resolvable:$true] %s825
          %s827 = sshll.u32 %s817, 4
          %s828 = int_to_ptr.vmem [resolvable:$true] %s827
          %833 = dma.hbm_to_vmem [thread:$0]  %s826, 4096, %s828, %s814, 128, 128, 8
        $region64: #{tpu_custom_call.1} parent=51 // pred_fallthru
          _
        // Predicated region
        $region65: #{tpu_custom_call.1} parent=51 // pred_check
          %p834 = pneg %p192
        $region66: #{tpu_custom_call.1} parent=51 // pred_check_branch
          %836 = sbr.rel (%p834) target = $region68
        $region67: #{tpu_custom_call.1} parent=51 // pred_region
          %s837 = sand.u32 %s36, 1
          %s838 = scalar_lea.sflag [#allocation6], %s837
          %s839 = sand.u32 %s182, 1
          %s840 = smul.addr %s839, 2
          %s841 = scalar_lea.vmem [#allocation13], %s840
          %p842 = scmp.lt.s32.totalorder %s36, 1
          %s843 = scalar_select %p842, %s36, 1
          %845 = vsyncadd %s838, 0
          %s846 = smul.addr %s843, 2
          %s847 = scalar_lea.hbm %s5, %s846
          %s849 = sshll.u32 %s847, 4
          %s850 = int_to_ptr.hbm [resolvable:$true] %s849
          %s851 = sshll.u32 %s841, 4
          %s852 = int_to_ptr.vmem [resolvable:$true] %s851
          %854 = dma.hbm_to_vmem [thread:$0]  %s850, 32, %s852, %s838
        $region68: #{tpu_custom_call.1} parent=51 // pred_fallthru
          _
        // Predicated region
        $region69: #{tpu_custom_call.1} parent=51 // pred_check
          %p855 = pneg %p222
        $region70: #{tpu_custom_call.1} parent=51 // pred_check_branch
          %857 = sbr.rel (%p855) target = $region72
        $region71: #{tpu_custom_call.1} parent=51 // pred_region
          %s858 = sand.u32 %s36, 1
          %s859 = scalar_lea.sflag [#allocation6], %s858
          %s860 = sand.u32 %s212, 1
          %s861 = smul.addr %s860, 2
          %s862 = scalar_lea.vmem [#allocation14], %s861
          %p863 = scmp.lt.s32.totalorder %s36, 1
          %s864 = scalar_select %p863, %s36, 1
          %866 = vsyncadd %s859, 0
          %s867 = smul.addr %s864, 2
          %s868 = scalar_lea.hbm %s6, %s867
          %s870 = sshll.u32 %s868, 4
          %s871 = int_to_ptr.hbm [resolvable:$true] %s870
          %s872 = sshll.u32 %s862, 4
          %s873 = int_to_ptr.vmem [resolvable:$true] %s872
          %875 = dma.hbm_to_vmem [thread:$0]  %s871, 32, %s873, %s859
        $region72: #{tpu_custom_call.1} parent=51 // pred_fallthru
          _
        // Predicated region
        $region73: #{tpu_custom_call.1} parent=51 // pred_check
          %p876 = pneg %p252
        $region74: #{tpu_custom_call.1} parent=51 // pred_check_branch
          %878 = sbr.rel (%p876) target = $region76
        $region75: #{tpu_custom_call.1} parent=51 // pred_region
          %s879 = sand.u32 %s36, 1
          %s880 = scalar_lea.sflag [#allocation6], %s879
          %s881 = sand.u32 %s242, 1
          %s882 = smul.addr %s881, 2
          %s883 = scalar_lea.vmem [#allocation15], %s882
          %p884 = scmp.lt.s32.totalorder %s36, 1
          %s885 = scalar_select %p884, %s36, 1
          %887 = vsyncadd %s880, 0
          %s888 = smul.addr %s885, 2
          %s889 = scalar_lea.hbm %s7, %s888
          %s891 = sshll.u32 %s889, 4
          %s892 = int_to_ptr.hbm [resolvable:$true] %s891
          %s893 = sshll.u32 %s883, 4
          %s894 = int_to_ptr.vmem [resolvable:$true] %s893
          %896 = dma.hbm_to_vmem [thread:$0]  %s892, 32, %s894, %s880
        $region76: #{tpu_custom_call.1} parent=51 // pred_fallthru
          _
        // Predicated region
        $region77: #{tpu_custom_call.1} parent=51 // pred_check
          %p897 = pneg %p282
        $region78: #{tpu_custom_call.1} parent=51 // pred_check_branch
          %899 = sbr.rel (%p897) target = $region80
        $region79: #{tpu_custom_call.1} parent=51 // pred_region
          %s900 = sand.u32 %s36, 1
          %s901 = scalar_lea.sflag [#allocation6], %s900
          %s902 = sand.u32 %s272, 1
          %s903 = smul.addr %s902, 512
          %s904 = scalar_lea.vmem [#allocation16], %s903
          %p905 = scmp.lt.s32.totalorder %s36, 1
          %s906 = scalar_select %p905, %s36, 1
          %908 = vsyncadd %s901, 0
          %s909 = smul.addr %s906, 128
          %s910 = smul.addr %s909, 4
          %s911 = scalar_lea.hbm %s8, %s910
          %s912 = sshll.u32 %s911, 4
          %s913 = int_to_ptr.hbm [resolvable:$true] %s912
          %s914 = sshll.u32 %s904, 4
          %s915 = int_to_ptr.vmem [resolvable:$true] %s914
          %920 = dma.hbm_to_vmem [thread:$0]  %s913, 8192, %s915, %s901, 256, 256, 16
        $region80: #{tpu_custom_call.1} parent=51 // pred_fallthru
          _
        // Predicated region
        $region81: #{tpu_custom_call.1} parent=51 // pred_check
          %p921 = pneg %p312
        $region82: #{tpu_custom_call.1} parent=51 // pred_check_branch
          %923 = sbr.rel (%p921) target = $region84
        $region83: #{tpu_custom_call.1} parent=51 // pred_region
          %p924 = scmp.lt.s32.totalorder %s36, 1
          %s925 = scalar_select %p924, %s36, 1
          %p926 = scmp.lt.s32.totalorder %s925, 1
          %s927 = scalar_select %p926, %s925, 1
          %s928 = smul.addr %s927, 4
          %s929 = scalar_lea.vmem %s9, %s928
          %p930 = scmp.lt.s32.totalorder %s36, 1
          %s931 = scalar_select %p930, %s36, 1
        $region84: #{tpu_custom_call.1} parent=51 // pred_fallthru
          _
        // Predicated region
        $region85: #{tpu_custom_call.1} parent=51 // pred_check
          %p932 = pneg %p342
        $region86: #{tpu_custom_call.1} parent=51 // pred_check_branch
          %934 = sbr.rel (%p932) target = $region88
        $region87: #{tpu_custom_call.1} parent=51 // pred_region
          %s935 = sand.u32 %s36, 1
          %s936 = scalar_lea.sflag [#allocation6], %s935
          %s937 = sand.u32 %s332, 1
          %s938 = smul.addr %s937, 512
          %s939 = scalar_lea.vmem [#allocation17], %s938
          %p940 = scmp.lt.s32.totalorder %s36, 1
          %s941 = scalar_select %p940, %s36, 1
          %943 = vsyncadd %s936, 0
          %s944 = smul.addr %s941, 128
          %s945 = smul.addr %s944, 4
          %s946 = scalar_lea.hbm %s10, %s945
          %s947 = sshll.u32 %s946, 4
          %s948 = int_to_ptr.hbm [resolvable:$true] %s947
          %s949 = sshll.u32 %s939, 4
          %s950 = int_to_ptr.vmem [resolvable:$true] %s949
          %955 = dma.hbm_to_vmem [thread:$0]  %s948, 8192, %s950, %s936, 128, 128, 8
        $region88: #{tpu_custom_call.1} parent=51 // pred_fallthru
          _
        // Predicated region
        $region89: #{tpu_custom_call.1} parent=51 // pred_check
          %p956 = pneg %p372
        $region90: #{tpu_custom_call.1} parent=51 // pred_check_branch
          %958 = sbr.rel (%p956) target = $region92
        $region91: #{tpu_custom_call.1} parent=51 // pred_region
          %s959 = sand.u32 %s36, 1
          %s960 = scalar_lea.sflag [#allocation6], %s959
          %s961 = sand.u32 %s362, 1
          %s962 = smul.addr %s961, 2
          %s963 = scalar_lea.vmem [#allocation18], %s962
          %p964 = scmp.lt.s32.totalorder %s36, 1
          %s965 = scalar_select %p964, %s36, 1
          %967 = vsyncadd %s960, 0
          %s968 = smul.addr %s965, 2
          %s969 = scalar_lea.hbm %s11, %s968
          %s971 = sshll.u32 %s969, 4
          %s972 = int_to_ptr.hbm [resolvable:$true] %s971
          %s973 = sshll.u32 %s963, 4
          %s974 = int_to_ptr.vmem [resolvable:$true] %s973
          %976 = dma.hbm_to_vmem [thread:$0]  %s972, 32, %s974, %s960
        $region92: #{tpu_custom_call.1} parent=51 // pred_fallthru
          _
        // Predicated region
        $region93: #{tpu_custom_call.1} parent=51 // pred_check
          %p977 = pneg %p402
        $region94: #{tpu_custom_call.1} parent=51 // pred_check_branch
          %979 = sbr.rel (%p977) target = $region96
        $region95: #{tpu_custom_call.1} parent=51 // pred_region
          %s980 = sand.u32 %s36, 1
          %s981 = scalar_lea.sflag [#allocation6], %s980
          %s982 = sand.u32 %s392, 1
          %s983 = smul.addr %s982, 2
          %s984 = scalar_lea.vmem [#allocation19], %s983
          %p985 = scmp.lt.s32.totalorder %s36, 1
          %s986 = scalar_select %p985, %s36, 1
          %988 = vsyncadd %s981, 0
          %s989 = smul.addr %s986, 2
          %s990 = scalar_lea.hbm %s12, %s989
          %s992 = sshll.u32 %s990, 4
          %s993 = int_to_ptr.hbm [resolvable:$true] %s992
          %s994 = sshll.u32 %s984, 4
          %s995 = int_to_ptr.vmem [resolvable:$true] %s994
          %997 = dma.hbm_to_vmem [thread:$0]  %s993, 32, %s995, %s981
        $region96: #{tpu_custom_call.1} parent=51 // pred_fallthru
          _
        // Predicated region
        $region97: #{tpu_custom_call.1} parent=51 // pred_check
          %p998 = pneg %p432
        $region98: #{tpu_custom_call.1} parent=51 // pred_check_branch
          %1000 = sbr.rel (%p998) target = $region100
        $region99: #{tpu_custom_call.1} parent=51 // pred_region
          %p1001 = scmp.lt.s32.totalorder %s36, 1
          %s1002 = scalar_select %p1001, %s36, 1
          %p1003 = scmp.lt.s32.totalorder %s1002, 1
          %s1004 = scalar_select %p1003, %s1002, 1
          %s1005 = smul.addr %s1004, 2
          %s1006 = scalar_lea.vmem %s13, %s1005
          %p1007 = scmp.lt.s32.totalorder %s36, 1
          %s1008 = scalar_select %p1007, %s36, 1
        $region100: #{tpu_custom_call.1} parent=51 // pred_fallthru
          _
      $region52: #{tpu_custom_call.1} parent=5 // pred_fallthru
        _
      %p1009 = scmp.le.s32.totalorder 1, %s36
      %p1010 = scmp.lt.s32.totalorder %s36, 4
      %p1011 = pnand %p1009, %p1010
      %p1012 = pneg %p1011
      // Predicated region
      $region101: #{tpu_custom_call.1} parent=5 // pred_check
        _
      $region102: #{tpu_custom_call.1} parent=5 // pred_check_branch
        %1014 = sbr.rel (%p1011) target = $region104
      $region103: #{tpu_custom_call.1} parent=5 // pred_region
        %s1015 = ssub.s32 %s36, 1
        // Predicated region
        $region105: #{tpu_custom_call.1} parent=103 // pred_check
          %p1016 = pneg %p57
        $region106: #{tpu_custom_call.1} parent=103 // pred_check_branch
          %1018 = sbr.rel (%p1016) target = $region108
        $region107: #{tpu_custom_call.1} parent=103 // pred_region
          %1020 = dma.done [#allocation6], 1024
        $region108: #{tpu_custom_call.1} parent=103 // pred_fallthru
          _
        // Predicated region
        $region109: #{tpu_custom_call.1} parent=103 // pred_check
          %p1021 = pneg %p78
        $region110: #{tpu_custom_call.1} parent=103 // pred_check_branch
          %1023 = sbr.rel (%p1021) target = $region112
        $region111: #{tpu_custom_call.1} parent=103 // pred_region
          %1025 = dma.done [#allocation9], 32
        $region112: #{tpu_custom_call.1} parent=103 // pred_fallthru
          _
        %s1026 = sand.u32 %s41, 1
        %s1027 = scalar_lea.sflag [#allocation6], %s1026
        %s1028 = sand.u32 %s95, 1
        %s1029 = smul.addr %s1028, 768
        %s1030 = scalar_lea.vmem [#allocation10], %s1029
        // Predicated region
        $region113: #{tpu_custom_call.1} parent=103 // pred_check
          %p1031 = pneg %p108
        $region114: #{tpu_custom_call.1} parent=103 // pred_check_branch
          %1033 = sbr.rel (%p1031) target = $region116
        $region115: #{tpu_custom_call.1} parent=103 // pred_region
          %1035 = dma.done %s1027, 12288
        $region116: #{tpu_custom_call.1} parent=103 // pred_fallthru
          _
        %s1036 = sand.u32 %s41, 1
        %s1037 = scalar_lea.sflag [#allocation6], %s1036
        %s1038 = sand.u32 %s125, 1
        %s1039 = smul.addr %s1038, 6
        %s1040 = scalar_lea.vmem [#allocation11], %s1039
        // Predicated region
        $region117: #{tpu_custom_call.1} parent=103 // pred_check
          %p1041 = pneg %p138
        $region118: #{tpu_custom_call.1} parent=103 // pred_check_branch
          %1043 = sbr.rel (%p1041) target = $region120
        $region119: #{tpu_custom_call.1} parent=103 // pred_region
          %1045 = dma.done %s1037, 96
        $region120: #{tpu_custom_call.1} parent=103 // pred_fallthru
          _
        %s1046 = sand.u32 %s41, 1
        %s1047 = scalar_lea.sflag [#allocation6], %s1046
        %s1048 = sand.u32 %s155, 1
        %s1049 = smul.addr %s1048, 256
        %s1050 = scalar_lea.vmem [#allocation12], %s1049
        // Predicated region
        $region121: #{tpu_custom_call.1} parent=103 // pred_check
          %p1051 = pneg %p168
        $region122: #{tpu_custom_call.1} parent=103 // pred_check_branch
          %1053 = sbr.rel (%p1051) target = $region124
        $region123: #{tpu_custom_call.1} parent=103 // pred_region
          %1055 = dma.done %s1047, 4096
        $region124: #{tpu_custom_call.1} parent=103 // pred_fallthru
          _
        %s1056 = sand.u32 %s41, 1
        %s1057 = scalar_lea.sflag [#allocation6], %s1056
        %s1058 = sand.u32 %s185, 1
        %s1059 = smul.addr %s1058, 2
        %s1060 = scalar_lea.vmem [#allocation13], %s1059
        // Predicated region
        $region125: #{tpu_custom_call.1} parent=103 // pred_check
          %p1061 = pneg %p198
        $region126: #{tpu_custom_call.1} parent=103 // pred_check_branch
          %1063 = sbr.rel (%p1061) target = $region128
        $region127: #{tpu_custom_call.1} parent=103 // pred_region
          %1065 = dma.done %s1057, 32
        $region128: #{tpu_custom_call.1} parent=103 // pred_fallthru
          _
        %s1066 = sand.u32 %s41, 1
        %s1067 = scalar_lea.sflag [#allocation6], %s1066
        %s1068 = sand.u32 %s215, 1
        %s1069 = smul.addr %s1068, 2
        %s1070 = scalar_lea.vmem [#allocation14], %s1069
        // Predicated region
        $region129: #{tpu_custom_call.1} parent=103 // pred_check
          %p1071 = pneg %p228
        $region130: #{tpu_custom_call.1} parent=103 // pred_check_branch
          %1073 = sbr.rel (%p1071) target = $region132
        $region131: #{tpu_custom_call.1} parent=103 // pred_region
          %1075 = dma.done %s1067, 32
        $region132: #{tpu_custom_call.1} parent=103 // pred_fallthru
          _
        %s1076 = sand.u32 %s41, 1
        %s1077 = scalar_lea.sflag [#allocation6], %s1076
        %s1078 = sand.u32 %s245, 1
        %s1079 = smul.addr %s1078, 2
        %s1080 = scalar_lea.vmem [#allocation15], %s1079
        // Predicated region
        $region133: #{tpu_custom_call.1} parent=103 // pred_check
          %p1081 = pneg %p258
        $region134: #{tpu_custom_call.1} parent=103 // pred_check_branch
          %1083 = sbr.rel (%p1081) target = $region136
        $region135: #{tpu_custom_call.1} parent=103 // pred_region
          %1085 = dma.done %s1077, 32
        $region136: #{tpu_custom_call.1} parent=103 // pred_fallthru
          _
        %s1086 = sand.u32 %s41, 1
        %s1087 = scalar_lea.sflag [#allocation6], %s1086
        %s1088 = sand.u32 %s275, 1
        %s1089 = smul.addr %s1088, 512
        %s1090 = scalar_lea.vmem [#allocation16], %s1089
        // Predicated region
        $region137: #{tpu_custom_call.1} parent=103 // pred_check
          %p1091 = pneg %p288
        $region138: #{tpu_custom_call.1} parent=103 // pred_check_branch
          %1093 = sbr.rel (%p1091) target = $region140
        $region139: #{tpu_custom_call.1} parent=103 // pred_region
          %1095 = dma.done %s1087, 8192
        $region140: #{tpu_custom_call.1} parent=103 // pred_fallthru
          _
        %s1096 = sand.u32 %s41, 1
        %s1097 = scalar_lea.sflag [#allocation6], %s1096
        %s1098 = sand.u32 %s335, 1
        %s1099 = smul.addr %s1098, 512
        %s1100 = scalar_lea.vmem [#allocation17], %s1099
        // Predicated region
        $region141: #{tpu_custom_call.1} parent=103 // pred_check
          %p1101 = pneg %p348
        $region142: #{tpu_custom_call.1} parent=103 // pred_check_branch
          %1103 = sbr.rel (%p1101) target = $region144
        $region143: #{tpu_custom_call.1} parent=103 // pred_region
          %1105 = dma.done %s1097, 8192
        $region144: #{tpu_custom_call.1} parent=103 // pred_fallthru
          _
        %s1106 = sand.u32 %s41, 1
        %s1107 = scalar_lea.sflag [#allocation6], %s1106
        %s1108 = sand.u32 %s365, 1
        %s1109 = smul.addr %s1108, 2
        %s1110 = scalar_lea.vmem [#allocation18], %s1109
        // Predicated region
        $region145: #{tpu_custom_call.1} parent=103 // pred_check
          %p1111 = pneg %p378
        $region146: #{tpu_custom_call.1} parent=103 // pred_check_branch
          %1113 = sbr.rel (%p1111) target = $region148
        $region147: #{tpu_custom_call.1} parent=103 // pred_region
          %1115 = dma.done %s1107, 32
        $region148: #{tpu_custom_call.1} parent=103 // pred_fallthru
          _
        %s1116 = sand.u32 %s41, 1
        %s1117 = scalar_lea.sflag [#allocation6], %s1116
        %s1118 = sand.u32 %s395, 1
        %s1119 = smul.addr %s1118, 2
        %s1120 = scalar_lea.vmem [#allocation19], %s1119
        // Predicated region
        $region149: #{tpu_custom_call.1} parent=103 // pred_check
          %p1121 = pneg %p408
        $region150: #{tpu_custom_call.1} parent=103 // pred_check_branch
          %1123 = sbr.rel (%p1121) target = $region152
        $region151: #{tpu_custom_call.1} parent=103 // pred_region
          %1125 = dma.done %s1117, 32
        $region152: #{tpu_custom_call.1} parent=103 // pred_fallthru
          _
        // Predicated region
        $region153: #{tpu_custom_call.1} parent=103 // pred_check
          %p1126 = pneg %p459
        $region154: #{tpu_custom_call.1} parent=103 // pred_check_branch
          %1128 = sbr.rel (%p1126) target = $region156
        $region155: #{tpu_custom_call.1} parent=103 // pred_region
          %1130 = dma.done [#allocation9], 32
        $region156: #{tpu_custom_call.1} parent=103 // pred_fallthru
          _
        // Predicated region
        $region157: #{tpu_custom_call.1} parent=103 // pred_check
          %p1131 = pneg %p501
        $region158: #{tpu_custom_call.1} parent=103 // pred_check_branch
          %1133 = sbr.rel (%p1131) target = $region160
        $region159: #{tpu_custom_call.1} parent=103 // pred_region
          %1135 = dma.done [#allocation22], 4096
        $region160: #{tpu_custom_call.1} parent=103 // pred_fallthru
          _
        // Predicated region
        $region161: #{tpu_custom_call.1} parent=103 // pred_check
          %p1136 = pneg %p522
        $region162: #{tpu_custom_call.1} parent=103 // pred_check_branch
          %1138 = sbr.rel (%p1136) target = $region164
        $region163: #{tpu_custom_call.1} parent=103 // pred_region
          %1140 = dma.done [#allocation22], 16
        $region164: #{tpu_custom_call.1} parent=103 // pred_fallthru
          _
        // Predicated region
        $region165: #{tpu_custom_call.1} parent=103 // pred_check
          %p1141 = pneg %p543
        $region166: #{tpu_custom_call.1} parent=103 // pred_check_branch
          %1143 = sbr.rel (%p1141) target = $region168
        $region167: #{tpu_custom_call.1} parent=103 // pred_region
          %1145 = dma.done [#allocation25], 4096
        $region168: #{tpu_custom_call.1} parent=103 // pred_fallthru
          _
        // Predicated region
        $region169: #{tpu_custom_call.1} parent=103 // pred_check
          %p1146 = pneg %p585
        $region170: #{tpu_custom_call.1} parent=103 // pred_check_branch
          %1148 = sbr.rel (%p1146) target = $region172
        $region171: #{tpu_custom_call.1} parent=103 // pred_region
          %1150 = dma.done [#allocation25], 2048
        $region172: #{tpu_custom_call.1} parent=103 // pred_fallthru
          _
        %p1151 = pneg %p57
        %p1152 = pneg %p54
        %p1153 = pneg %p78
        %p1154 = pneg %p75
        %s1155 = sand.u32 %s41, 1
        %s1156 = scalar_lea.sflag [#allocation6], %s1155
        %s1157 = sand.u32 %s95, 1
        %s1158 = smul.addr %s1157, 768
        %s1159 = scalar_lea.vmem [#allocation10], %s1158
        %p1160 = pneg %p108
        %p1161 = pneg %p105
        %s1162 = sand.u32 %s41, 1
        %s1163 = scalar_lea.sflag [#allocation6], %s1162
        %s1164 = sand.u32 %s125, 1
        %s1165 = smul.addr %s1164, 6
        %s1166 = scalar_lea.vmem [#allocation11], %s1165
        %p1167 = pneg %p138
        %p1168 = pneg %p135
        %s1169 = sand.u32 %s41, 1
        %s1170 = scalar_lea.sflag [#allocation6], %s1169
        %s1171 = sand.u32 %s155, 1
        %s1172 = smul.addr %s1171, 256
        %s1173 = scalar_lea.vmem [#allocation12], %s1172
        %p1174 = pneg %p168
        %p1175 = pneg %p165
        %s1176 = sand.u32 %s41, 1
        %s1177 = scalar_lea.sflag [#allocation6], %s1176
        %s1178 = sand.u32 %s185, 1
        %s1179 = smul.addr %s1178, 2
        %s1180 = scalar_lea.vmem [#allocation13], %s1179
        %p1181 = pneg %p198
        %p1182 = pneg %p195
        %s1183 = sand.u32 %s41, 1
        %s1184 = scalar_lea.sflag [#allocation6], %s1183
        %s1185 = sand.u32 %s215, 1
        %s1186 = smul.addr %s1185, 2
        %s1187 = scalar_lea.vmem [#allocation14], %s1186
        %p1188 = pneg %p228
        %p1189 = pneg %p225
        %s1190 = sand.u32 %s41, 1
        %s1191 = scalar_lea.sflag [#allocation6], %s1190
        %s1192 = sand.u32 %s245, 1
        %s1193 = smul.addr %s1192, 2
        %s1194 = scalar_lea.vmem [#allocation15], %s1193
        %p1195 = pneg %p258
        %p1196 = pneg %p255
        %s1197 = sand.u32 %s41, 1
        %s1198 = scalar_lea.sflag [#allocation6], %s1197
        %s1199 = sand.u32 %s275, 1
        %s1200 = smul.addr %s1199, 512
        %s1201 = scalar_lea.vmem [#allocation16], %s1200
        %p1202 = pneg %p288
        %p1203 = pneg %p285
        %p1204 = scmp.lt.s32.totalorder %s41, 1
        %s1205 = scalar_select %p1204, %s41, 1
        %p1206 = scmp.lt.s32.totalorder %s1205, 1
        %s1207 = scalar_select %p1206, %s1205, 1
        %s1208 = smul.addr %s1207, 4
        %s1209 = scalar_lea.vmem %s9, %s1208
        %p1210 = pneg %p318
        %p1211 = pneg %p315
        %s1212 = sand.u32 %s41, 1
        %s1213 = scalar_lea.sflag [#allocation6], %s1212
        %s1214 = sand.u32 %s335, 1
        %s1215 = smul.addr %s1214, 512
        %s1216 = scalar_lea.vmem [#allocation17], %s1215
        %p1217 = pneg %p348
        %p1218 = pneg %p345
        %s1219 = sand.u32 %s41, 1
        %s1220 = scalar_lea.sflag [#allocation6], %s1219
        %s1221 = sand.u32 %s365, 1
        %s1222 = smul.addr %s1221, 2
        %s1223 = scalar_lea.vmem [#allocation18], %s1222
        %p1224 = pneg %p378
        %p1225 = pneg %p375
        %s1226 = sand.u32 %s41, 1
        %s1227 = scalar_lea.sflag [#allocation6], %s1226
        %s1228 = sand.u32 %s395, 1
        %s1229 = smul.addr %s1228, 2
        %s1230 = scalar_lea.vmem [#allocation19], %s1229
        %p1231 = pneg %p408
        %p1232 = pneg %p405
        %p1233 = scmp.lt.s32.totalorder %s41, 1
        %s1234 = scalar_select %p1233, %s41, 1
        %p1235 = scmp.lt.s32.totalorder %s1234, 1
        %s1236 = scalar_select %p1235, %s1234, 1
        %s1237 = smul.addr %s1236, 2
        %s1238 = scalar_lea.vmem %s13, %s1237
        %p1239 = pneg %p438
        %p1240 = pneg %p435
        %p1241 = pneg %p459
        %p1242 = pneg %p456
        %p1243 = pneg %p480
        %p1244 = pneg %p477
        %p1245 = pneg %p501
        %p1246 = pneg %p498
        %p1247 = pneg %p522
        %p1248 = pneg %p519
        %p1249 = pneg %p543
        %p1250 = pneg %p540
        %p1251 = pneg %p564
        %p1252 = pneg %p561
        %p1253 = pneg %p585
        %p1254 = pneg %p582
        %p1255 = pneg %p606
        %p1256 = pneg %p603
        %p1257 = pneg %p627
        %p1258 = pneg %p624
        %p1259 = pneg %p648
        %p1260 = pneg %p645
        %p1261 = scmp.lt.s32.totalorder %s41, 1
        %s1262 = scalar_select %p1261, %s41, 1
        %p1263 = scmp.lt.s32.totalorder %s41, 1
        %s1264 = scalar_select %p1263, %s41, 1
        %p1265 = scmp.lt.s32.totalorder %s41, 1
        %s1266 = scalar_select %p1265, %s41, 1
        %p1267 = scmp.lt.s32.totalorder %s41, 1
        %s1268 = scalar_select %p1267, %s41, 1
        %p1269 = scmp.lt.s32.totalorder %s41, 1
        %s1270 = scalar_select %p1269, %s41, 1
        %p1271 = scmp.lt.s32.totalorder %s41, 1
        %s1272 = scalar_select %p1271, %s41, 1
        %p1273 = scmp.lt.s32.totalorder %s41, 1
        %s1274 = scalar_select %p1273, %s41, 1
        %p1275 = scmp.lt.s32.totalorder %s41, 1
        %s1276 = scalar_select %p1275, %s41, 1
        %p1277 = scmp.lt.s32.totalorder %s1276, 1
        %s1278 = scalar_select %p1277, %s1276, 1
        %s1279 = smul.addr %s1278, 4
        %s1280 = scalar_lea.vmem %s9, %s1279
        %p1281 = scmp.lt.s32.totalorder %s41, 1
        %s1282 = scalar_select %p1281, %s41, 1
        %p1283 = scmp.lt.s32.totalorder %s41, 1
        %s1284 = scalar_select %p1283, %s41, 1
        %p1285 = scmp.lt.s32.totalorder %s41, 1
        %s1286 = scalar_select %p1285, %s41, 1
        %p1287 = scmp.lt.s32.totalorder %s41, 1
        %s1288 = scalar_select %p1287, %s41, 1
        %p1289 = scmp.lt.s32.totalorder %s41, 1
        %s1290 = scalar_select %p1289, %s41, 1
        %p1291 = scmp.lt.s32.totalorder %s1290, 1
        %s1292 = scalar_select %p1291, %s1290, 1
        %s1293 = smul.addr %s1292, 2
        %s1294 = scalar_lea.vmem %s13, %s1293
        %p1295 = scmp.lt.s32.totalorder %s41, 1
        %s1296 = scalar_select %p1295, %s41, 1
        %p1297 = scmp.eq.s32.totalorder %s41, 0
        // Predicated region
        $region173: #{tpu_custom_call.1} parent=103 // pred_check
          %p1298 = pneg %p1297
        $region174: #{tpu_custom_call.1} parent=103 // pred_check_branch
          %1300 = sbr.rel (%p1298) target = $region176
        $region175: #{tpu_custom_call.1} parent=103 // pred_region
          %v1301 = vld [vmem:[#allocation5] sm:$0xff]
          %v1302 = vld [vmem:[#allocation5 + $0x8] sm:$0xff]
          %v1303 = vld [vmem:[#allocation5 + $0x10] sm:$0xff]
          %v1304 = vld [vmem:[#allocation5 + $0x18] sm:$0xff]
          %v1305 = vld [vmem:[#allocation5 + $0x20] sm:$0xff]
          %v1306 = vld [vmem:[#allocation5 + $0x28] sm:$0xff]
          %v1307 = vld [vmem:[#allocation5 + $0x30] sm:$0xff]
          %v1308 = vld [vmem:[#allocation5 + $0x38] sm:$0xff]
          %1309 = vst [vmem:[#allocation2] sm:$0xff] %v1301
          %1310 = vst [vmem:[#allocation2 + $0x8] sm:$0xff] %v1302
          %1311 = vst [vmem:[#allocation2 + $0x10] sm:$0xff] %v1303
          %1312 = vst [vmem:[#allocation2 + $0x18] sm:$0xff] %v1304
          %1313 = vst [vmem:[#allocation2 + $0x20] sm:$0xff] %v1305
          %1314 = vst [vmem:[#allocation2 + $0x28] sm:$0xff] %v1306
          %1315 = vst [vmem:[#allocation2 + $0x30] sm:$0xff] %v1307
          %1316 = vst [vmem:[#allocation2 + $0x38] sm:$0xff] %v1308
        $region176: #{tpu_custom_call.1} parent=103 // pred_fallthru
          _
        %p1317 = scmp.lt.s32.totalorder %s41, 2
        // Predicated region
        $region177: #{tpu_custom_call.1} parent=103 // pred_check
          %p1318 = pneg %p1317
        $region178: #{tpu_custom_call.1} parent=103 // pred_check_branch
          %1320 = sbr.rel (%p1318) target = $region180
        $region179: #{tpu_custom_call.1} parent=103 // pred_region
          %v1321 = vld [vmem:[#allocation2] sm:$0xff]
          %v1322 = vld [vmem:[#allocation2 + $0x8] sm:$0xff]
          %v1323 = vld [vmem:[#allocation2 + $0x10] sm:$0xff]
          %v1324 = vld [vmem:[#allocation2 + $0x18] sm:$0xff]
          %v1325 = vld [vmem:[#allocation2 + $0x20] sm:$0xff]
          %v1326 = vld [vmem:[#allocation2 + $0x28] sm:$0xff]
          %v1327 = vld [vmem:[#allocation2 + $0x30] sm:$0xff]
          %v1328 = vld [vmem:[#allocation2 + $0x38] sm:$0xff]
          %v1329 = vld [vmem:[#allocation8] sm:$0x3]
          %v1330 = vpack.c.bf16 %v1323, %v1321
          %v1331 = vpack.c.bf16 %v1324, %v1322
          %v1332 = vpack.c.bf16 %v1327, %v1325
          %v1333 = vpack.c.bf16 %v1328, %v1326
          %v1334 = vld [vmem:[%s1030] sm:$0xff]
          %v1335 = vld [vmem:[%s1030 + $0x8] sm:$0xff]
          %v1336 = vld [vmem:[%s1030 + $0x10] sm:$0xff]
          %v1337 = vld [vmem:[%s1030 + $0x18] sm:$0xff]
          %v1338 = vld [vmem:[%s1030 + $0x20] sm:$0xff]
          %v1339 = vld [vmem:[%s1030 + $0x28] sm:$0xff]
          %v1340 = vld [vmem:[%s1030 + $0x30] sm:$0xff]
          %v1341 = vld [vmem:[%s1030 + $0x38] sm:$0xff]
          %v1342 = vld [vmem:[%s1030 + $0x40] sm:$0xff]
          %v1343 = vld [vmem:[%s1030 + $0x48] sm:$0xff]
          %v1344 = vld [vmem:[%s1030 + $0x50] sm:$0xff]
          %v1345 = vld [vmem:[%s1030 + $0x58] sm:$0xff]
          %v1346 = vld [vmem:[%s1030 + $0x60] sm:$0xff]
          %v1347 = vld [vmem:[%s1030 + $0x68] sm:$0xff]
          %v1348 = vld [vmem:[%s1030 + $0x70] sm:$0xff]
          %v1349 = vld [vmem:[%s1030 + $0x78] sm:$0xff]
          %v1350 = vld [vmem:[%s1030 + $0x80] sm:$0xff]
          %v1351 = vld [vmem:[%s1030 + $0x88] sm:$0xff]
          %v1352 = vld [vmem:[%s1030 + $0x90] sm:$0xff]
          %v1353 = vld [vmem:[%s1030 + $0x98] sm:$0xff]
          %v1354 = vld [vmem:[%s1030 + $0xa0] sm:$0xff]
          %v1355 = vld [vmem:[%s1030 + $0xa8] sm:$0xff]
          %v1356 = vld [vmem:[%s1030 + $0xb0] sm:$0xff]
          %v1357 = vld [vmem:[%s1030 + $0xb8] sm:$0xff]
          %v1358 = vld [vmem:[%s1030 + $0xc0] sm:$0xff]
          %v1359 = vld [vmem:[%s1030 + $0xc8] sm:$0xff]
          %v1360 = vld [vmem:[%s1030 + $0xd0] sm:$0xff]
          %v1361 = vld [vmem:[%s1030 + $0xd8] sm:$0xff]
          %v1362 = vld [vmem:[%s1030 + $0xe0] sm:$0xff]
          %v1363 = vld [vmem:[%s1030 + $0xe8] sm:$0xff]
          %v1364 = vld [vmem:[%s1030 + $0xf0] sm:$0xff]
          %v1365 = vld [vmem:[%s1030 + $0xf8] sm:$0xff]
          %v1366 = vld [vmem:[%s1030 + $0x100] sm:$0xff]
          %v1367 = vld [vmem:[%s1030 + $0x108] sm:$0xff]
          %v1368 = vld [vmem:[%s1030 + $0x110] sm:$0xff]
          %v1369 = vld [vmem:[%s1030 + $0x118] sm:$0xff]
          %v1370 = vld [vmem:[%s1030 + $0x120] sm:$0xff]
          %v1371 = vld [vmem:[%s1030 + $0x128] sm:$0xff]
          %v1372 = vld [vmem:[%s1030 + $0x130] sm:$0xff]
          %v1373 = vld [vmem:[%s1030 + $0x138] sm:$0xff]
          %v1374 = vld [vmem:[%s1030 + $0x140] sm:$0xff]
          %v1375 = vld [vmem:[%s1030 + $0x148] sm:$0xff]
          %v1376 = vld [vmem:[%s1030 + $0x150] sm:$0xff]
          %v1377 = vld [vmem:[%s1030 + $0x158] sm:$0xff]
          %v1378 = vld [vmem:[%s1030 + $0x160] sm:$0xff]
          %v1379 = vld [vmem:[%s1030 + $0x168] sm:$0xff]
          %v1380 = vld [vmem:[%s1030 + $0x170] sm:$0xff]
          %v1381 = vld [vmem:[%s1030 + $0x178] sm:$0xff]
          %v1382 = vld [vmem:[%s1030 + $0x180] sm:$0xff]
          %v1383 = vld [vmem:[%s1030 + $0x188] sm:$0xff]
          %v1384 = vld [vmem:[%s1030 + $0x190] sm:$0xff]
          %v1385 = vld [vmem:[%s1030 + $0x198] sm:$0xff]
          %v1386 = vld [vmem:[%s1030 + $0x1a0] sm:$0xff]
          %v1387 = vld [vmem:[%s1030 + $0x1a8] sm:$0xff]
          %v1388 = vld [vmem:[%s1030 + $0x1b0] sm:$0xff]
          %v1389 = vld [vmem:[%s1030 + $0x1b8] sm:$0xff]
          %v1390 = vld [vmem:[%s1030 + $0x1c0] sm:$0xff]
          %v1391 = vld [vmem:[%s1030 + $0x1c8] sm:$0xff]
          %v1392 = vld [vmem:[%s1030 + $0x1d0] sm:$0xff]
          %v1393 = vld [vmem:[%s1030 + $0x1d8] sm:$0xff]
          %v1394 = vld [vmem:[%s1030 + $0x1e0] sm:$0xff]
          %v1395 = vld [vmem:[%s1030 + $0x1e8] sm:$0xff]
          %v1396 = vld [vmem:[%s1030 + $0x1f0] sm:$0xff]
          %v1397 = vld [vmem:[%s1030 + $0x1f8] sm:$0xff]
          %v1398 = vld [vmem:[%s1030 + $0x200] sm:$0xff]
          %v1399 = vld [vmem:[%s1030 + $0x208] sm:$0xff]
          %v1400 = vld [vmem:[%s1030 + $0x210] sm:$0xff]
          %v1401 = vld [vmem:[%s1030 + $0x218] sm:$0xff]
          %v1402 = vld [vmem:[%s1030 + $0x220] sm:$0xff]
          %v1403 = vld [vmem:[%s1030 + $0x228] sm:$0xff]
          %v1404 = vld [vmem:[%s1030 + $0x230] sm:$0xff]
          %v1405 = vld [vmem:[%s1030 + $0x238] sm:$0xff]
          %v1406 = vld [vmem:[%s1030 + $0x240] sm:$0xff]
          %v1407 = vld [vmem:[%s1030 + $0x248] sm:$0xff]
          %v1408 = vld [vmem:[%s1030 + $0x250] sm:$0xff]
          %v1409 = vld [vmem:[%s1030 + $0x258] sm:$0xff]
          %v1410 = vld [vmem:[%s1030 + $0x260] sm:$0xff]
          %v1411 = vld [vmem:[%s1030 + $0x268] sm:$0xff]
          %v1412 = vld [vmem:[%s1030 + $0x270] sm:$0xff]
          %v1413 = vld [vmem:[%s1030 + $0x278] sm:$0xff]
          %v1414 = vld [vmem:[%s1030 + $0x280] sm:$0xff]
          %v1415 = vld [vmem:[%s1030 + $0x288] sm:$0xff]
          %v1416 = vld [vmem:[%s1030 + $0x290] sm:$0xff]
          %v1417 = vld [vmem:[%s1030 + $0x298] sm:$0xff]
          %v1418 = vld [vmem:[%s1030 + $0x2a0] sm:$0xff]
          %v1419 = vld [vmem:[%s1030 + $0x2a8] sm:$0xff]
          %v1420 = vld [vmem:[%s1030 + $0x2b0] sm:$0xff]
          %v1421 = vld [vmem:[%s1030 + $0x2b8] sm:$0xff]
          %v1422 = vld [vmem:[%s1030 + $0x2c0] sm:$0xff]
          %v1423 = vld [vmem:[%s1030 + $0x2c8] sm:$0xff]
          %v1424 = vld [vmem:[%s1030 + $0x2d0] sm:$0xff]
          %v1425 = vld [vmem:[%s1030 + $0x2d8] sm:$0xff]
          %v1426 = vld [vmem:[%s1030 + $0x2e0] sm:$0xff]
          %v1427 = vld [vmem:[%s1030 + $0x2e8] sm:$0xff]
          %v1428 = vld [vmem:[%s1030 + $0x2f0] sm:$0xff]
          %v1429 = vld [vmem:[%s1030 + $0x2f8] sm:$0xff]
          %v1430 = vld [vmem:[%s1040] sm:$0x3f]
          %v1432 = vperm.slane %v1430, 0
          %v1433 = vperm.slane %v1430, 1
          %v1434 = vperm.slane %v1430, 2
          %v1435 = vperm.slane %v1430, 3
          %v1436 = vperm.slane %v1430, 4
          %v1437 = vperm.slane %v1430, 5
          %v1540 = vunpack.c.l.b16 %v1334
          %v1541 = vunpack.c.h.b16 %v1334
          %v1542 = vunpack.c.l.b16 %v1335
          %v1543 = vunpack.c.h.b16 %v1335
          %v1544 = vunpack.c.l.b16 %v1336
          %v1545 = vunpack.c.h.b16 %v1336
          %v1546 = vunpack.c.l.b16 %v1337
          %v1547 = vunpack.c.h.b16 %v1337
          %v1548 = vunpack.c.l.b16 %v1338
          %v1549 = vunpack.c.h.b16 %v1338
          %v1550 = vunpack.c.l.b16 %v1339
          %v1551 = vunpack.c.h.b16 %v1339
          %v1552 = vunpack.c.l.b16 %v1340
          %v1553 = vunpack.c.h.b16 %v1340
          %v1554 = vunpack.c.l.b16 %v1341
          %v1555 = vunpack.c.h.b16 %v1341
          %v1556 = vunpack.c.l.b16 %v1342
          %v1557 = vunpack.c.h.b16 %v1342
          %v1558 = vunpack.c.l.b16 %v1343
          %v1559 = vunpack.c.h.b16 %v1343
          %v1560 = vunpack.c.l.b16 %v1344
          %v1561 = vunpack.c.h.b16 %v1344
          %v1562 = vunpack.c.l.b16 %v1345
          %v1563 = vunpack.c.h.b16 %v1345
          %v1564 = vunpack.c.l.b16 %v1346
          %v1565 = vunpack.c.h.b16 %v1346
          %v1566 = vunpack.c.l.b16 %v1347
          %v1567 = vunpack.c.h.b16 %v1347
          %v1568 = vunpack.c.l.b16 %v1348
          %v1569 = vunpack.c.h.b16 %v1348
          %v1570 = vunpack.c.l.b16 %v1349
          %v1571 = vunpack.c.h.b16 %v1349
          %v1572 = vunpack.c.l.b16 %v1350
          %v1573 = vunpack.c.h.b16 %v1350
          %v1574 = vunpack.c.l.b16 %v1351
          %v1575 = vunpack.c.h.b16 %v1351
          %v1576 = vunpack.c.l.b16 %v1352
          %v1577 = vunpack.c.h.b16 %v1352
          %v1578 = vunpack.c.l.b16 %v1353
          %v1579 = vunpack.c.h.b16 %v1353
          %v1580 = vunpack.c.l.b16 %v1354
          %v1581 = vunpack.c.h.b16 %v1354
          %v1582 = vunpack.c.l.b16 %v1355
          %v1583 = vunpack.c.h.b16 %v1355
          %v1584 = vunpack.c.l.b16 %v1356
          %v1585 = vunpack.c.h.b16 %v1356
          %v1586 = vunpack.c.l.b16 %v1357
          %v1587 = vunpack.c.h.b16 %v1357
          %v1588 = vunpack.c.l.b16 %v1358
          %v1589 = vunpack.c.h.b16 %v1358
          %v1590 = vunpack.c.l.b16 %v1359
          %v1591 = vunpack.c.h.b16 %v1359
          %v1592 = vunpack.c.l.b16 %v1360
          %v1593 = vunpack.c.h.b16 %v1360
          %v1594 = vunpack.c.l.b16 %v1361
          %v1595 = vunpack.c.h.b16 %v1361
          %v1596 = vunpack.c.l.b16 %v1362
          %v1597 = vunpack.c.h.b16 %v1362
          %v1598 = vunpack.c.l.b16 %v1363
          %v1599 = vunpack.c.h.b16 %v1363
          %v1600 = vunpack.c.l.b16 %v1364
          %v1601 = vunpack.c.h.b16 %v1364
          %v1602 = vunpack.c.l.b16 %v1365
          %v1603 = vunpack.c.h.b16 %v1365
          %v1604 = vunpack.c.l.b16 %v1366
          %v1605 = vunpack.c.h.b16 %v1366
          %v1606 = vunpack.c.l.b16 %v1367
          %v1607 = vunpack.c.h.b16 %v1367
          %v1608 = vunpack.c.l.b16 %v1368
          %v1609 = vunpack.c.h.b16 %v1368
          %v1610 = vunpack.c.l.b16 %v1369
          %v1611 = vunpack.c.h.b16 %v1369
          %v1612 = vunpack.c.l.b16 %v1370
          %v1613 = vunpack.c.h.b16 %v1370
          %v1614 = vunpack.c.l.b16 %v1371
          %v1615 = vunpack.c.h.b16 %v1371
          %v1616 = vunpack.c.l.b16 %v1372
          %v1617 = vunpack.c.h.b16 %v1372
          %v1618 = vunpack.c.l.b16 %v1373
          %v1619 = vunpack.c.h.b16 %v1373
          %v1620 = vunpack.c.l.b16 %v1374
          %v1621 = vunpack.c.h.b16 %v1374
          %v1622 = vunpack.c.l.b16 %v1375
          %v1623 = vunpack.c.h.b16 %v1375
          %v1624 = vunpack.c.l.b16 %v1376
          %v1625 = vunpack.c.h.b16 %v1376
          %v1626 = vunpack.c.l.b16 %v1377
          %v1627 = vunpack.c.h.b16 %v1377
          %v1628 = vunpack.c.l.b16 %v1378
          %v1629 = vunpack.c.h.b16 %v1378
          %v1630 = vunpack.c.l.b16 %v1379
          %v1631 = vunpack.c.h.b16 %v1379
          %v1632 = vunpack.c.l.b16 %v1380
          %v1633 = vunpack.c.h.b16 %v1380
          %v1634 = vunpack.c.l.b16 %v1381
          %v1635 = vunpack.c.h.b16 %v1381
          %v1636 = vunpack.c.l.b16 %v1382
          %v1637 = vunpack.c.h.b16 %v1382
          %v1638 = vunpack.c.l.b16 %v1383
          %v1639 = vunpack.c.h.b16 %v1383
          %v1640 = vunpack.c.l.b16 %v1384
          %v1641 = vunpack.c.h.b16 %v1384
          %v1642 = vunpack.c.l.b16 %v1385
          %v1643 = vunpack.c.h.b16 %v1385
          %v1644 = vunpack.c.l.b16 %v1386
          %v1645 = vunpack.c.h.b16 %v1386
          %v1646 = vunpack.c.l.b16 %v1387
          %v1647 = vunpack.c.h.b16 %v1387
          %v1648 = vunpack.c.l.b16 %v1388
          %v1649 = vunpack.c.h.b16 %v1388
          %v1650 = vunpack.c.l.b16 %v1389
          %v1651 = vunpack.c.h.b16 %v1389
          %v1652 = vunpack.c.l.b16 %v1390
          %v1653 = vunpack.c.h.b16 %v1390
          %v1654 = vunpack.c.l.b16 %v1391
          %v1655 = vunpack.c.h.b16 %v1391
          %v1656 = vunpack.c.l.b16 %v1392
          %v1657 = vunpack.c.h.b16 %v1392
          %v1658 = vunpack.c.l.b16 %v1393
          %v1659 = vunpack.c.h.b16 %v1393
          %v1660 = vunpack.c.l.b16 %v1394
          %v1661 = vunpack.c.h.b16 %v1394
          %v1662 = vunpack.c.l.b16 %v1395
          %v1663 = vunpack.c.h.b16 %v1395
          %v1664 = vunpack.c.l.b16 %v1396
          %v1665 = vunpack.c.h.b16 %v1396
          %v1666 = vunpack.c.l.b16 %v1397
          %v1667 = vunpack.c.h.b16 %v1397
          %v1668 = vunpack.c.l.b16 %v1398
          %v1669 = vunpack.c.h.b16 %v1398
          %v1670 = vunpack.c.l.b16 %v1399
          %v1671 = vunpack.c.h.b16 %v1399
          %v1672 = vunpack.c.l.b16 %v1400
          %v1673 = vunpack.c.h.b16 %v1400
          %v1674 = vunpack.c.l.b16 %v1401
          %v1675 = vunpack.c.h.b16 %v1401
          %v1676 = vunpack.c.l.b16 %v1402
          %v1677 = vunpack.c.h.b16 %v1402
          %v1678 = vunpack.c.l.b16 %v1403
          %v1679 = vunpack.c.h.b16 %v1403
          %v1680 = vunpack.c.l.b16 %v1404
          %v1681 = vunpack.c.h.b16 %v1404
          %v1682 = vunpack.c.l.b16 %v1405
          %v1683 = vunpack.c.h.b16 %v1405
          %v1684 = vunpack.c.l.b16 %v1406
          %v1685 = vunpack.c.h.b16 %v1406
          %v1686 = vunpack.c.l.b16 %v1407
          %v1687 = vunpack.c.h.b16 %v1407
          %v1688 = vunpack.c.l.b16 %v1408
          %v1689 = vunpack.c.h.b16 %v1408
          %v1690 = vunpack.c.l.b16 %v1409
          %v1691 = vunpack.c.h.b16 %v1409
          %v1692 = vunpack.c.l.b16 %v1410
          %v1693 = vunpack.c.h.b16 %v1410
          %v1694 = vunpack.c.l.b16 %v1411
          %v1695 = vunpack.c.h.b16 %v1411
          %v1696 = vunpack.c.l.b16 %v1412
          %v1697 = vunpack.c.h.b16 %v1412
          %v1698 = vunpack.c.l.b16 %v1413
          %v1699 = vunpack.c.h.b16 %v1413
          %v1700 = vunpack.c.l.b16 %v1414
          %v1701 = vunpack.c.h.b16 %v1414
          %v1702 = vunpack.c.l.b16 %v1415
          %v1703 = vunpack.c.h.b16 %v1415
          %v1704 = vunpack.c.l.b16 %v1416
          %v1705 = vunpack.c.h.b16 %v1416
          %v1706 = vunpack.c.l.b16 %v1417
          %v1707 = vunpack.c.h.b16 %v1417
          %v1708 = vunpack.c.l.b16 %v1418
          %v1709 = vunpack.c.h.b16 %v1418
          %v1710 = vunpack.c.l.b16 %v1419
          %v1711 = vunpack.c.h.b16 %v1419
          %v1712 = vunpack.c.l.b16 %v1420
          %v1713 = vunpack.c.h.b16 %v1420
          %v1714 = vunpack.c.l.b16 %v1421
          %v1715 = vunpack.c.h.b16 %v1421
          %v1716 = vunpack.c.l.b16 %v1422
          %v1717 = vunpack.c.h.b16 %v1422
          %v1718 = vunpack.c.l.b16 %v1423
          %v1719 = vunpack.c.h.b16 %v1423
          %v1720 = vunpack.c.l.b16 %v1424
          %v1721 = vunpack.c.h.b16 %v1424
          %v1722 = vunpack.c.l.b16 %v1425
          %v1723 = vunpack.c.h.b16 %v1425
          %v1724 = vunpack.c.l.b16 %v1426
          %v1725 = vunpack.c.h.b16 %v1426
          %v1726 = vunpack.c.l.b16 %v1427
          %v1727 = vunpack.c.h.b16 %v1427
          %v1728 = vunpack.c.l.b16 %v1428
          %v1729 = vunpack.c.h.b16 %v1428
          %v1730 = vunpack.c.l.b16 %v1429
          %v1731 = vunpack.c.h.b16 %v1429
          %v1732 = vpack.c.b16 %v1546, %v1540
          %v1733 = vpack.c.b16 %v1547, %v1541
          %v1734 = vpack.c.b16 %v1548, %v1542
          %v1735 = vpack.c.b16 %v1549, %v1543
          %v1736 = vpack.c.b16 %v1550, %v1544
          %v1737 = vpack.c.b16 %v1551, %v1545
          %v1738 = vpack.c.b16 %v1558, %v1552
          %v1739 = vpack.c.b16 %v1559, %v1553
          %v1740 = vpack.c.b16 %v1560, %v1554
          %v1741 = vpack.c.b16 %v1561, %v1555
          %v1742 = vpack.c.b16 %v1562, %v1556
          %v1743 = vpack.c.b16 %v1563, %v1557
          %v1744 = vpack.c.b16 %v1570, %v1564
          %v1745 = vpack.c.b16 %v1571, %v1565
          %v1746 = vpack.c.b16 %v1572, %v1566
          %v1747 = vpack.c.b16 %v1573, %v1567
          %v1748 = vpack.c.b16 %v1574, %v1568
          %v1749 = vpack.c.b16 %v1575, %v1569
          %v1750 = vpack.c.b16 %v1582, %v1576
          %v1751 = vpack.c.b16 %v1583, %v1577
          %v1752 = vpack.c.b16 %v1584, %v1578
          %v1753 = vpack.c.b16 %v1585, %v1579
          %v1754 = vpack.c.b16 %v1586, %v1580
          %v1755 = vpack.c.b16 %v1587, %v1581
          %v1756 = vpack.c.b16 %v1594, %v1588
          %v1757 = vpack.c.b16 %v1595, %v1589
          %v1758 = vpack.c.b16 %v1596, %v1590
          %v1759 = vpack.c.b16 %v1597, %v1591
          %v1760 = vpack.c.b16 %v1598, %v1592
          %v1761 = vpack.c.b16 %v1599, %v1593
          %v1762 = vpack.c.b16 %v1606, %v1600
          %v1763 = vpack.c.b16 %v1607, %v1601
          %v1764 = vpack.c.b16 %v1608, %v1602
          %v1765 = vpack.c.b16 %v1609, %v1603
          %v1766 = vpack.c.b16 %v1610, %v1604
          %v1767 = vpack.c.b16 %v1611, %v1605
          %v1768 = vpack.c.b16 %v1618, %v1612
          %v1769 = vpack.c.b16 %v1619, %v1613
          %v1770 = vpack.c.b16 %v1620, %v1614
          %v1771 = vpack.c.b16 %v1621, %v1615
          %v1772 = vpack.c.b16 %v1622, %v1616
          %v1773 = vpack.c.b16 %v1623, %v1617
          %v1774 = vpack.c.b16 %v1630, %v1624
          %v1775 = vpack.c.b16 %v1631, %v1625
          %v1776 = vpack.c.b16 %v1632, %v1626
          %v1777 = vpack.c.b16 %v1633, %v1627
          %v1778 = vpack.c.b16 %v1634, %v1628
          %v1779 = vpack.c.b16 %v1635, %v1629
          %v1780 = vpack.c.b16 %v1642, %v1636
          %v1781 = vpack.c.b16 %v1643, %v1637
          %v1782 = vpack.c.b16 %v1644, %v1638
          %v1783 = vpack.c.b16 %v1645, %v1639
          %v1784 = vpack.c.b16 %v1646, %v1640
          %v1785 = vpack.c.b16 %v1647, %v1641
          %v1786 = vpack.c.b16 %v1654, %v1648
          %v1787 = vpack.c.b16 %v1655, %v1649
          %v1788 = vpack.c.b16 %v1656, %v1650
          %v1789 = vpack.c.b16 %v1657, %v1651
          %v1790 = vpack.c.b16 %v1658, %v1652
          %v1791 = vpack.c.b16 %v1659, %v1653
          %v1792 = vpack.c.b16 %v1666, %v1660
          %v1793 = vpack.c.b16 %v1667, %v1661
          %v1794 = vpack.c.b16 %v1668, %v1662
          %v1795 = vpack.c.b16 %v1669, %v1663
          %v1796 = vpack.c.b16 %v1670, %v1664
          %v1797 = vpack.c.b16 %v1671, %v1665
          %v1798 = vpack.c.b16 %v1678, %v1672
          %v1799 = vpack.c.b16 %v1679, %v1673
          %v1800 = vpack.c.b16 %v1680, %v1674
          %v1801 = vpack.c.b16 %v1681, %v1675
          %v1802 = vpack.c.b16 %v1682, %v1676
          %v1803 = vpack.c.b16 %v1683, %v1677
          %v1804 = vpack.c.b16 %v1690, %v1684
          %v1805 = vpack.c.b16 %v1691, %v1685
          %v1806 = vpack.c.b16 %v1692, %v1686
          %v1807 = vpack.c.b16 %v1693, %v1687
          %v1808 = vpack.c.b16 %v1694, %v1688
          %v1809 = vpack.c.b16 %v1695, %v1689
          %v1810 = vpack.c.b16 %v1702, %v1696
          %v1811 = vpack.c.b16 %v1703, %v1697
          %v1812 = vpack.c.b16 %v1704, %v1698
          %v1813 = vpack.c.b16 %v1705, %v1699
          %v1814 = vpack.c.b16 %v1706, %v1700
          %v1815 = vpack.c.b16 %v1707, %v1701
          %v1816 = vpack.c.b16 %v1714, %v1708
          %v1817 = vpack.c.b16 %v1715, %v1709
          %v1818 = vpack.c.b16 %v1716, %v1710
          %v1819 = vpack.c.b16 %v1717, %v1711
          %v1820 = vpack.c.b16 %v1718, %v1712
          %v1821 = vpack.c.b16 %v1719, %v1713
          %v1822 = vpack.c.b16 %v1726, %v1720
          %v1823 = vpack.c.b16 %v1727, %v1721
          %v1824 = vpack.c.b16 %v1728, %v1722
          %v1825 = vpack.c.b16 %v1729, %v1723
          %v1826 = vpack.c.b16 %v1730, %v1724
          %v1827 = vpack.c.b16 %v1731, %v1725
          %1924 = vmatpush.bf16.msra.mxu0 %v1774
          %1925 = vmatpush.bf16.msra.mxu0 %v1768
          %1926 = vmatpush.bf16.msra.mxu0 %v1762
          %1927 = vmatpush.bf16.msra.mxu0 %v1756
          %1928 = vmatpush.bf16.msra.mxu0 %v1750
          %1929 = vmatpush.bf16.msra.mxu0 %v1744
          %1930 = vmatpush.bf16.msra.mxu0 %v1738
          %1931 = vmatpush.bf16.msra.mxu0 %v1732
          %1932 = vmatmul.bf16.gmra.mxu0 %v1330
          %v1933 = vpop.f32.mrf.mxu0
          %v1934 = vadd.f32 %v1432, %v1933
          %v1935 = vpop.f32.mrf.mxu0
          %v1936 = vadd.f32 %v1432, %v1935
          %1937 = vmatmul.bf16.gmra.mxu0 %v1332
          %v1938 = vpop.f32.mrf.mxu0
          %v1939 = vadd.f32 %v1432, %v1938
          %v1940 = vpop.f32.mrf.mxu0
          %v1941 = vadd.f32 %v1432, %v1940
          %1942 = vdwg.mxu0
          %1943 = vmatpush.bf16.msra.mxu0 %v1822
          %1944 = vmatpush.bf16.msra.mxu0 %v1816
          %1945 = vmatpush.bf16.msra.mxu0 %v1810
          %1946 = vmatpush.bf16.msra.mxu0 %v1804
          %1947 = vmatpush.bf16.msra.mxu0 %v1798
          %1948 = vmatpush.bf16.msra.mxu0 %v1792
          %1949 = vmatpush.bf16.msra.mxu0 %v1786
          %1950 = vmatpush.bf16.msra.mxu0 %v1780
          %1951 = vmatmul.bf16.gmra.mxu0 %v1331
          %v1952 = vpop.f32.mrf.mxu0
          %v1953 = vadd.f32 %v1934, %v1952
          %v1954 = vpop.f32.mrf.mxu0
          %v1955 = vadd.f32 %v1936, %v1954
          %1956 = vmatmul.bf16.gmra.mxu0 %v1333
          %v1957 = vpop.f32.mrf.mxu0
          %v1958 = vadd.f32 %v1939, %v1957
          %v1959 = vpop.f32.mrf.mxu0
          %v1960 = vadd.f32 %v1941, %v1959
          %1961 = vdwg.mxu0
          %1962 = vmatpush.bf16.msra.mxu0 %v1775
          %1963 = vmatpush.bf16.msra.mxu0 %v1769
          %1964 = vmatpush.bf16.msra.mxu0 %v1763
          %1965 = vmatpush.bf16.msra.mxu0 %v1757
          %1966 = vmatpush.bf16.msra.mxu0 %v1751
          %1967 = vmatpush.bf16.msra.mxu0 %v1745
          %1968 = vmatpush.bf16.msra.mxu0 %v1739
          %1969 = vmatpush.bf16.msra.mxu0 %v1733
          %1970 = vmatmul.bf16.gmra.mxu0 %v1330
          %v1971 = vpop.f32.mrf.mxu0
          %v1972 = vadd.f32 %v1433, %v1971
          %v1973 = vpop.f32.mrf.mxu0
          %v1974 = vadd.f32 %v1433, %v1973
          %1975 = vmatmul.bf16.gmra.mxu0 %v1332
          %v1976 = vpop.f32.mrf.mxu0
          %v1977 = vadd.f32 %v1433, %v1976
          %v1978 = vpop.f32.mrf.mxu0
          %v1979 = vadd.f32 %v1433, %v1978
          %1980 = vdwg.mxu0
          %1981 = vmatpush.bf16.msra.mxu0 %v1823
          %1982 = vmatpush.bf16.msra.mxu0 %v1817
          %1983 = vmatpush.bf16.msra.mxu0 %v1811
          %1984 = vmatpush.bf16.msra.mxu0 %v1805
          %1985 = vmatpush.bf16.msra.mxu0 %v1799
          %1986 = vmatpush.bf16.msra.mxu0 %v1793
          %1987 = vmatpush.bf16.msra.mxu0 %v1787
          %1988 = vmatpush.bf16.msra.mxu0 %v1781
          %1989 = vmatmul.bf16.gmra.mxu0 %v1331
          %v1990 = vpop.f32.mrf.mxu0
          %v1991 = vadd.f32 %v1972, %v1990
          %v1992 = vpop.f32.mrf.mxu0
          %v1993 = vadd.f32 %v1974, %v1992
          %1994 = vmatmul.bf16.gmra.mxu0 %v1333
          %v1995 = vpop.f32.mrf.mxu0
          %v1996 = vadd.f32 %v1977, %v1995
          %v1997 = vpop.f32.mrf.mxu0
          %v1998 = vadd.f32 %v1979, %v1997
          %1999 = vdwg.mxu0
          %2000 = vmatpush.bf16.msra.mxu0 %v1776
          %2001 = vmatpush.bf16.msra.mxu0 %v1770
          %2002 = vmatpush.bf16.msra.mxu0 %v1764
          %2003 = vmatpush.bf16.msra.mxu0 %v1758
          %2004 = vmatpush.bf16.msra.mxu0 %v1752
          %2005 = vmatpush.bf16.msra.mxu0 %v1746
          %2006 = vmatpush.bf16.msra.mxu0 %v1740
          %2007 = vmatpush.bf16.msra.mxu0 %v1734
          %2008 = vmatmul.bf16.gmra.mxu0 %v1330
          %v2009 = vpop.f32.mrf.mxu0
          %v2010 = vadd.f32 %v1434, %v2009
          %v2011 = vpop.f32.mrf.mxu0
          %v2012 = vadd.f32 %v1434, %v2011
          %2013 = vmatmul.bf16.gmra.mxu0 %v1332
          %v2014 = vpop.f32.mrf.mxu0
          %v2015 = vadd.f32 %v1434, %v2014
          %v2016 = vpop.f32.mrf.mxu0
          %v2017 = vadd.f32 %v1434, %v2016
          %2018 = vdwg.mxu0
          %2019 = vmatpush.bf16.msra.mxu0 %v1824
          %2020 = vmatpush.bf16.msra.mxu0 %v1818
          %2021 = vmatpush.bf16.msra.mxu0 %v1812
          %2022 = vmatpush.bf16.msra.mxu0 %v1806
          %2023 = vmatpush.bf16.msra.mxu0 %v1800
          %2024 = vmatpush.bf16.msra.mxu0 %v1794
          %2025 = vmatpush.bf16.msra.mxu0 %v1788
          %2026 = vmatpush.bf16.msra.mxu0 %v1782
          %2027 = vmatmul.bf16.gmra.mxu0 %v1331
          %v2028 = vpop.f32.mrf.mxu0
          %v2029 = vadd.f32 %v2010, %v2028
          %v2030 = vpop.f32.mrf.mxu0
          %v2031 = vadd.f32 %v2012, %v2030
          %2032 = vmatmul.bf16.gmra.mxu0 %v1333
          %v2033 = vpop.f32.mrf.mxu0
          %v2034 = vadd.f32 %v2015, %v2033
          %v2035 = vpop.f32.mrf.mxu0
          %v2036 = vadd.f32 %v2017, %v2035
          %2037 = vdwg.mxu0
          %2038 = vmatpush.bf16.msra.mxu0 %v1777
          %2039 = vmatpush.bf16.msra.mxu0 %v1771
          %2040 = vmatpush.bf16.msra.mxu0 %v1765
          %2041 = vmatpush.bf16.msra.mxu0 %v1759
          %2042 = vmatpush.bf16.msra.mxu0 %v1753
          %2043 = vmatpush.bf16.msra.mxu0 %v1747
          %2044 = vmatpush.bf16.msra.mxu0 %v1741
          %2045 = vmatpush.bf16.msra.mxu0 %v1735
          %2046 = vmatmul.bf16.gmra.mxu0 %v1330
          %v2047 = vpop.f32.mrf.mxu0
          %v2048 = vadd.f32 %v1435, %v2047
          %v2049 = vpop.f32.mrf.mxu0
          %v2050 = vadd.f32 %v1435, %v2049
          %2051 = vmatmul.bf16.gmra.mxu0 %v1332
          %v2052 = vpop.f32.mrf.mxu0
          %v2053 = vadd.f32 %v1435, %v2052
          %v2054 = vpop.f32.mrf.mxu0
          %v2055 = vadd.f32 %v1435, %v2054
          %2056 = vdwg.mxu0
          %2057 = vmatpush.bf16.msra.mxu0 %v1825
          %2058 = vmatpush.bf16.msra.mxu0 %v1819
          %2059 = vmatpush.bf16.msra.mxu0 %v1813
          %2060 = vmatpush.bf16.msra.mxu0 %v1807
          %2061 = vmatpush.bf16.msra.mxu0 %v1801
          %2062 = vmatpush.bf16.msra.mxu0 %v1795
          %2063 = vmatpush.bf16.msra.mxu0 %v1789
          %2064 = vmatpush.bf16.msra.mxu0 %v1783
          %2065 = vmatmul.bf16.gmra.mxu0 %v1331
          %v2066 = vpop.f32.mrf.mxu0
          %v2067 = vadd.f32 %v2048, %v2066
          %v2068 = vpop.f32.mrf.mxu0
          %v2069 = vadd.f32 %v2050, %v2068
          %2070 = vmatmul.bf16.gmra.mxu0 %v1333
          %v2071 = vpop.f32.mrf.mxu0
          %v2072 = vadd.f32 %v2053, %v2071
          %v2073 = vpop.f32.mrf.mxu0
          %v2074 = vadd.f32 %v2055, %v2073
          %2075 = vdwg.mxu0
          %2076 = vmatpush.bf16.msra.mxu0 %v1778
          %2077 = vmatpush.bf16.msra.mxu0 %v1772
          %2078 = vmatpush.bf16.msra.mxu0 %v1766
          %2079 = vmatpush.bf16.msra.mxu0 %v1760
          %2080 = vmatpush.bf16.msra.mxu0 %v1754
          %2081 = vmatpush.bf16.msra.mxu0 %v1748
          %2082 = vmatpush.bf16.msra.mxu0 %v1742
          %2083 = vmatpush.bf16.msra.mxu0 %v1736
          %2084 = vmatmul.bf16.gmra.mxu0 %v1330
          %v2085 = vpop.f32.mrf.mxu0
          %v2086 = vadd.f32 %v1436, %v2085
          %v2087 = vpop.f32.mrf.mxu0
          %v2088 = vadd.f32 %v1436, %v2087
          %2089 = vmatmul.bf16.gmra.mxu0 %v1332
          %v2090 = vpop.f32.mrf.mxu0
          %v2091 = vadd.f32 %v1436, %v2090
          %v2092 = vpop.f32.mrf.mxu0
          %v2093 = vadd.f32 %v1436, %v2092
          %2094 = vdwg.mxu0
          %2095 = vmatpush.bf16.msra.mxu0 %v1826
          %2096 = vmatpush.bf16.msra.mxu0 %v1820
          %2097 = vmatpush.bf16.msra.mxu0 %v1814
          %2098 = vmatpush.bf16.msra.mxu0 %v1808
          %2099 = vmatpush.bf16.msra.mxu0 %v1802
          %2100 = vmatpush.bf16.msra.mxu0 %v1796
          %2101 = vmatpush.bf16.msra.mxu0 %v1790
          %2102 = vmatpush.bf16.msra.mxu0 %v1784
          %2103 = vmatmul.bf16.gmra.mxu0 %v1331
          %v2104 = vpop.f32.mrf.mxu0
          %v2105 = vadd.f32 %v2086, %v2104
          %v2106 = vpop.f32.mrf.mxu0
          %v2107 = vadd.f32 %v2088, %v2106
          %2108 = vmatmul.bf16.gmra.mxu0 %v1333
          %v2109 = vpop.f32.mrf.mxu0
          %v2110 = vadd.f32 %v2091, %v2109
          %v2111 = vpop.f32.mrf.mxu0
          %v2112 = vadd.f32 %v2093, %v2111
          %2113 = vdwg.mxu0
          %2114 = vmatpush.bf16.msra.mxu0 %v1779
          %2115 = vmatpush.bf16.msra.mxu0 %v1773
          %2116 = vmatpush.bf16.msra.mxu0 %v1767
          %2117 = vmatpush.bf16.msra.mxu0 %v1761
          %2118 = vmatpush.bf16.msra.mxu0 %v1755
          %2119 = vmatpush.bf16.msra.mxu0 %v1749
          %2120 = vmatpush.bf16.msra.mxu0 %v1743
          %2121 = vmatpush.bf16.msra.mxu0 %v1737
          %2122 = vmatmul.bf16.gmra.mxu0 %v1330
          %v2123 = vpop.f32.mrf.mxu0
          %v2124 = vadd.f32 %v1437, %v2123
          %v2125 = vpop.f32.mrf.mxu0
          %v2126 = vadd.f32 %v1437, %v2125
          %2127 = vmatmul.bf16.gmra.mxu0 %v1332
          %v2128 = vpop.f32.mrf.mxu0
          %v2129 = vadd.f32 %v1437, %v2128
          %v2130 = vpop.f32.mrf.mxu0
          %v2131 = vadd.f32 %v1437, %v2130
          %2132 = vdwg.mxu0
          %2133 = vmatpush.bf16.msra.mxu0 %v1827
          %2134 = vmatpush.bf16.msra.mxu0 %v1821
          %2135 = vmatpush.bf16.msra.mxu0 %v1815
          %2136 = vmatpush.bf16.msra.mxu0 %v1809
          %2137 = vmatpush.bf16.msra.mxu0 %v1803
          %2138 = vmatpush.bf16.msra.mxu0 %v1797
          %2139 = vmatpush.bf16.msra.mxu0 %v1791
          %2140 = vmatpush.bf16.msra.mxu0 %v1785
          %2141 = vmatmul.bf16.gmra.mxu0 %v1331
          %v2142 = vpop.f32.mrf.mxu0
          %v2143 = vadd.f32 %v2124, %v2142
          %v2144 = vpop.f32.mrf.mxu0
          %v2145 = vadd.f32 %v2126, %v2144
          %2146 = vmatmul.bf16.gmra.mxu0 %v1333
          %v2147 = vpop.f32.mrf.mxu0
          %v2148 = vadd.f32 %v2129, %v2147
          %v2149 = vpop.f32.mrf.mxu0
          %v2150 = vadd.f32 %v2131, %v2149
          %2151 = vdwg.mxu0
          %2152 = vst [vmem:[#allocation3] sm:$0xff] %v1953
          %2153 = vst [vmem:[#allocation3 + $0x8] sm:$0xff] %v1991
          %2154 = vst [vmem:[#allocation3 + $0x10] sm:$0xff] %v2029
          %2155 = vst [vmem:[#allocation3 + $0x18] sm:$0xff] %v2067
          %2156 = vst [vmem:[#allocation3 + $0x20] sm:$0xff] %v2105
          %2157 = vst [vmem:[#allocation3 + $0x28] sm:$0xff] %v2143
          %2158 = vst [vmem:[#allocation3 + $0x30] sm:$0xff] %v1955
          %2159 = vst [vmem:[#allocation3 + $0x38] sm:$0xff] %v1993
          %2160 = vst [vmem:[#allocation3 + $0x40] sm:$0xff] %v2031
          %2161 = vst [vmem:[#allocation3 + $0x48] sm:$0xff] %v2069
          %2162 = vst [vmem:[#allocation3 + $0x50] sm:$0xff] %v2107
          %2163 = vst [vmem:[#allocation3 + $0x58] sm:$0xff] %v2145
          %2164 = vst [vmem:[#allocation3 + $0x60] sm:$0xff] %v1958
          %2165 = vst [vmem:[#allocation3 + $0x68] sm:$0xff] %v1996
          %2166 = vst [vmem:[#allocation3 + $0x70] sm:$0xff] %v2034
          %2167 = vst [vmem:[#allocation3 + $0x78] sm:$0xff] %v2072
          %2168 = vst [vmem:[#allocation3 + $0x80] sm:$0xff] %v2110
          %2169 = vst [vmem:[#allocation3 + $0x88] sm:$0xff] %v2148
          %2170 = vst [vmem:[#allocation3 + $0x90] sm:$0xff] %v1960
          %2171 = vst [vmem:[#allocation3 + $0x98] sm:$0xff] %v1998
          %2172 = vst [vmem:[#allocation3 + $0xa0] sm:$0xff] %v2036
          %2173 = vst [vmem:[#allocation3 + $0xa8] sm:$0xff] %v2074
          %2174 = vst [vmem:[#allocation3 + $0xb0] sm:$0xff] %v2112
          %2175 = vst [vmem:[#allocation3 + $0xb8] sm:$0xff] %v2150
          %v2176 = vld [vmem:[#allocation3] sm:$0xff]
          %v2177 = vld [vmem:[#allocation3 + $0x30] sm:$0xff]
          %v2178 = vmul.f32 %v2176, 0.125
          %v2179 = vmul.f32 %v2177, 0.125
          %v2180 = vld [vmem:[#allocation3 + $0x10] sm:$0xff]
          %v2181 = vld [vmem:[#allocation3 + $0x40] sm:$0xff]
          %v2182 = vld [vmem:[#allocation3 + $0x20] sm:$0xff]
          %v2183 = vld [vmem:[#allocation3 + $0x50] sm:$0xff]
          %v2184 = vperm.slane %v1329, 0
          %vm2185 = vcmask 523264
          %v2187 = vsel %vm2185, %v2178, 0
          %v2190 = vsel %vm2185, %v2179, 0
          %v2193 = vsel %vm2185, %v2180, 0
          %v2196 = vsel %vm2185, %v2181, 0
          %2198 = vmatpush.xpose.msra.mxu0 0.0
          %2199 = vmatpush.xpose.msra.mxu0 0.0
          %2200 = vmatpush.xpose.msra.mxu0 0.0
          %2201 = vmatpush.xpose.msra.mxu0 0.0
          %2202 = vmatpush.xpose.msra.mxu0 0.0
          %2203 = vmatpush.xpose.msra.mxu0 0.0
          %2204 = vmatpush.xpose.msra.mxu0 0.0
          %2205 = vmatpush.xpose.msra.mxu0 0.0
          %2206 = vmatpush.xpose.msra.mxu0 0.0
          %2207 = vmatpush.xpose.msra.mxu0 0.0
          %2208 = vmatpush.xpose.msra.mxu0 0.0
          %2209 = vmatpush.xpose.msra.mxu0 0.0
          %2210 = vmatpush.xpose.msra.mxu0 0.0
          %2211 = vmatpush.xpose.msra.mxu0 0.0
          %2212 = vmatpush.xpose.msra.mxu0 %v2196
          %2213 = vmatpush.xpose.msra.mxu0 %v2193
          %2214 = vmatmul.f32.gmra.mxu0 %v2187
          %v2215 = vpop.f32.mrf.mxu0
          %v2216 = vadd.f32 %v2184, %v2215
          %2217 = vmatmul.f32.gmra.mxu0 %v2190
          %v2218 = vpop.f32.mrf.mxu0
          %v2219 = vadd.f32 %v2184, %v2218
          %2220 = vdwg.mxu0
          %vm2221 = vcmask 130048
          %v2222 = vsel %vm2221, %v2216, -inf
          %2223 = vmax.xlane.f32.xlu0 %v2222
          %v2224 = vpop.xlane.xlu0 %2223
          %v2225 = vsel %vm2221, %v2219, -inf
          %2226 = vmax.xlane.f32.xlu0 %v2225
          %v2227 = vpop.xlane.xlu0 %2226
          %v2228 = vsub.f32 %v2216, %v2224
          %v2229 = vsub.f32 %v2219, %v2227
          %v2230 = vmul.f32 %v2228, 1.442695
          %v2231 = vpow.pop %v2230
          %v2232 = vmul.f32 %v2229, 1.442695
          %v2233 = vpow.pop %v2232
          %v2234 = vsel %vm2221, %v2231, 0.0
          %2235 = vadd.xlane.f32.xlu0 %v2234
          %v2236 = vpop.xlane.xlu0 %2235
          %v2237 = vsel %vm2221, %v2233, 0.0
          %2238 = vadd.xlane.f32.xlu0 %v2237
          %v2239 = vpop.xlane.xlu0 %2238
          %v2240 = vrcp.pop %v2236
          %v2241 = vmul.f32 %v2236, %v2240
          %v2242 = vsub.f32 1.0, %v2241
          %v2243 = vmul.f32 %v2240, %v2242
          %v2244 = vadd.f32 %v2240, %v2243
          %vm2245 = vweird.f32 %v2236
          %vm2246 = vweird.f32 %v2240
          %vm2247 = vmor %vm2245, %vm2246
          %v2248 = vsel %vm2247, %v2240, %v2244
          %v2249 = vand.u32 2147483647, %v2236
          %vm2250 = vcmp.eq.f32.partialorder %v2249, 8.507059e+37
          %v2251 = vand.u32 %v2236, 2147483648
          %v2252 = vor.u32 1.1754944e-38, %v2251
          %v2253 = vsel %vm2250, %v2252, %v2248
          %v2254 = vmul.f32 %v2231, %v2253
          %v2255 = vrcp.pop %v2239
          %v2256 = vmul.f32 %v2239, %v2255
          %v2257 = vsub.f32 1.0, %v2256
          %v2258 = vmul.f32 %v2255, %v2257
          %v2259 = vadd.f32 %v2255, %v2258
          %vm2260 = vweird.f32 %v2239
          %vm2261 = vweird.f32 %v2255
          %vm2262 = vmor %vm2260, %vm2261
          %v2263 = vsel %vm2262, %v2255, %v2259
          %v2264 = vand.u32 2147483647, %v2239
          %vm2265 = vcmp.eq.f32.partialorder %v2264, 8.507059e+37
          %v2266 = vand.u32 %v2239, 2147483648
          %v2267 = vor.u32 1.1754944e-38, %v2266
          %v2268 = vsel %vm2265, %v2267, %v2263
          %v2269 = vmul.f32 %v2233, %v2268
          %v2271 = vsel %vm2221, %v2254, 0
          %v2274 = vsel %vm2221, %v2269, 0
          %2276 = vmatpush.msra.mxu0 0.0
          %2277 = vmatpush.msra.mxu0 0.0
          %2278 = vmatpush.msra.mxu0 0.0
          %2279 = vmatpush.msra.mxu0 0.0
          %2280 = vmatpush.msra.mxu0 0.0
          %2281 = vmatpush.msra.mxu0 0.0
          %2282 = vmatpush.msra.mxu0 0.0
          %2283 = vmatpush.msra.mxu0 0.0
          %2284 = vmatpush.msra.mxu0 0.0
          %2285 = vmatpush.msra.mxu0 0.0
          %2286 = vmatpush.msra.mxu0 0.0
          %2287 = vmatpush.msra.mxu0 0.0
          %2288 = vmatpush.msra.mxu0 0.0
          %2289 = vmatpush.msra.mxu0 0.0
          %2290 = vmatpush.msra.mxu0 %v2183
          %2291 = vmatpush.msra.mxu0 %v2182
          %2292 = vmatmul.f32.gmra.mxu0 %v2271
          %v2293 = vpop.f32.mrf.mxu0
          %v2294 = vadd.f32 0.0, %v2293
          %2295 = vmatmul.f32.gmra.mxu0 %v2274
          %v2296 = vpop.f32.mrf.mxu0
          %v2297 = vadd.f32 0.0, %v2296
          %2298 = vdwg.mxu0
          %2299 = vst.msk [vmem:[#allocation4] sm:$0xff] %vm2185, %v2294
          %2300 = vst.msk [vmem:[#allocation4 + $0x10] sm:$0xff] %vm2185, %v2297
          %v2301 = vld [vmem:[#allocation3] sm:$0xff]
          %v2302 = vld [vmem:[#allocation3 + $0x30] sm:$0xff]
          %v2303 = vmul.f32 %v2301, 0.125
          %v2304 = vmul.f32 %v2302, 0.125
          %v2305 = vld [vmem:[#allocation3 + $0x10] sm:$0xff]
          %v2306 = vld [vmem:[#allocation3 + $0x40] sm:$0xff]
          %v2307 = vld [vmem:[#allocation3 + $0x20] sm:$0xff]
          %v2308 = vld [vmem:[#allocation3 + $0x50] sm:$0xff]
          %2311 = vrot.lane.b32.xlu0 %v2303, 64
          %v2312 = vpop.permute.xlu0 %2311
          %2313 = vrot.lane.b32.xlu0 %v2304, 64
          %v2314 = vpop.permute.xlu0 %2313
          %2317 = vrot.lane.b32.xlu0 %v2305, 64
          %v2318 = vpop.permute.xlu0 %2317
          %2319 = vrot.lane.b32.xlu0 %v2306, 64
          %v2320 = vpop.permute.xlu0 %2319
          %v2321 = vsel %vm2185, %v2312, 0
          %v2323 = vsel %vm2185, %v2314, 0
          %v2325 = vsel %vm2185, %v2318, 0
          %v2327 = vsel %vm2185, %v2320, 0
          %2329 = vmatpush.xpose.msra.mxu0 0.0
          %2330 = vmatpush.xpose.msra.mxu0 0.0
          %2331 = vmatpush.xpose.msra.mxu0 0.0
          %2332 = vmatpush.xpose.msra.mxu0 0.0
          %2333 = vmatpush.xpose.msra.mxu0 0.0
          %2334 = vmatpush.xpose.msra.mxu0 0.0
          %2335 = vmatpush.xpose.msra.mxu0 0.0
          %2336 = vmatpush.xpose.msra.mxu0 0.0
          %2337 = vmatpush.xpose.msra.mxu0 0.0
          %2338 = vmatpush.xpose.msra.mxu0 0.0
          %2339 = vmatpush.xpose.msra.mxu0 0.0
          %2340 = vmatpush.xpose.msra.mxu0 0.0
          %2341 = vmatpush.xpose.msra.mxu0 0.0
          %2342 = vmatpush.xpose.msra.mxu0 0.0
          %2343 = vmatpush.xpose.msra.mxu0 %v2327
          %2344 = vmatpush.xpose.msra.mxu0 %v2325
          %2345 = vmatmul.f32.gmra.mxu0 %v2321
          %v2346 = vpop.f32.mrf.mxu0
          %v2347 = vadd.f32 %v2184, %v2346
          %2348 = vmatmul.f32.gmra.mxu0 %v2323
          %v2349 = vpop.f32.mrf.mxu0
          %v2350 = vadd.f32 %v2184, %v2349
          %2351 = vdwg.mxu0
          %v2352 = vsel %vm2221, %v2347, -inf
          %2353 = vmax.xlane.f32.xlu0 %v2352
          %v2354 = vpop.xlane.xlu0 %2353
          %v2355 = vsel %vm2221, %v2350, -inf
          %2356 = vmax.xlane.f32.xlu0 %v2355
          %v2357 = vpop.xlane.xlu0 %2356
          %v2358 = vsub.f32 %v2347, %v2354
          %v2359 = vsub.f32 %v2350, %v2357
          %v2360 = vmul.f32 %v2358, 1.442695
          %v2361 = vpow.pop %v2360
          %v2362 = vmul.f32 %v2359, 1.442695
          %v2363 = vpow.pop %v2362
          %v2364 = vsel %vm2221, %v2361, 0.0
          %2365 = vadd.xlane.f32.xlu0 %v2364
          %v2366 = vpop.xlane.xlu0 %2365
          %v2367 = vsel %vm2221, %v2363, 0.0
          %2368 = vadd.xlane.f32.xlu0 %v2367
          %v2369 = vpop.xlane.xlu0 %2368
          %v2370 = vrcp.pop %v2366
          %v2371 = vmul.f32 %v2366, %v2370
          %v2372 = vsub.f32 1.0, %v2371
          %v2373 = vmul.f32 %v2370, %v2372
          %v2374 = vadd.f32 %v2370, %v2373
          %vm2375 = vweird.f32 %v2366
          %vm2376 = vweird.f32 %v2370
          %vm2377 = vmor %vm2375, %vm2376
          %v2378 = vsel %vm2377, %v2370, %v2374
          %v2379 = vand.u32 2147483647, %v2366
          %vm2380 = vcmp.eq.f32.partialorder %v2379, 8.507059e+37
          %v2381 = vand.u32 %v2366, 2147483648
          %v2382 = vor.u32 1.1754944e-38, %v2381
          %v2383 = vsel %vm2380, %v2382, %v2378
          %v2384 = vmul.f32 %v2361, %v2383
          %v2385 = vrcp.pop %v2369
          %v2386 = vmul.f32 %v2369, %v2385
          %v2387 = vsub.f32 1.0, %v2386
          %v2388 = vmul.f32 %v2385, %v2387
          %v2389 = vadd.f32 %v2385, %v2388
          %vm2390 = vweird.f32 %v2369
          %vm2391 = vweird.f32 %v2385
          %vm2392 = vmor %vm2390, %vm2391
          %v2393 = vsel %vm2392, %v2385, %v2389
          %v2394 = vand.u32 2147483647, %v2369
          %vm2395 = vcmp.eq.f32.partialorder %v2394, 8.507059e+37
          %v2396 = vand.u32 %v2369, 2147483648
          %v2397 = vor.u32 1.1754944e-38, %v2396
          %v2398 = vsel %vm2395, %v2397, %v2393
          %v2399 = vmul.f32 %v2363, %v2398
          %2402 = vrot.lane.b32.xlu0 %v2307, 64
          %v2403 = vpop.permute.xlu0 %2402
          %2404 = vrot.lane.b32.xlu0 %v2308, 64
          %v2405 = vpop.permute.xlu0 %2404
          %v2409 = vsel %vm2221, %v2384, 0
          %v2412 = vsel %vm2221, %v2399, 0
          %2414 = vmatpush.msra.mxu0 0.0
          %2415 = vmatpush.msra.mxu0 0.0
          %2416 = vmatpush.msra.mxu0 0.0
          %2417 = vmatpush.msra.mxu0 0.0
          %2418 = vmatpush.msra.mxu0 0.0
          %2419 = vmatpush.msra.mxu0 0.0
          %2420 = vmatpush.msra.mxu0 0.0
          %2421 = vmatpush.msra.mxu0 0.0
          %2422 = vmatpush.msra.mxu0 0.0
          %2423 = vmatpush.msra.mxu0 0.0
          %2424 = vmatpush.msra.mxu0 0.0
          %2425 = vmatpush.msra.mxu0 0.0
          %2426 = vmatpush.msra.mxu0 0.0
          %2427 = vmatpush.msra.mxu0 0.0
          %2428 = vmatpush.msra.mxu0 %v2405
          %2429 = vmatpush.msra.mxu0 %v2403
          %2430 = vmatmul.f32.gmra.mxu0 %v2409
          %v2431 = vpop.f32.mrf.mxu0
          %v2432 = vadd.f32 0.0, %v2431
          %2433 = vmatmul.f32.gmra.mxu0 %v2412
          %v2434 = vpop.f32.mrf.mxu0
          %v2435 = vadd.f32 0.0, %v2434
          %2436 = vdwg.mxu0
          %2439 = vrot.lane.b32.xlu0 %v2432, 64
          %v2440 = vpop.permute.xlu0 %2439
          %2441 = vrot.lane.b32.xlu0 %v2435, 64
          %v2442 = vpop.permute.xlu0 %2441
          %vm2445 = vcmask 1048064
          %2446 = vst.msk [vmem:[#allocation4] sm:$0xff] %vm2445, %v2440
          %2447 = vst.msk [vmem:[#allocation4 + $0x10] sm:$0xff] %vm2445, %v2442
          %v2448 = vld [vmem:[#allocation3 + $0x8] sm:$0xff]
          %v2449 = vld [vmem:[#allocation3 + $0x38] sm:$0xff]
          %v2450 = vmul.f32 %v2448, 0.125
          %v2451 = vmul.f32 %v2449, 0.125
          %v2452 = vld [vmem:[#allocation3 + $0x18] sm:$0xff]
          %v2453 = vld [vmem:[#allocation3 + $0x48] sm:$0xff]
          %v2454 = vld [vmem:[#allocation3 + $0x28] sm:$0xff]
          %v2455 = vld [vmem:[#allocation3 + $0x58] sm:$0xff]
          %v2457 = vsel %vm2185, %v2450, 0
          %v2460 = vsel %vm2185, %v2451, 0
          %v2463 = vsel %vm2185, %v2452, 0
          %v2466 = vsel %vm2185, %v2453, 0
          %2468 = vmatpush.xpose.msra.mxu0 0.0
          %2469 = vmatpush.xpose.msra.mxu0 0.0
          %2470 = vmatpush.xpose.msra.mxu0 0.0
          %2471 = vmatpush.xpose.msra.mxu0 0.0
          %2472 = vmatpush.xpose.msra.mxu0 0.0
          %2473 = vmatpush.xpose.msra.mxu0 0.0
          %2474 = vmatpush.xpose.msra.mxu0 0.0
          %2475 = vmatpush.xpose.msra.mxu0 0.0
          %2476 = vmatpush.xpose.msra.mxu0 0.0
          %2477 = vmatpush.xpose.msra.mxu0 0.0
          %2478 = vmatpush.xpose.msra.mxu0 0.0
          %2479 = vmatpush.xpose.msra.mxu0 0.0
          %2480 = vmatpush.xpose.msra.mxu0 0.0
          %2481 = vmatpush.xpose.msra.mxu0 0.0
          %2482 = vmatpush.xpose.msra.mxu0 %v2466
          %2483 = vmatpush.xpose.msra.mxu0 %v2463
          %2484 = vmatmul.f32.gmra.mxu0 %v2457
          %v2485 = vpop.f32.mrf.mxu0
          %v2486 = vadd.f32 %v2184, %v2485
          %2487 = vmatmul.f32.gmra.mxu0 %v2460
          %v2488 = vpop.f32.mrf.mxu0
          %v2489 = vadd.f32 %v2184, %v2488
          %2490 = vdwg.mxu0
          %v2491 = vsel %vm2221, %v2486, -inf
          %2492 = vmax.xlane.f32.xlu0 %v2491
          %v2493 = vpop.xlane.xlu0 %2492
          %v2494 = vsel %vm2221, %v2489, -inf
          %2495 = vmax.xlane.f32.xlu0 %v2494
          %v2496 = vpop.xlane.xlu0 %2495
          %v2497 = vsub.f32 %v2486, %v2493
          %v2498 = vsub.f32 %v2489, %v2496
          %v2499 = vmul.f32 %v2497, 1.442695
          %v2500 = vpow.pop %v2499
          %v2501 = vmul.f32 %v2498, 1.442695
          %v2502 = vpow.pop %v2501
          %v2503 = vsel %vm2221, %v2500, 0.0
          %2504 = vadd.xlane.f32.xlu0 %v2503
          %v2505 = vpop.xlane.xlu0 %2504
          %v2506 = vsel %vm2221, %v2502, 0.0
          %2507 = vadd.xlane.f32.xlu0 %v2506
          %v2508 = vpop.xlane.xlu0 %2507
          %v2509 = vrcp.pop %v2505
          %v2510 = vmul.f32 %v2505, %v2509
          %v2511 = vsub.f32 1.0, %v2510
          %v2512 = vmul.f32 %v2509, %v2511
          %v2513 = vadd.f32 %v2509, %v2512
          %vm2514 = vweird.f32 %v2505
          %vm2515 = vweird.f32 %v2509
          %vm2516 = vmor %vm2514, %vm2515
          %v2517 = vsel %vm2516, %v2509, %v2513
          %v2518 = vand.u32 2147483647, %v2505
          %vm2519 = vcmp.eq.f32.partialorder %v2518, 8.507059e+37
          %v2520 = vand.u32 %v2505, 2147483648
          %v2521 = vor.u32 1.1754944e-38, %v2520
          %v2522 = vsel %vm2519, %v2521, %v2517
          %v2523 = vmul.f32 %v2500, %v2522
          %v2524 = vrcp.pop %v2508
          %v2525 = vmul.f32 %v2508, %v2524
          %v2526 = vsub.f32 1.0, %v2525
          %v2527 = vmul.f32 %v2524, %v2526
          %v2528 = vadd.f32 %v2524, %v2527
          %vm2529 = vweird.f32 %v2508
          %vm2530 = vweird.f32 %v2524
          %vm2531 = vmor %vm2529, %vm2530
          %v2532 = vsel %vm2531, %v2524, %v2528
          %v2533 = vand.u32 2147483647, %v2508
          %vm2534 = vcmp.eq.f32.partialorder %v2533, 8.507059e+37
          %v2535 = vand.u32 %v2508, 2147483648
          %v2536 = vor.u32 1.1754944e-38, %v2535
          %v2537 = vsel %vm2534, %v2536, %v2532
          %v2538 = vmul.f32 %v2502, %v2537
          %v2540 = vsel %vm2221, %v2523, 0
          %v2543 = vsel %vm2221, %v2538, 0
          %2545 = vmatpush.msra.mxu0 0.0
          %2546 = vmatpush.msra.mxu0 0.0
          %2547 = vmatpush.msra.mxu0 0.0
          %2548 = vmatpush.msra.mxu0 0.0
          %2549 = vmatpush.msra.mxu0 0.0
          %2550 = vmatpush.msra.mxu0 0.0
          %2551 = vmatpush.msra.mxu0 0.0
          %2552 = vmatpush.msra.mxu0 0.0
          %2553 = vmatpush.msra.mxu0 0.0
          %2554 = vmatpush.msra.mxu0 0.0
          %2555 = vmatpush.msra.mxu0 0.0
          %2556 = vmatpush.msra.mxu0 0.0
          %2557 = vmatpush.msra.mxu0 0.0
          %2558 = vmatpush.msra.mxu0 0.0
          %2559 = vmatpush.msra.mxu0 %v2455
          %2560 = vmatpush.msra.mxu0 %v2454
          %2561 = vmatmul.f32.gmra.mxu0 %v2540
          %v2562 = vpop.f32.mrf.mxu0
          %v2563 = vadd.f32 0.0, %v2562
          %2564 = vmatmul.f32.gmra.mxu0 %v2543
          %v2565 = vpop.f32.mrf.mxu0
          %v2566 = vadd.f32 0.0, %v2565
          %2567 = vdwg.mxu0
          %2568 = vst.msk [vmem:[#allocation4 + $0x8] sm:$0xff] %vm2185, %v2563
          %2569 = vst.msk [vmem:[#allocation4 + $0x18] sm:$0xff] %vm2185, %v2566
          %v2570 = vld [vmem:[#allocation3 + $0x8] sm:$0xff]
          %v2571 = vld [vmem:[#allocation3 + $0x38] sm:$0xff]
          %v2572 = vmul.f32 %v2570, 0.125
          %v2573 = vmul.f32 %v2571, 0.125
          %v2574 = vld [vmem:[#allocation3 + $0x18] sm:$0xff]
          %v2575 = vld [vmem:[#allocation3 + $0x48] sm:$0xff]
          %v2576 = vld [vmem:[#allocation3 + $0x28] sm:$0xff]
          %v2577 = vld [vmem:[#allocation3 + $0x58] sm:$0xff]
          %2580 = vrot.lane.b32.xlu0 %v2572, 64
          %v2581 = vpop.permute.xlu0 %2580
          %2582 = vrot.lane.b32.xlu0 %v2573, 64
          %v2583 = vpop.permute.xlu0 %2582
          %2586 = vrot.lane.b32.xlu0 %v2574, 64
          %v2587 = vpop.permute.xlu0 %2586
          %2588 = vrot.lane.b32.xlu0 %v2575, 64
          %v2589 = vpop.permute.xlu0 %2588
          %v2590 = vsel %vm2185, %v2581, 0
          %v2592 = vsel %vm2185, %v2583, 0
          %v2594 = vsel %vm2185, %v2587, 0
          %v2596 = vsel %vm2185, %v2589, 0
          %2598 = vmatpush.xpose.msra.mxu0 0.0
          %2599 = vmatpush.xpose.msra.mxu0 0.0
          %2600 = vmatpush.xpose.msra.mxu0 0.0
          %2601 = vmatpush.xpose.msra.mxu0 0.0
          %2602 = vmatpush.xpose.msra.mxu0 0.0
          %2603 = vmatpush.xpose.msra.mxu0 0.0
          %2604 = vmatpush.xpose.msra.mxu0 0.0
          %2605 = vmatpush.xpose.msra.mxu0 0.0
          %2606 = vmatpush.xpose.msra.mxu0 0.0
          %2607 = vmatpush.xpose.msra.mxu0 0.0
          %2608 = vmatpush.xpose.msra.mxu0 0.0
          %2609 = vmatpush.xpose.msra.mxu0 0.0
          %2610 = vmatpush.xpose.msra.mxu0 0.0
          %2611 = vmatpush.xpose.msra.mxu0 0.0
          %2612 = vmatpush.xpose.msra.mxu0 %v2596
          %2613 = vmatpush.xpose.msra.mxu0 %v2594
          %2614 = vmatmul.f32.gmra.mxu0 %v2590
          %v2615 = vpop.f32.mrf.mxu0
          %v2616 = vadd.f32 %v2184, %v2615
          %2617 = vmatmul.f32.gmra.mxu0 %v2592
          %v2618 = vpop.f32.mrf.mxu0
          %v2619 = vadd.f32 %v2184, %v2618
          %2620 = vdwg.mxu0
          %v2621 = vsel %vm2221, %v2616, -inf
          %2622 = vmax.xlane.f32.xlu0 %v2621
          %v2623 = vpop.xlane.xlu0 %2622
          %v2624 = vsel %vm2221, %v2619, -inf
          %2625 = vmax.xlane.f32.xlu0 %v2624
          %v2626 = vpop.xlane.xlu0 %2625
          %v2627 = vsub.f32 %v2616, %v2623
          %v2628 = vsub.f32 %v2619, %v2626
          %v2629 = vmul.f32 %v2627, 1.442695
          %v2630 = vpow.pop %v2629
          %v2631 = vmul.f32 %v2628, 1.442695
          %v2632 = vpow.pop %v2631
          %v2633 = vsel %vm2221, %v2630, 0.0
          %2634 = vadd.xlane.f32.xlu0 %v2633
          %v2635 = vpop.xlane.xlu0 %2634
          %v2636 = vsel %vm2221, %v2632, 0.0
          %2637 = vadd.xlane.f32.xlu0 %v2636
          %v2638 = vpop.xlane.xlu0 %2637
          %v2639 = vrcp.pop %v2635
          %v2640 = vmul.f32 %v2635, %v2639
          %v2641 = vsub.f32 1.0, %v2640
          %v2642 = vmul.f32 %v2639, %v2641
          %v2643 = vadd.f32 %v2639, %v2642
          %vm2644 = vweird.f32 %v2635
          %vm2645 = vweird.f32 %v2639
          %vm2646 = vmor %vm2644, %vm2645
          %v2647 = vsel %vm2646, %v2639, %v2643
          %v2648 = vand.u32 2147483647, %v2635
          %vm2649 = vcmp.eq.f32.partialorder %v2648, 8.507059e+37
          %v2650 = vand.u32 %v2635, 2147483648
          %v2651 = vor.u32 1.1754944e-38, %v2650
          %v2652 = vsel %vm2649, %v2651, %v2647
          %v2653 = vmul.f32 %v2630, %v2652
          %v2654 = vrcp.pop %v2638
          %v2655 = vmul.f32 %v2638, %v2654
          %v2656 = vsub.f32 1.0, %v2655
          %v2657 = vmul.f32 %v2654, %v2656
          %v2658 = vadd.f32 %v2654, %v2657
          %vm2659 = vweird.f32 %v2638
          %vm2660 = vweird.f32 %v2654
          %vm2661 = vmor %vm2659, %vm2660
          %v2662 = vsel %vm2661, %v2654, %v2658
          %v2663 = vand.u32 2147483647, %v2638
          %vm2664 = vcmp.eq.f32.partialorder %v2663, 8.507059e+37
          %v2665 = vand.u32 %v2638, 2147483648
          %v2666 = vor.u32 1.1754944e-38, %v2665
          %v2667 = vsel %vm2664, %v2666, %v2662
          %v2668 = vmul.f32 %v2632, %v2667
          %2671 = vrot.lane.b32.xlu0 %v2576, 64
          %v2672 = vpop.permute.xlu0 %2671
          %2673 = vrot.lane.b32.xlu0 %v2577, 64
          %v2674 = vpop.permute.xlu0 %2673
          %v2678 = vsel %vm2221, %v2653, 0
          %v2681 = vsel %vm2221, %v2668, 0
          %2683 = vmatpush.msra.mxu0 0.0
          %2684 = vmatpush.msra.mxu0 0.0
          %2685 = vmatpush.msra.mxu0 0.0
          %2686 = vmatpush.msra.mxu0 0.0
          %2687 = vmatpush.msra.mxu0 0.0
          %2688 = vmatpush.msra.mxu0 0.0
          %2689 = vmatpush.msra.mxu0 0.0
          %2690 = vmatpush.msra.mxu0 0.0
          %2691 = vmatpush.msra.mxu0 0.0
          %2692 = vmatpush.msra.mxu0 0.0
          %2693 = vmatpush.msra.mxu0 0.0
          %2694 = vmatpush.msra.mxu0 0.0
          %2695 = vmatpush.msra.mxu0 0.0
          %2696 = vmatpush.msra.mxu0 0.0
          %2697 = vmatpush.msra.mxu0 %v2674
          %2698 = vmatpush.msra.mxu0 %v2672
          %2699 = vmatmul.f32.gmra.mxu0 %v2678
          %v2700 = vpop.f32.mrf.mxu0
          %v2701 = vadd.f32 0.0, %v2700
          %2702 = vmatmul.f32.gmra.mxu0 %v2681
          %v2703 = vpop.f32.mrf.mxu0
          %v2704 = vadd.f32 0.0, %v2703
          %2705 = vdwg.mxu0
          %2708 = vrot.lane.b32.xlu0 %v2701, 64
          %v2709 = vpop.permute.xlu0 %2708
          %2710 = vrot.lane.b32.xlu0 %v2704, 64
          %v2711 = vpop.permute.xlu0 %2710
          %2714 = vst.msk [vmem:[#allocation4 + $0x8] sm:$0xff] %vm2445, %v2709
          %2715 = vst.msk [vmem:[#allocation4 + $0x18] sm:$0xff] %vm2445, %v2711
          %v2716 = vld [vmem:[#allocation3 + $0x60] sm:$0xff]
          %v2717 = vld [vmem:[#allocation3 + $0x90] sm:$0xff]
          %v2718 = vmul.f32 %v2716, 0.125
          %v2719 = vmul.f32 %v2717, 0.125
          %v2720 = vld [vmem:[#allocation3 + $0x70] sm:$0xff]
          %v2721 = vld [vmem:[#allocation3 + $0xa0] sm:$0xff]
          %v2722 = vld [vmem:[#allocation3 + $0x80] sm:$0xff]
          %v2723 = vld [vmem:[#allocation3 + $0xb0] sm:$0xff]
          %v2724 = vperm.slane %v1329, 1
          %v2726 = vsel %vm2185, %v2718, 0
          %v2729 = vsel %vm2185, %v2719, 0
          %v2732 = vsel %vm2185, %v2720, 0
          %v2735 = vsel %vm2185, %v2721, 0
          %2737 = vmatpush.xpose.msra.mxu0 0.0
          %2738 = vmatpush.xpose.msra.mxu0 0.0
          %2739 = vmatpush.xpose.msra.mxu0 0.0
          %2740 = vmatpush.xpose.msra.mxu0 0.0
          %2741 = vmatpush.xpose.msra.mxu0 0.0
          %2742 = vmatpush.xpose.msra.mxu0 0.0
          %2743 = vmatpush.xpose.msra.mxu0 0.0
          %2744 = vmatpush.xpose.msra.mxu0 0.0
          %2745 = vmatpush.xpose.msra.mxu0 0.0
          %2746 = vmatpush.xpose.msra.mxu0 0.0
          %2747 = vmatpush.xpose.msra.mxu0 0.0
          %2748 = vmatpush.xpose.msra.mxu0 0.0
          %2749 = vmatpush.xpose.msra.mxu0 0.0
          %2750 = vmatpush.xpose.msra.mxu0 0.0
          %2751 = vmatpush.xpose.msra.mxu0 %v2735
          %2752 = vmatpush.xpose.msra.mxu0 %v2732
          %2753 = vmatmul.f32.gmra.mxu0 %v2726
          %v2754 = vpop.f32.mrf.mxu0
          %v2755 = vadd.f32 %v2724, %v2754
          %2756 = vmatmul.f32.gmra.mxu0 %v2729
          %v2757 = vpop.f32.mrf.mxu0
          %v2758 = vadd.f32 %v2724, %v2757
          %2759 = vdwg.mxu0
          %v2760 = vsel %vm2221, %v2755, -inf
          %2761 = vmax.xlane.f32.xlu0 %v2760
          %v2762 = vpop.xlane.xlu0 %2761
          %v2763 = vsel %vm2221, %v2758, -inf
          %2764 = vmax.xlane.f32.xlu0 %v2763
          %v2765 = vpop.xlane.xlu0 %2764
          %v2766 = vsub.f32 %v2755, %v2762
          %v2767 = vsub.f32 %v2758, %v2765
          %v2768 = vmul.f32 %v2766, 1.442695
          %v2769 = vpow.pop %v2768
          %v2770 = vmul.f32 %v2767, 1.442695
          %v2771 = vpow.pop %v2770
          %v2772 = vsel %vm2221, %v2769, 0.0
          %2773 = vadd.xlane.f32.xlu0 %v2772
          %v2774 = vpop.xlane.xlu0 %2773
          %v2775 = vsel %vm2221, %v2771, 0.0
          %2776 = vadd.xlane.f32.xlu0 %v2775
          %v2777 = vpop.xlane.xlu0 %2776
          %v2778 = vrcp.pop %v2774
          %v2779 = vmul.f32 %v2774, %v2778
          %v2780 = vsub.f32 1.0, %v2779
          %v2781 = vmul.f32 %v2778, %v2780
          %v2782 = vadd.f32 %v2778, %v2781
          %vm2783 = vweird.f32 %v2774
          %vm2784 = vweird.f32 %v2778
          %vm2785 = vmor %vm2783, %vm2784
          %v2786 = vsel %vm2785, %v2778, %v2782
          %v2787 = vand.u32 2147483647, %v2774
          %vm2788 = vcmp.eq.f32.partialorder %v2787, 8.507059e+37
          %v2789 = vand.u32 %v2774, 2147483648
          %v2790 = vor.u32 1.1754944e-38, %v2789
          %v2791 = vsel %vm2788, %v2790, %v2786
          %v2792 = vmul.f32 %v2769, %v2791
          %v2793 = vrcp.pop %v2777
          %v2794 = vmul.f32 %v2777, %v2793
          %v2795 = vsub.f32 1.0, %v2794
          %v2796 = vmul.f32 %v2793, %v2795
          %v2797 = vadd.f32 %v2793, %v2796
          %vm2798 = vweird.f32 %v2777
          %vm2799 = vweird.f32 %v2793
          %vm2800 = vmor %vm2798, %vm2799
          %v2801 = vsel %vm2800, %v2793, %v2797
          %v2802 = vand.u32 2147483647, %v2777
          %vm2803 = vcmp.eq.f32.partialorder %v2802, 8.507059e+37
          %v2804 = vand.u32 %v2777, 2147483648
          %v2805 = vor.u32 1.1754944e-38, %v2804
          %v2806 = vsel %vm2803, %v2805, %v2801
          %v2807 = vmul.f32 %v2771, %v2806
          %v2809 = vsel %vm2221, %v2792, 0
          %v2812 = vsel %vm2221, %v2807, 0
          %2814 = vmatpush.msra.mxu0 0.0
          %2815 = vmatpush.msra.mxu0 0.0
          %2816 = vmatpush.msra.mxu0 0.0
          %2817 = vmatpush.msra.mxu0 0.0
          %2818 = vmatpush.msra.mxu0 0.0
          %2819 = vmatpush.msra.mxu0 0.0
          %2820 = vmatpush.msra.mxu0 0.0
          %2821 = vmatpush.msra.mxu0 0.0
          %2822 = vmatpush.msra.mxu0 0.0
          %2823 = vmatpush.msra.mxu0 0.0
          %2824 = vmatpush.msra.mxu0 0.0
          %2825 = vmatpush.msra.mxu0 0.0
          %2826 = vmatpush.msra.mxu0 0.0
          %2827 = vmatpush.msra.mxu0 0.0
          %2828 = vmatpush.msra.mxu0 %v2723
          %2829 = vmatpush.msra.mxu0 %v2722
          %2830 = vmatmul.f32.gmra.mxu0 %v2809
          %v2831 = vpop.f32.mrf.mxu0
          %v2832 = vadd.f32 0.0, %v2831
          %2833 = vmatmul.f32.gmra.mxu0 %v2812
          %v2834 = vpop.f32.mrf.mxu0
          %v2835 = vadd.f32 0.0, %v2834
          %2836 = vdwg.mxu0
          %2837 = vst.msk [vmem:[#allocation4 + $0x20] sm:$0xff] %vm2185, %v2832
          %2838 = vst.msk [vmem:[#allocation4 + $0x30] sm:$0xff] %vm2185, %v2835
          %v2839 = vld [vmem:[#allocation3 + $0x60] sm:$0xff]
          %v2840 = vld [vmem:[#allocation3 + $0x90] sm:$0xff]
          %v2841 = vmul.f32 %v2839, 0.125
          %v2842 = vmul.f32 %v2840, 0.125
          %v2843 = vld [vmem:[#allocation3 + $0x70] sm:$0xff]
          %v2844 = vld [vmem:[#allocation3 + $0xa0] sm:$0xff]
          %v2845 = vld [vmem:[#allocation3 + $0x80] sm:$0xff]
          %v2846 = vld [vmem:[#allocation3 + $0xb0] sm:$0xff]
          %2849 = vrot.lane.b32.xlu0 %v2841, 64
          %v2850 = vpop.permute.xlu0 %2849
          %2851 = vrot.lane.b32.xlu0 %v2842, 64
          %v2852 = vpop.permute.xlu0 %2851
          %2855 = vrot.lane.b32.xlu0 %v2843, 64
          %v2856 = vpop.permute.xlu0 %2855
          %2857 = vrot.lane.b32.xlu0 %v2844, 64
          %v2858 = vpop.permute.xlu0 %2857
          %v2859 = vsel %vm2185, %v2850, 0
          %v2861 = vsel %vm2185, %v2852, 0
          %v2863 = vsel %vm2185, %v2856, 0
          %v2865 = vsel %vm2185, %v2858, 0
          %2867 = vmatpush.xpose.msra.mxu0 0.0
          %2868 = vmatpush.xpose.msra.mxu0 0.0
          %2869 = vmatpush.xpose.msra.mxu0 0.0
          %2870 = vmatpush.xpose.msra.mxu0 0.0
          %2871 = vmatpush.xpose.msra.mxu0 0.0
          %2872 = vmatpush.xpose.msra.mxu0 0.0
          %2873 = vmatpush.xpose.msra.mxu0 0.0
          %2874 = vmatpush.xpose.msra.mxu0 0.0
          %2875 = vmatpush.xpose.msra.mxu0 0.0
          %2876 = vmatpush.xpose.msra.mxu0 0.0
          %2877 = vmatpush.xpose.msra.mxu0 0.0
          %2878 = vmatpush.xpose.msra.mxu0 0.0
          %2879 = vmatpush.xpose.msra.mxu0 0.0
          %2880 = vmatpush.xpose.msra.mxu0 0.0
          %2881 = vmatpush.xpose.msra.mxu0 %v2865
          %2882 = vmatpush.xpose.msra.mxu0 %v2863
          %2883 = vmatmul.f32.gmra.mxu0 %v2859
          %v2884 = vpop.f32.mrf.mxu0
          %v2885 = vadd.f32 %v2724, %v2884
          %2886 = vmatmul.f32.gmra.mxu0 %v2861
          %v2887 = vpop.f32.mrf.mxu0
          %v2888 = vadd.f32 %v2724, %v2887
          %2889 = vdwg.mxu0
          %v2890 = vsel %vm2221, %v2885, -inf
          %2891 = vmax.xlane.f32.xlu0 %v2890
          %v2892 = vpop.xlane.xlu0 %2891
          %v2893 = vsel %vm2221, %v2888, -inf
          %2894 = vmax.xlane.f32.xlu0 %v2893
          %v2895 = vpop.xlane.xlu0 %2894
          %v2896 = vsub.f32 %v2885, %v2892
          %v2897 = vsub.f32 %v2888, %v2895
          %v2898 = vmul.f32 %v2896, 1.442695
          %v2899 = vpow.pop %v2898
          %v2900 = vmul.f32 %v2897, 1.442695
          %v2901 = vpow.pop %v2900
          %v2902 = vsel %vm2221, %v2899, 0.0
          %2903 = vadd.xlane.f32.xlu0 %v2902
          %v2904 = vpop.xlane.xlu0 %2903
          %v2905 = vsel %vm2221, %v2901, 0.0
          %2906 = vadd.xlane.f32.xlu0 %v2905
          %v2907 = vpop.xlane.xlu0 %2906
          %v2908 = vrcp.pop %v2904
          %v2909 = vmul.f32 %v2904, %v2908
          %v2910 = vsub.f32 1.0, %v2909
          %v2911 = vmul.f32 %v2908, %v2910
          %v2912 = vadd.f32 %v2908, %v2911
          %vm2913 = vweird.f32 %v2904
          %vm2914 = vweird.f32 %v2908
          %vm2915 = vmor %vm2913, %vm2914
          %v2916 = vsel %vm2915, %v2908, %v2912
          %v2917 = vand.u32 2147483647, %v2904
          %vm2918 = vcmp.eq.f32.partialorder %v2917, 8.507059e+37
          %v2919 = vand.u32 %v2904, 2147483648
          %v2920 = vor.u32 1.1754944e-38, %v2919
          %v2921 = vsel %vm2918, %v2920, %v2916
          %v2922 = vmul.f32 %v2899, %v2921
          %v2923 = vrcp.pop %v2907
          %v2924 = vmul.f32 %v2907, %v2923
          %v2925 = vsub.f32 1.0, %v2924
          %v2926 = vmul.f32 %v2923, %v2925
          %v2927 = vadd.f32 %v2923, %v2926
          %vm2928 = vweird.f32 %v2907
          %vm2929 = vweird.f32 %v2923
          %vm2930 = vmor %vm2928, %vm2929
          %v2931 = vsel %vm2930, %v2923, %v2927
          %v2932 = vand.u32 2147483647, %v2907
          %vm2933 = vcmp.eq.f32.partialorder %v2932, 8.507059e+37
          %v2934 = vand.u32 %v2907, 2147483648
          %v2935 = vor.u32 1.1754944e-38, %v2934
          %v2936 = vsel %vm2933, %v2935, %v2931
          %v2937 = vmul.f32 %v2901, %v2936
          %2940 = vrot.lane.b32.xlu0 %v2845, 64
          %v2941 = vpop.permute.xlu0 %2940
          %2942 = vrot.lane.b32.xlu0 %v2846, 64
          %v2943 = vpop.permute.xlu0 %2942
          %v2947 = vsel %vm2221, %v2922, 0
          %v2950 = vsel %vm2221, %v2937, 0
          %2952 = vmatpush.msra.mxu0 0.0
          %2953 = vmatpush.msra.mxu0 0.0
          %2954 = vmatpush.msra.mxu0 0.0
          %2955 = vmatpush.msra.mxu0 0.0
          %2956 = vmatpush.msra.mxu0 0.0
          %2957 = vmatpush.msra.mxu0 0.0
          %2958 = vmatpush.msra.mxu0 0.0
          %2959 = vmatpush.msra.mxu0 0.0
          %2960 = vmatpush.msra.mxu0 0.0
          %2961 = vmatpush.msra.mxu0 0.0
          %2962 = vmatpush.msra.mxu0 0.0
          %2963 = vmatpush.msra.mxu0 0.0
          %2964 = vmatpush.msra.mxu0 0.0
          %2965 = vmatpush.msra.mxu0 0.0
          %2966 = vmatpush.msra.mxu0 %v2943
          %2967 = vmatpush.msra.mxu0 %v2941
          %2968 = vmatmul.f32.gmra.mxu0 %v2947
          %v2969 = vpop.f32.mrf.mxu0
          %v2970 = vadd.f32 0.0, %v2969
          %2971 = vmatmul.f32.gmra.mxu0 %v2950
          %v2972 = vpop.f32.mrf.mxu0
          %v2973 = vadd.f32 0.0, %v2972
          %2974 = vdwg.mxu0
          %2977 = vrot.lane.b32.xlu0 %v2970, 64
          %v2978 = vpop.permute.xlu0 %2977
          %2979 = vrot.lane.b32.xlu0 %v2973, 64
          %v2980 = vpop.permute.xlu0 %2979
          %2983 = vst.msk [vmem:[#allocation4 + $0x20] sm:$0xff] %vm2445, %v2978
          %2984 = vst.msk [vmem:[#allocation4 + $0x30] sm:$0xff] %vm2445, %v2980
          %v2985 = vld [vmem:[#allocation3 + $0x68] sm:$0xff]
          %v2986 = vld [vmem:[#allocation3 + $0x98] sm:$0xff]
          %v2987 = vmul.f32 %v2985, 0.125
          %v2988 = vmul.f32 %v2986, 0.125
          %v2989 = vld [vmem:[#allocation3 + $0x78] sm:$0xff]
          %v2990 = vld [vmem:[#allocation3 + $0xa8] sm:$0xff]
          %v2991 = vld [vmem:[#allocation3 + $0x88] sm:$0xff]
          %v2992 = vld [vmem:[#allocation3 + $0xb8] sm:$0xff]
          %v2994 = vsel %vm2185, %v2987, 0
          %v2997 = vsel %vm2185, %v2988, 0
          %v3000 = vsel %vm2185, %v2989, 0
          %v3003 = vsel %vm2185, %v2990, 0
          %3005 = vmatpush.xpose.msra.mxu0 0.0
          %3006 = vmatpush.xpose.msra.mxu0 0.0
          %3007 = vmatpush.xpose.msra.mxu0 0.0
          %3008 = vmatpush.xpose.msra.mxu0 0.0
          %3009 = vmatpush.xpose.msra.mxu0 0.0
          %3010 = vmatpush.xpose.msra.mxu0 0.0
          %3011 = vmatpush.xpose.msra.mxu0 0.0
          %3012 = vmatpush.xpose.msra.mxu0 0.0
          %3013 = vmatpush.xpose.msra.mxu0 0.0
          %3014 = vmatpush.xpose.msra.mxu0 0.0
          %3015 = vmatpush.xpose.msra.mxu0 0.0
          %3016 = vmatpush.xpose.msra.mxu0 0.0
          %3017 = vmatpush.xpose.msra.mxu0 0.0
          %3018 = vmatpush.xpose.msra.mxu0 0.0
          %3019 = vmatpush.xpose.msra.mxu0 %v3003
          %3020 = vmatpush.xpose.msra.mxu0 %v3000
          %3021 = vmatmul.f32.gmra.mxu0 %v2994
          %v3022 = vpop.f32.mrf.mxu0
          %v3023 = vadd.f32 %v2724, %v3022
          %3024 = vmatmul.f32.gmra.mxu0 %v2997
          %v3025 = vpop.f32.mrf.mxu0
          %v3026 = vadd.f32 %v2724, %v3025
          %3027 = vdwg.mxu0
          %v3028 = vsel %vm2221, %v3023, -inf
          %3029 = vmax.xlane.f32.xlu0 %v3028
          %v3030 = vpop.xlane.xlu0 %3029
          %v3031 = vsel %vm2221, %v3026, -inf
          %3032 = vmax.xlane.f32.xlu0 %v3031
          %v3033 = vpop.xlane.xlu0 %3032
          %v3034 = vsub.f32 %v3023, %v3030
          %v3035 = vsub.f32 %v3026, %v3033
          %v3036 = vmul.f32 %v3034, 1.442695
          %v3037 = vpow.pop %v3036
          %v3038 = vmul.f32 %v3035, 1.442695
          %v3039 = vpow.pop %v3038
          %v3040 = vsel %vm2221, %v3037, 0.0
          %3041 = vadd.xlane.f32.xlu0 %v3040
          %v3042 = vpop.xlane.xlu0 %3041
          %v3043 = vsel %vm2221, %v3039, 0.0
          %3044 = vadd.xlane.f32.xlu0 %v3043
          %v3045 = vpop.xlane.xlu0 %3044
          %v3046 = vrcp.pop %v3042
          %v3047 = vmul.f32 %v3042, %v3046
          %v3048 = vsub.f32 1.0, %v3047
          %v3049 = vmul.f32 %v3046, %v3048
          %v3050 = vadd.f32 %v3046, %v3049
          %vm3051 = vweird.f32 %v3042
          %vm3052 = vweird.f32 %v3046
          %vm3053 = vmor %vm3051, %vm3052
          %v3054 = vsel %vm3053, %v3046, %v3050
          %v3055 = vand.u32 2147483647, %v3042
          %vm3056 = vcmp.eq.f32.partialorder %v3055, 8.507059e+37
          %v3057 = vand.u32 %v3042, 2147483648
          %v3058 = vor.u32 1.1754944e-38, %v3057
          %v3059 = vsel %vm3056, %v3058, %v3054
          %v3060 = vmul.f32 %v3037, %v3059
          %v3061 = vrcp.pop %v3045
          %v3062 = vmul.f32 %v3045, %v3061
          %v3063 = vsub.f32 1.0, %v3062
          %v3064 = vmul.f32 %v3061, %v3063
          %v3065 = vadd.f32 %v3061, %v3064
          %vm3066 = vweird.f32 %v3045
          %vm3067 = vweird.f32 %v3061
          %vm3068 = vmor %vm3066, %vm3067
          %v3069 = vsel %vm3068, %v3061, %v3065
          %v3070 = vand.u32 2147483647, %v3045
          %vm3071 = vcmp.eq.f32.partialorder %v3070, 8.507059e+37
          %v3072 = vand.u32 %v3045, 2147483648
          %v3073 = vor.u32 1.1754944e-38, %v3072
          %v3074 = vsel %vm3071, %v3073, %v3069
          %v3075 = vmul.f32 %v3039, %v3074
          %v3077 = vsel %vm2221, %v3060, 0
          %v3080 = vsel %vm2221, %v3075, 0
          %3082 = vmatpush.msra.mxu0 0.0
          %3083 = vmatpush.msra.mxu0 0.0
          %3084 = vmatpush.msra.mxu0 0.0
          %3085 = vmatpush.msra.mxu0 0.0
          %3086 = vmatpush.msra.mxu0 0.0
          %3087 = vmatpush.msra.mxu0 0.0
          %3088 = vmatpush.msra.mxu0 0.0
          %3089 = vmatpush.msra.mxu0 0.0
          %3090 = vmatpush.msra.mxu0 0.0
          %3091 = vmatpush.msra.mxu0 0.0
          %3092 = vmatpush.msra.mxu0 0.0
          %3093 = vmatpush.msra.mxu0 0.0
          %3094 = vmatpush.msra.mxu0 0.0
          %3095 = vmatpush.msra.mxu0 0.0
          %3096 = vmatpush.msra.mxu0 %v2992
          %3097 = vmatpush.msra.mxu0 %v2991
          %3098 = vmatmul.f32.gmra.mxu0 %v3077
          %v3099 = vpop.f32.mrf.mxu0
          %v3100 = vadd.f32 0.0, %v3099
          %3101 = vmatmul.f32.gmra.mxu0 %v3080
          %v3102 = vpop.f32.mrf.mxu0
          %v3103 = vadd.f32 0.0, %v3102
          %3104 = vdwg.mxu0
          %3105 = vst.msk [vmem:[#allocation4 + $0x28] sm:$0xff] %vm2185, %v3100
          %3106 = vst.msk [vmem:[#allocation4 + $0x38] sm:$0xff] %vm2185, %v3103
          %v3107 = vld [vmem:[#allocation3 + $0x68] sm:$0xff]
          %v3108 = vld [vmem:[#allocation3 + $0x98] sm:$0xff]
          %v3109 = vmul.f32 %v3107, 0.125
          %v3110 = vmul.f32 %v3108, 0.125
          %v3111 = vld [vmem:[#allocation3 + $0x78] sm:$0xff]
          %v3112 = vld [vmem:[#allocation3 + $0xa8] sm:$0xff]
          %v3113 = vld [vmem:[#allocation3 + $0x88] sm:$0xff]
          %v3114 = vld [vmem:[#allocation3 + $0xb8] sm:$0xff]
          %3117 = vrot.lane.b32.xlu0 %v3109, 64
          %v3118 = vpop.permute.xlu0 %3117
          %3119 = vrot.lane.b32.xlu0 %v3110, 64
          %v3120 = vpop.permute.xlu0 %3119
          %3123 = vrot.lane.b32.xlu0 %v3111, 64
          %v3124 = vpop.permute.xlu0 %3123
          %3125 = vrot.lane.b32.xlu0 %v3112, 64
          %v3126 = vpop.permute.xlu0 %3125
          %v3127 = vsel %vm2185, %v3118, 0
          %v3129 = vsel %vm2185, %v3120, 0
          %v3131 = vsel %vm2185, %v3124, 0
          %v3133 = vsel %vm2185, %v3126, 0
          %3135 = vmatpush.xpose.msra.mxu0 0.0
          %3136 = vmatpush.xpose.msra.mxu0 0.0
          %3137 = vmatpush.xpose.msra.mxu0 0.0
          %3138 = vmatpush.xpose.msra.mxu0 0.0
          %3139 = vmatpush.xpose.msra.mxu0 0.0
          %3140 = vmatpush.xpose.msra.mxu0 0.0
          %3141 = vmatpush.xpose.msra.mxu0 0.0
          %3142 = vmatpush.xpose.msra.mxu0 0.0
          %3143 = vmatpush.xpose.msra.mxu0 0.0
          %3144 = vmatpush.xpose.msra.mxu0 0.0
          %3145 = vmatpush.xpose.msra.mxu0 0.0
          %3146 = vmatpush.xpose.msra.mxu0 0.0
          %3147 = vmatpush.xpose.msra.mxu0 0.0
          %3148 = vmatpush.xpose.msra.mxu0 0.0
          %3149 = vmatpush.xpose.msra.mxu0 %v3133
          %3150 = vmatpush.xpose.msra.mxu0 %v3131
          %3151 = vmatmul.f32.gmra.mxu0 %v3127
          %v3152 = vpop.f32.mrf.mxu0
          %v3153 = vadd.f32 %v2724, %v3152
          %3154 = vmatmul.f32.gmra.mxu0 %v3129
          %v3155 = vpop.f32.mrf.mxu0
          %v3156 = vadd.f32 %v2724, %v3155
          %3157 = vdwg.mxu0
          %v3158 = vsel %vm2221, %v3153, -inf
          %3159 = vmax.xlane.f32.xlu0 %v3158
          %v3160 = vpop.xlane.xlu0 %3159
          %v3161 = vsel %vm2221, %v3156, -inf
          %3162 = vmax.xlane.f32.xlu0 %v3161
          %v3163 = vpop.xlane.xlu0 %3162
          %v3164 = vsub.f32 %v3153, %v3160
          %v3165 = vsub.f32 %v3156, %v3163
          %v3166 = vmul.f32 %v3164, 1.442695
          %v3167 = vpow.pop %v3166
          %v3168 = vmul.f32 %v3165, 1.442695
          %v3169 = vpow.pop %v3168
          %v3170 = vsel %vm2221, %v3167, 0.0
          %3171 = vadd.xlane.f32.xlu0 %v3170
          %v3172 = vpop.xlane.xlu0 %3171
          %v3173 = vsel %vm2221, %v3169, 0.0
          %3174 = vadd.xlane.f32.xlu0 %v3173
          %v3175 = vpop.xlane.xlu0 %3174
          %v3176 = vrcp.pop %v3172
          %v3177 = vmul.f32 %v3172, %v3176
          %v3178 = vsub.f32 1.0, %v3177
          %v3179 = vmul.f32 %v3176, %v3178
          %v3180 = vadd.f32 %v3176, %v3179
          %vm3181 = vweird.f32 %v3172
          %vm3182 = vweird.f32 %v3176
          %vm3183 = vmor %vm3181, %vm3182
          %v3184 = vsel %vm3183, %v3176, %v3180
          %v3185 = vand.u32 2147483647, %v3172
          %vm3186 = vcmp.eq.f32.partialorder %v3185, 8.507059e+37
          %v3187 = vand.u32 %v3172, 2147483648
          %v3188 = vor.u32 1.1754944e-38, %v3187
          %v3189 = vsel %vm3186, %v3188, %v3184
          %v3190 = vmul.f32 %v3167, %v3189
          %v3191 = vrcp.pop %v3175
          %v3192 = vmul.f32 %v3175, %v3191
          %v3193 = vsub.f32 1.0, %v3192
          %v3194 = vmul.f32 %v3191, %v3193
          %v3195 = vadd.f32 %v3191, %v3194
          %vm3196 = vweird.f32 %v3175
          %vm3197 = vweird.f32 %v3191
          %vm3198 = vmor %vm3196, %vm3197
          %v3199 = vsel %vm3198, %v3191, %v3195
          %v3200 = vand.u32 2147483647, %v3175
          %vm3201 = vcmp.eq.f32.partialorder %v3200, 8.507059e+37
          %v3202 = vand.u32 %v3175, 2147483648
          %v3203 = vor.u32 1.1754944e-38, %v3202
          %v3204 = vsel %vm3201, %v3203, %v3199
          %v3205 = vmul.f32 %v3169, %v3204
          %3208 = vrot.lane.b32.xlu0 %v3113, 64
          %v3209 = vpop.permute.xlu0 %3208
          %3210 = vrot.lane.b32.xlu0 %v3114, 64
          %v3211 = vpop.permute.xlu0 %3210
          %v3215 = vsel %vm2221, %v3190, 0
          %v3218 = vsel %vm2221, %v3205, 0
          %3220 = vmatpush.msra.mxu0 0.0
          %3221 = vmatpush.msra.mxu0 0.0
          %3222 = vmatpush.msra.mxu0 0.0
          %3223 = vmatpush.msra.mxu0 0.0
          %3224 = vmatpush.msra.mxu0 0.0
          %3225 = vmatpush.msra.mxu0 0.0
          %3226 = vmatpush.msra.mxu0 0.0
          %3227 = vmatpush.msra.mxu0 0.0
          %3228 = vmatpush.msra.mxu0 0.0
          %3229 = vmatpush.msra.mxu0 0.0
          %3230 = vmatpush.msra.mxu0 0.0
          %3231 = vmatpush.msra.mxu0 0.0
          %3232 = vmatpush.msra.mxu0 0.0
          %3233 = vmatpush.msra.mxu0 0.0
          %3234 = vmatpush.msra.mxu0 %v3211
          %3235 = vmatpush.msra.mxu0 %v3209
          %3236 = vmatmul.f32.gmra.mxu0 %v3215
          %v3237 = vpop.f32.mrf.mxu0
          %v3238 = vadd.f32 0.0, %v3237
          %3239 = vmatmul.f32.gmra.mxu0 %v3218
          %v3240 = vpop.f32.mrf.mxu0
          %v3241 = vadd.f32 0.0, %v3240
          %3242 = vdwg.mxu0
          %3245 = vrot.lane.b32.xlu0 %v3238, 64
          %v3246 = vpop.permute.xlu0 %3245
          %3247 = vrot.lane.b32.xlu0 %v3241, 64
          %v3248 = vpop.permute.xlu0 %3247
          %3251 = vst.msk [vmem:[#allocation4 + $0x28] sm:$0xff] %vm2445, %v3246
          %3252 = vst.msk [vmem:[#allocation4 + $0x38] sm:$0xff] %vm2445, %v3248
          %v3253 = vld [vmem:[#allocation4] sm:$0xff]
          %v3254 = vld [vmem:[#allocation4 + $0x8] sm:$0xff]
          %v3255 = vld [vmem:[#allocation4 + $0x10] sm:$0xff]
          %v3256 = vld [vmem:[#allocation4 + $0x18] sm:$0xff]
          %v3257 = vld [vmem:[#allocation4 + $0x20] sm:$0xff]
          %v3258 = vld [vmem:[#allocation4 + $0x28] sm:$0xff]
          %v3259 = vld [vmem:[#allocation4 + $0x30] sm:$0xff]
          %v3260 = vld [vmem:[#allocation4 + $0x38] sm:$0xff]
          %v3261 = vpack.c.bf16 %v3255, %v3253
          %v3262 = vpack.c.bf16 %v3256, %v3254
          %v3263 = vpack.c.bf16 %v3259, %v3257
          %v3264 = vpack.c.bf16 %v3260, %v3258
          %v3265 = vld [vmem:[%s1050] sm:$0xff]
          %v3266 = vld [vmem:[%s1050 + $0x8] sm:$0xff]
          %v3267 = vld [vmem:[%s1050 + $0x10] sm:$0xff]
          %v3268 = vld [vmem:[%s1050 + $0x18] sm:$0xff]
          %v3269 = vld [vmem:[%s1050 + $0x20] sm:$0xff]
          %v3270 = vld [vmem:[%s1050 + $0x28] sm:$0xff]
          %v3271 = vld [vmem:[%s1050 + $0x30] sm:$0xff]
          %v3272 = vld [vmem:[%s1050 + $0x38] sm:$0xff]
          %v3273 = vld [vmem:[%s1050 + $0x40] sm:$0xff]
          %v3274 = vld [vmem:[%s1050 + $0x48] sm:$0xff]
          %v3275 = vld [vmem:[%s1050 + $0x50] sm:$0xff]
          %v3276 = vld [vmem:[%s1050 + $0x58] sm:$0xff]
          %v3277 = vld [vmem:[%s1050 + $0x60] sm:$0xff]
          %v3278 = vld [vmem:[%s1050 + $0x68] sm:$0xff]
          %v3279 = vld [vmem:[%s1050 + $0x70] sm:$0xff]
          %v3280 = vld [vmem:[%s1050 + $0x78] sm:$0xff]
          %v3281 = vld [vmem:[%s1050 + $0x80] sm:$0xff]
          %v3282 = vld [vmem:[%s1050 + $0x88] sm:$0xff]
          %v3283 = vld [vmem:[%s1050 + $0x90] sm:$0xff]
          %v3284 = vld [vmem:[%s1050 + $0x98] sm:$0xff]
          %v3285 = vld [vmem:[%s1050 + $0xa0] sm:$0xff]
          %v3286 = vld [vmem:[%s1050 + $0xa8] sm:$0xff]
          %v3287 = vld [vmem:[%s1050 + $0xb0] sm:$0xff]
          %v3288 = vld [vmem:[%s1050 + $0xb8] sm:$0xff]
          %v3289 = vld [vmem:[%s1050 + $0xc0] sm:$0xff]
          %v3290 = vld [vmem:[%s1050 + $0xc8] sm:$0xff]
          %v3291 = vld [vmem:[%s1050 + $0xd0] sm:$0xff]
          %v3292 = vld [vmem:[%s1050 + $0xd8] sm:$0xff]
          %v3293 = vld [vmem:[%s1050 + $0xe0] sm:$0xff]
          %v3294 = vld [vmem:[%s1050 + $0xe8] sm:$0xff]
          %v3295 = vld [vmem:[%s1050 + $0xf0] sm:$0xff]
          %v3296 = vld [vmem:[%s1050 + $0xf8] sm:$0xff]
          %v3297 = vld [vmem:[%s1060] sm:$0x3]
          %v3299 = vperm.slane %v3297, 0
          %v3300 = vperm.slane %v3297, 1
          %v3335 = vunpack.c.l.b16 %v3265
          %v3336 = vunpack.c.h.b16 %v3265
          %v3337 = vunpack.c.l.b16 %v3266
          %v3338 = vunpack.c.h.b16 %v3266
          %v3339 = vunpack.c.l.b16 %v3267
          %v3340 = vunpack.c.h.b16 %v3267
          %v3341 = vunpack.c.l.b16 %v3268
          %v3342 = vunpack.c.h.b16 %v3268
          %v3343 = vunpack.c.l.b16 %v3269
          %v3344 = vunpack.c.h.b16 %v3269
          %v3345 = vunpack.c.l.b16 %v3270
          %v3346 = vunpack.c.h.b16 %v3270
          %v3347 = vunpack.c.l.b16 %v3271
          %v3348 = vunpack.c.h.b16 %v3271
          %v3349 = vunpack.c.l.b16 %v3272
          %v3350 = vunpack.c.h.b16 %v3272
          %v3351 = vunpack.c.l.b16 %v3273
          %v3352 = vunpack.c.h.b16 %v3273
          %v3353 = vunpack.c.l.b16 %v3274
          %v3354 = vunpack.c.h.b16 %v3274
          %v3355 = vunpack.c.l.b16 %v3275
          %v3356 = vunpack.c.h.b16 %v3275
          %v3357 = vunpack.c.l.b16 %v3276
          %v3358 = vunpack.c.h.b16 %v3276
          %v3359 = vunpack.c.l.b16 %v3277
          %v3360 = vunpack.c.h.b16 %v3277
          %v3361 = vunpack.c.l.b16 %v3278
          %v3362 = vunpack.c.h.b16 %v3278
          %v3363 = vunpack.c.l.b16 %v3279
          %v3364 = vunpack.c.h.b16 %v3279
          %v3365 = vunpack.c.l.b16 %v3280
          %v3366 = vunpack.c.h.b16 %v3280
          %v3367 = vunpack.c.l.b16 %v3281
          %v3368 = vunpack.c.h.b16 %v3281
          %v3369 = vunpack.c.l.b16 %v3282
          %v3370 = vunpack.c.h.b16 %v3282
          %v3371 = vunpack.c.l.b16 %v3283
          %v3372 = vunpack.c.h.b16 %v3283
          %v3373 = vunpack.c.l.b16 %v3284
          %v3374 = vunpack.c.h.b16 %v3284
          %v3375 = vunpack.c.l.b16 %v3285
          %v3376 = vunpack.c.h.b16 %v3285
          %v3377 = vunpack.c.l.b16 %v3286
          %v3378 = vunpack.c.h.b16 %v3286
          %v3379 = vunpack.c.l.b16 %v3287
          %v3380 = vunpack.c.h.b16 %v3287
          %v3381 = vunpack.c.l.b16 %v3288
          %v3382 = vunpack.c.h.b16 %v3288
          %v3383 = vunpack.c.l.b16 %v3289
          %v3384 = vunpack.c.h.b16 %v3289
          %v3385 = vunpack.c.l.b16 %v3290
          %v3386 = vunpack.c.h.b16 %v3290
          %v3387 = vunpack.c.l.b16 %v3291
          %v3388 = vunpack.c.h.b16 %v3291
          %v3389 = vunpack.c.l.b16 %v3292
          %v3390 = vunpack.c.h.b16 %v3292
          %v3391 = vunpack.c.l.b16 %v3293
          %v3392 = vunpack.c.h.b16 %v3293
          %v3393 = vunpack.c.l.b16 %v3294
          %v3394 = vunpack.c.h.b16 %v3294
          %v3395 = vunpack.c.l.b16 %v3295
          %v3396 = vunpack.c.h.b16 %v3295
          %v3397 = vunpack.c.l.b16 %v3296
          %v3398 = vunpack.c.h.b16 %v3296
          %v3399 = vpack.c.b16 %v3337, %v3335
          %v3400 = vpack.c.b16 %v3338, %v3336
          %v3401 = vpack.c.b16 %v3341, %v3339
          %v3402 = vpack.c.b16 %v3342, %v3340
          %v3403 = vpack.c.b16 %v3345, %v3343
          %v3404 = vpack.c.b16 %v3346, %v3344
          %v3405 = vpack.c.b16 %v3349, %v3347
          %v3406 = vpack.c.b16 %v3350, %v3348
          %v3407 = vpack.c.b16 %v3353, %v3351
          %v3408 = vpack.c.b16 %v3354, %v3352
          %v3409 = vpack.c.b16 %v3357, %v3355
          %v3410 = vpack.c.b16 %v3358, %v3356
          %v3411 = vpack.c.b16 %v3361, %v3359
          %v3412 = vpack.c.b16 %v3362, %v3360
          %v3413 = vpack.c.b16 %v3365, %v3363
          %v3414 = vpack.c.b16 %v3366, %v3364
          %v3415 = vpack.c.b16 %v3369, %v3367
          %v3416 = vpack.c.b16 %v3370, %v3368
          %v3417 = vpack.c.b16 %v3373, %v3371
          %v3418 = vpack.c.b16 %v3374, %v3372
          %v3419 = vpack.c.b16 %v3377, %v3375
          %v3420 = vpack.c.b16 %v3378, %v3376
          %v3421 = vpack.c.b16 %v3381, %v3379
          %v3422 = vpack.c.b16 %v3382, %v3380
          %v3423 = vpack.c.b16 %v3385, %v3383
          %v3424 = vpack.c.b16 %v3386, %v3384
          %v3425 = vpack.c.b16 %v3389, %v3387
          %v3426 = vpack.c.b16 %v3390, %v3388
          %v3427 = vpack.c.b16 %v3393, %v3391
          %v3428 = vpack.c.b16 %v3394, %v3392
          %v3429 = vpack.c.b16 %v3397, %v3395
          %v3430 = vpack.c.b16 %v3398, %v3396
          %3463 = vmatpush.bf16.msra.mxu0 %v3413
          %3464 = vmatpush.bf16.msra.mxu0 %v3411
          %3465 = vmatpush.bf16.msra.mxu0 %v3409
          %3466 = vmatpush.bf16.msra.mxu0 %v3407
          %3467 = vmatpush.bf16.msra.mxu0 %v3405
          %3468 = vmatpush.bf16.msra.mxu0 %v3403
          %3469 = vmatpush.bf16.msra.mxu0 %v3401
          %3470 = vmatpush.bf16.msra.mxu0 %v3399
          %3471 = vmatmul.bf16.gmra.mxu0 %v3261
          %v3472 = vpop.f32.mrf.mxu0
          %v3473 = vadd.f32 %v3299, %v3472
          %v3474 = vpop.f32.mrf.mxu0
          %v3475 = vadd.f32 %v3299, %v3474
          %3476 = vmatmul.bf16.gmra.mxu0 %v3263
          %v3477 = vpop.f32.mrf.mxu0
          %v3478 = vadd.f32 %v3299, %v3477
          %v3479 = vpop.f32.mrf.mxu0
          %v3480 = vadd.f32 %v3299, %v3479
          %3481 = vdwg.mxu0
          %3482 = vmatpush.bf16.msra.mxu0 %v3429
          %3483 = vmatpush.bf16.msra.mxu0 %v3427
          %3484 = vmatpush.bf16.msra.mxu0 %v3425
          %3485 = vmatpush.bf16.msra.mxu0 %v3423
          %3486 = vmatpush.bf16.msra.mxu0 %v3421
          %3487 = vmatpush.bf16.msra.mxu0 %v3419
          %3488 = vmatpush.bf16.msra.mxu0 %v3417
          %3489 = vmatpush.bf16.msra.mxu0 %v3415
          %3490 = vmatmul.bf16.gmra.mxu0 %v3262
          %v3491 = vpop.f32.mrf.mxu0
          %v3492 = vadd.f32 %v3473, %v3491
          %v3493 = vpop.f32.mrf.mxu0
          %v3494 = vadd.f32 %v3475, %v3493
          %3495 = vmatmul.bf16.gmra.mxu0 %v3264
          %v3496 = vpop.f32.mrf.mxu0
          %v3497 = vadd.f32 %v3478, %v3496
          %v3498 = vpop.f32.mrf.mxu0
          %v3499 = vadd.f32 %v3480, %v3498
          %3500 = vdwg.mxu0
          %3501 = vmatpush.bf16.msra.mxu0 %v3414
          %3502 = vmatpush.bf16.msra.mxu0 %v3412
          %3503 = vmatpush.bf16.msra.mxu0 %v3410
          %3504 = vmatpush.bf16.msra.mxu0 %v3408
          %3505 = vmatpush.bf16.msra.mxu0 %v3406
          %3506 = vmatpush.bf16.msra.mxu0 %v3404
          %3507 = vmatpush.bf16.msra.mxu0 %v3402
          %3508 = vmatpush.bf16.msra.mxu0 %v3400
          %3509 = vmatmul.bf16.gmra.mxu0 %v3261
          %v3510 = vpop.f32.mrf.mxu0
          %v3511 = vadd.f32 %v3300, %v3510
          %v3512 = vpop.f32.mrf.mxu0
          %v3513 = vadd.f32 %v3300, %v3512
          %3514 = vmatmul.bf16.gmra.mxu0 %v3263
          %v3515 = vpop.f32.mrf.mxu0
          %v3516 = vadd.f32 %v3300, %v3515
          %v3517 = vpop.f32.mrf.mxu0
          %v3518 = vadd.f32 %v3300, %v3517
          %3519 = vdwg.mxu0
          %3520 = vmatpush.bf16.msra.mxu0 %v3430
          %3521 = vmatpush.bf16.msra.mxu0 %v3428
          %3522 = vmatpush.bf16.msra.mxu0 %v3426
          %3523 = vmatpush.bf16.msra.mxu0 %v3424
          %3524 = vmatpush.bf16.msra.mxu0 %v3422
          %3525 = vmatpush.bf16.msra.mxu0 %v3420
          %3526 = vmatpush.bf16.msra.mxu0 %v3418
          %3527 = vmatpush.bf16.msra.mxu0 %v3416
          %3528 = vmatmul.bf16.gmra.mxu0 %v3262
          %v3529 = vpop.f32.mrf.mxu0
          %v3530 = vadd.f32 %v3511, %v3529
          %v3531 = vpop.f32.mrf.mxu0
          %v3532 = vadd.f32 %v3513, %v3531
          %3533 = vmatmul.bf16.gmra.mxu0 %v3264
          %v3534 = vpop.f32.mrf.mxu0
          %v3535 = vadd.f32 %v3516, %v3534
          %v3536 = vpop.f32.mrf.mxu0
          %v3537 = vadd.f32 %v3518, %v3536
          %3538 = vdwg.mxu0
          %v3539 = vadd.f32 %v1321, %v3492
          %v3540 = vadd.f32 %v1322, %v3530
          %v3541 = vadd.f32 %v1323, %v3494
          %v3542 = vadd.f32 %v1324, %v3532
          %v3543 = vadd.f32 %v1325, %v3497
          %v3544 = vadd.f32 %v1326, %v3535
          %v3545 = vadd.f32 %v1327, %v3499
          %v3546 = vadd.f32 %v1328, %v3537
          %v3547 = vld [vmem:[%s1070] sm:$0x3]
          %v3548 = vld [vmem:[%s1080] sm:$0x3]
          %v3549 = vadd.f32 %v3539, %v3540
          %3550 = vadd.xlane.f32.xlu0 %v3549
          %v3551 = vpop.xlane.xlu0 %3550
          %v3552 = vadd.f32 %v3541, %v3542
          %3553 = vadd.xlane.f32.xlu0 %v3552
          %v3554 = vpop.xlane.xlu0 %3553
          %v3555 = vadd.f32 %v3543, %v3544
          %3556 = vadd.xlane.f32.xlu0 %v3555
          %v3557 = vpop.xlane.xlu0 %3556
          %v3558 = vadd.f32 %v3545, %v3546
          %3559 = vadd.xlane.f32.xlu0 %v3558
          %v3560 = vpop.xlane.xlu0 %3559
          %v3561 = vrcp.pop 256.0
          %v3562 = vmul.f32 256.0, %v3561
          %v3563 = vsub.f32 1.0, %v3562
          %v3564 = vmul.f32 %v3561, %v3563
          %v3565 = vadd.f32 %v3561, %v3564
          %vm3566 = vweird.f32 %v3561
          %v3567 = vsel %vm3566, %v3561, %v3565
          %v3568 = vmul.f32 %v3551, %v3567
          %v3569 = vmul.f32 %v3554, %v3567
          %v3570 = vmul.f32 %v3557, %v3567
          %v3571 = vmul.f32 %v3560, %v3567
          %v3572 = vsub.f32 %v3539, %v3568
          %v3573 = vsub.f32 %v3540, %v3568
          %v3574 = vsub.f32 %v3541, %v3569
          %v3575 = vsub.f32 %v3542, %v3569
          %v3576 = vsub.f32 %v3543, %v3570
          %v3577 = vsub.f32 %v3544, %v3570
          %v3578 = vsub.f32 %v3545, %v3571
          %v3579 = vsub.f32 %v3546, %v3571
          %v3580 = vmul.f32 %v3572, %v3572
          %v3581 = vmul.f32 %v3573, %v3573
          %v3582 = vmul.f32 %v3574, %v3574
          %v3583 = vmul.f32 %v3575, %v3575
          %v3584 = vmul.f32 %v3576, %v3576
          %v3585 = vmul.f32 %v3577, %v3577
          %v3586 = vmul.f32 %v3578, %v3578
          %v3587 = vmul.f32 %v3579, %v3579
          %v3588 = vadd.f32 %v3580, %v3581
          %3589 = vadd.xlane.f32.xlu0 %v3588
          %v3590 = vpop.xlane.xlu0 %3589
          %v3591 = vadd.f32 %v3582, %v3583
          %3592 = vadd.xlane.f32.xlu0 %v3591
          %v3593 = vpop.xlane.xlu0 %3592
          %v3594 = vadd.f32 %v3584, %v3585
          %3595 = vadd.xlane.f32.xlu0 %v3594
          %v3596 = vpop.xlane.xlu0 %3595
          %v3597 = vadd.f32 %v3586, %v3587
          %3598 = vadd.xlane.f32.xlu0 %v3597
          %v3599 = vpop.xlane.xlu0 %3598
          %v3600 = vmul.f32 %v3590, %v3567
          %v3601 = vmul.f32 %v3593, %v3567
          %v3602 = vmul.f32 %v3596, %v3567
          %v3603 = vmul.f32 %v3599, %v3567
          %v3604 = vadd.f32 %v3600, 1e-05
          %v3605 = vadd.f32 %v3601, 1e-05
          %v3606 = vadd.f32 %v3602, 1e-05
          %v3607 = vadd.f32 %v3603, 1e-05
          %v3608 = vrsqrt.pop %v3604
          %v3609 = vmul.f32 %v3608, %v3604
          %v3610 = vmul.f32 %v3609, %v3608
          %v3611 = vmul.f32 0.5, %v3610
          %v3612 = vsub.f32 1.5, %v3611
          %v3613 = vmul.f32 %v3608, %v3612
          %vm3614 = vweird.f32 %v3604
          %vm3615 = vweird.f32 %v3608
          %vm3616 = vmor %vm3614, %vm3615
          %v3617 = vsel %vm3616, %v3608, %v3613
          %v3618 = vrsqrt.pop %v3605
          %v3619 = vmul.f32 %v3618, %v3605
          %v3620 = vmul.f32 %v3619, %v3618
          %v3621 = vmul.f32 0.5, %v3620
          %v3622 = vsub.f32 1.5, %v3621
          %v3623 = vmul.f32 %v3618, %v3622
          %vm3624 = vweird.f32 %v3605
          %vm3625 = vweird.f32 %v3618
          %vm3626 = vmor %vm3624, %vm3625
          %v3627 = vsel %vm3626, %v3618, %v3623
          %v3628 = vrsqrt.pop %v3606
          %v3629 = vmul.f32 %v3628, %v3606
          %v3630 = vmul.f32 %v3629, %v3628
          %v3631 = vmul.f32 0.5, %v3630
          %v3632 = vsub.f32 1.5, %v3631
          %v3633 = vmul.f32 %v3628, %v3632
          %vm3634 = vweird.f32 %v3606
          %vm3635 = vweird.f32 %v3628
          %vm3636 = vmor %vm3634, %vm3635
          %v3637 = vsel %vm3636, %v3628, %v3633
          %v3638 = vrsqrt.pop %v3607
          %v3639 = vmul.f32 %v3638, %v3607
          %v3640 = vmul.f32 %v3639, %v3638
          %v3641 = vmul.f32 0.5, %v3640
          %v3642 = vsub.f32 1.5, %v3641
          %v3643 = vmul.f32 %v3638, %v3642
          %vm3644 = vweird.f32 %v3607
          %vm3645 = vweird.f32 %v3638
          %vm3646 = vmor %vm3644, %vm3645
          %v3647 = vsel %vm3646, %v3638, %v3643
          %v3648 = vmul.f32 %v3572, %v3617
          %v3649 = vmul.f32 %v3573, %v3617
          %v3650 = vmul.f32 %v3574, %v3627
          %v3651 = vmul.f32 %v3575, %v3627
          %v3652 = vmul.f32 %v3576, %v3637
          %v3653 = vmul.f32 %v3577, %v3637
          %v3654 = vmul.f32 %v3578, %v3647
          %v3655 = vmul.f32 %v3579, %v3647
          %v3657 = vperm.slane %v3547, 0
          %v3658 = vperm.slane %v3547, 1
          %v3661 = vmul.f32 %v3648, %v3657
          %v3662 = vmul.f32 %v3649, %v3658
          %v3663 = vmul.f32 %v3650, %v3657
          %v3664 = vmul.f32 %v3651, %v3658
          %v3665 = vmul.f32 %v3652, %v3657
          %v3666 = vmul.f32 %v3653, %v3658
          %v3667 = vmul.f32 %v3654, %v3657
          %v3668 = vmul.f32 %v3655, %v3658
          %v3670 = vperm.slane %v3548, 0
          %v3671 = vperm.slane %v3548, 1
          %v3674 = vadd.f32 %v3661, %v3670
          %v3675 = vadd.f32 %v3662, %v3671
          %v3676 = vadd.f32 %v3663, %v3670
          %v3677 = vadd.f32 %v3664, %v3671
          %v3678 = vadd.f32 %v3665, %v3670
          %v3679 = vadd.f32 %v3666, %v3671
          %v3680 = vadd.f32 %v3667, %v3670
          %v3681 = vadd.f32 %v3668, %v3671
          %v3682 = vpack.c.bf16 %v3676, %v3674
          %v3683 = vpack.c.bf16 %v3677, %v3675
          %v3684 = vpack.c.bf16 %v3680, %v3678
          %v3685 = vpack.c.bf16 %v3681, %v3679
          %v3686 = vld [vmem:[%s1090] sm:$0xff]
          %v3687 = vld [vmem:[%s1090 + $0x8] sm:$0xff]
          %v3688 = vld [vmem:[%s1090 + $0x10] sm:$0xff]
          %v3689 = vld [vmem:[%s1090 + $0x18] sm:$0xff]
          %v3690 = vld [vmem:[%s1090 + $0x20] sm:$0xff]
          %v3691 = vld [vmem:[%s1090 + $0x28] sm:$0xff]
          %v3692 = vld [vmem:[%s1090 + $0x30] sm:$0xff]
          %v3693 = vld [vmem:[%s1090 + $0x38] sm:$0xff]
          %v3694 = vld [vmem:[%s1090 + $0x40] sm:$0xff]
          %v3695 = vld [vmem:[%s1090 + $0x48] sm:$0xff]
          %v3696 = vld [vmem:[%s1090 + $0x50] sm:$0xff]
          %v3697 = vld [vmem:[%s1090 + $0x58] sm:$0xff]
          %v3698 = vld [vmem:[%s1090 + $0x60] sm:$0xff]
          %v3699 = vld [vmem:[%s1090 + $0x68] sm:$0xff]
          %v3700 = vld [vmem:[%s1090 + $0x70] sm:$0xff]
          %v3701 = vld [vmem:[%s1090 + $0x78] sm:$0xff]
          %v3702 = vld [vmem:[%s1090 + $0x80] sm:$0xff]
          %v3703 = vld [vmem:[%s1090 + $0x88] sm:$0xff]
          %v3704 = vld [vmem:[%s1090 + $0x90] sm:$0xff]
          %v3705 = vld [vmem:[%s1090 + $0x98] sm:$0xff]
          %v3706 = vld [vmem:[%s1090 + $0xa0] sm:$0xff]
          %v3707 = vld [vmem:[%s1090 + $0xa8] sm:$0xff]
          %v3708 = vld [vmem:[%s1090 + $0xb0] sm:$0xff]
          %v3709 = vld [vmem:[%s1090 + $0xb8] sm:$0xff]
          %v3710 = vld [vmem:[%s1090 + $0xc0] sm:$0xff]
          %v3711 = vld [vmem:[%s1090 + $0xc8] sm:$0xff]
          %v3712 = vld [vmem:[%s1090 + $0xd0] sm:$0xff]
          %v3713 = vld [vmem:[%s1090 + $0xd8] sm:$0xff]
          %v3714 = vld [vmem:[%s1090 + $0xe0] sm:$0xff]
          %v3715 = vld [vmem:[%s1090 + $0xe8] sm:$0xff]
          %v3716 = vld [vmem:[%s1090 + $0xf0] sm:$0xff]
          %v3717 = vld [vmem:[%s1090 + $0xf8] sm:$0xff]
          %v3718 = vld [vmem:[%s1090 + $0x100] sm:$0xff]
          %v3719 = vld [vmem:[%s1090 + $0x108] sm:$0xff]
          %v3720 = vld [vmem:[%s1090 + $0x110] sm:$0xff]
          %v3721 = vld [vmem:[%s1090 + $0x118] sm:$0xff]
          %v3722 = vld [vmem:[%s1090 + $0x120] sm:$0xff]
          %v3723 = vld [vmem:[%s1090 + $0x128] sm:$0xff]
          %v3724 = vld [vmem:[%s1090 + $0x130] sm:$0xff]
          %v3725 = vld [vmem:[%s1090 + $0x138] sm:$0xff]
          %v3726 = vld [vmem:[%s1090 + $0x140] sm:$0xff]
          %v3727 = vld [vmem:[%s1090 + $0x148] sm:$0xff]
          %v3728 = vld [vmem:[%s1090 + $0x150] sm:$0xff]
          %v3729 = vld [vmem:[%s1090 + $0x158] sm:$0xff]
          %v3730 = vld [vmem:[%s1090 + $0x160] sm:$0xff]
          %v3731 = vld [vmem:[%s1090 + $0x168] sm:$0xff]
          %v3732 = vld [vmem:[%s1090 + $0x170] sm:$0xff]
          %v3733 = vld [vmem:[%s1090 + $0x178] sm:$0xff]
          %v3734 = vld [vmem:[%s1090 + $0x180] sm:$0xff]
          %v3735 = vld [vmem:[%s1090 + $0x188] sm:$0xff]
          %v3736 = vld [vmem:[%s1090 + $0x190] sm:$0xff]
          %v3737 = vld [vmem:[%s1090 + $0x198] sm:$0xff]
          %v3738 = vld [vmem:[%s1090 + $0x1a0] sm:$0xff]
          %v3739 = vld [vmem:[%s1090 + $0x1a8] sm:$0xff]
          %v3740 = vld [vmem:[%s1090 + $0x1b0] sm:$0xff]
          %v3741 = vld [vmem:[%s1090 + $0x1b8] sm:$0xff]
          %v3742 = vld [vmem:[%s1090 + $0x1c0] sm:$0xff]
          %v3743 = vld [vmem:[%s1090 + $0x1c8] sm:$0xff]
          %v3744 = vld [vmem:[%s1090 + $0x1d0] sm:$0xff]
          %v3745 = vld [vmem:[%s1090 + $0x1d8] sm:$0xff]
          %v3746 = vld [vmem:[%s1090 + $0x1e0] sm:$0xff]
          %v3747 = vld [vmem:[%s1090 + $0x1e8] sm:$0xff]
          %v3748 = vld [vmem:[%s1090 + $0x1f0] sm:$0xff]
          %v3749 = vld [vmem:[%s1090 + $0x1f8] sm:$0xff]
          %v3750 = vld [vmem:[%s1280] sm:$0xf]
          %v3752 = vperm.slane %v3750, 0
          %v3753 = vperm.slane %v3750, 1
          %v3754 = vperm.slane %v3750, 2
          %v3755 = vperm.slane %v3750, 3
          %v3824 = vunpack.c.l.b16 %v3686
          %v3825 = vunpack.c.h.b16 %v3686
          %v3826 = vunpack.c.l.b16 %v3687
          %v3827 = vunpack.c.h.b16 %v3687
          %v3828 = vunpack.c.l.b16 %v3688
          %v3829 = vunpack.c.h.b16 %v3688
          %v3830 = vunpack.c.l.b16 %v3689
          %v3831 = vunpack.c.h.b16 %v3689
          %v3832 = vunpack.c.l.b16 %v3690
          %v3833 = vunpack.c.h.b16 %v3690
          %v3834 = vunpack.c.l.b16 %v3691
          %v3835 = vunpack.c.h.b16 %v3691
          %v3836 = vunpack.c.l.b16 %v3692
          %v3837 = vunpack.c.h.b16 %v3692
          %v3838 = vunpack.c.l.b16 %v3693
          %v3839 = vunpack.c.h.b16 %v3693
          %v3840 = vunpack.c.l.b16 %v3694
          %v3841 = vunpack.c.h.b16 %v3694
          %v3842 = vunpack.c.l.b16 %v3695
          %v3843 = vunpack.c.h.b16 %v3695
          %v3844 = vunpack.c.l.b16 %v3696
          %v3845 = vunpack.c.h.b16 %v3696
          %v3846 = vunpack.c.l.b16 %v3697
          %v3847 = vunpack.c.h.b16 %v3697
          %v3848 = vunpack.c.l.b16 %v3698
          %v3849 = vunpack.c.h.b16 %v3698
          %v3850 = vunpack.c.l.b16 %v3699
          %v3851 = vunpack.c.h.b16 %v3699
          %v3852 = vunpack.c.l.b16 %v3700
          %v3853 = vunpack.c.h.b16 %v3700
          %v3854 = vunpack.c.l.b16 %v3701
          %v3855 = vunpack.c.h.b16 %v3701
          %v3856 = vunpack.c.l.b16 %v3702
          %v3857 = vunpack.c.h.b16 %v3702
          %v3858 = vunpack.c.l.b16 %v3703
          %v3859 = vunpack.c.h.b16 %v3703
          %v3860 = vunpack.c.l.b16 %v3704
          %v3861 = vunpack.c.h.b16 %v3704
          %v3862 = vunpack.c.l.b16 %v3705
          %v3863 = vunpack.c.h.b16 %v3705
          %v3864 = vunpack.c.l.b16 %v3706
          %v3865 = vunpack.c.h.b16 %v3706
          %v3866 = vunpack.c.l.b16 %v3707
          %v3867 = vunpack.c.h.b16 %v3707
          %v3868 = vunpack.c.l.b16 %v3708
          %v3869 = vunpack.c.h.b16 %v3708
          %v3870 = vunpack.c.l.b16 %v3709
          %v3871 = vunpack.c.h.b16 %v3709
          %v3872 = vunpack.c.l.b16 %v3710
          %v3873 = vunpack.c.h.b16 %v3710
          %v3874 = vunpack.c.l.b16 %v3711
          %v3875 = vunpack.c.h.b16 %v3711
          %v3876 = vunpack.c.l.b16 %v3712
          %v3877 = vunpack.c.h.b16 %v3712
          %v3878 = vunpack.c.l.b16 %v3713
          %v3879 = vunpack.c.h.b16 %v3713
          %v3880 = vunpack.c.l.b16 %v3714
          %v3881 = vunpack.c.h.b16 %v3714
          %v3882 = vunpack.c.l.b16 %v3715
          %v3883 = vunpack.c.h.b16 %v3715
          %v3884 = vunpack.c.l.b16 %v3716
          %v3885 = vunpack.c.h.b16 %v3716
          %v3886 = vunpack.c.l.b16 %v3717
          %v3887 = vunpack.c.h.b16 %v3717
          %v3888 = vunpack.c.l.b16 %v3718
          %v3889 = vunpack.c.h.b16 %v3718
          %v3890 = vunpack.c.l.b16 %v3719
          %v3891 = vunpack.c.h.b16 %v3719
          %v3892 = vunpack.c.l.b16 %v3720
          %v3893 = vunpack.c.h.b16 %v3720
          %v3894 = vunpack.c.l.b16 %v3721
          %v3895 = vunpack.c.h.b16 %v3721
          %v3896 = vunpack.c.l.b16 %v3722
          %v3897 = vunpack.c.h.b16 %v3722
          %v3898 = vunpack.c.l.b16 %v3723
          %v3899 = vunpack.c.h.b16 %v3723
          %v3900 = vunpack.c.l.b16 %v3724
          %v3901 = vunpack.c.h.b16 %v3724
          %v3902 = vunpack.c.l.b16 %v3725
          %v3903 = vunpack.c.h.b16 %v3725
          %v3904 = vunpack.c.l.b16 %v3726
          %v3905 = vunpack.c.h.b16 %v3726
          %v3906 = vunpack.c.l.b16 %v3727
          %v3907 = vunpack.c.h.b16 %v3727
          %v3908 = vunpack.c.l.b16 %v3728
          %v3909 = vunpack.c.h.b16 %v3728
          %v3910 = vunpack.c.l.b16 %v3729
          %v3911 = vunpack.c.h.b16 %v3729
          %v3912 = vunpack.c.l.b16 %v3730
          %v3913 = vunpack.c.h.b16 %v3730
          %v3914 = vunpack.c.l.b16 %v3731
          %v3915 = vunpack.c.h.b16 %v3731
          %v3916 = vunpack.c.l.b16 %v3732
          %v3917 = vunpack.c.h.b16 %v3732
          %v3918 = vunpack.c.l.b16 %v3733
          %v3919 = vunpack.c.h.b16 %v3733
          %v3920 = vunpack.c.l.b16 %v3734
          %v3921 = vunpack.c.h.b16 %v3734
          %v3922 = vunpack.c.l.b16 %v3735
          %v3923 = vunpack.c.h.b16 %v3735
          %v3924 = vunpack.c.l.b16 %v3736
          %v3925 = vunpack.c.h.b16 %v3736
          %v3926 = vunpack.c.l.b16 %v3737
          %v3927 = vunpack.c.h.b16 %v3737
          %v3928 = vunpack.c.l.b16 %v3738
          %v3929 = vunpack.c.h.b16 %v3738
          %v3930 = vunpack.c.l.b16 %v3739
          %v3931 = vunpack.c.h.b16 %v3739
          %v3932 = vunpack.c.l.b16 %v3740
          %v3933 = vunpack.c.h.b16 %v3740
          %v3934 = vunpack.c.l.b16 %v3741
          %v3935 = vunpack.c.h.b16 %v3741
          %v3936 = vunpack.c.l.b16 %v3742
          %v3937 = vunpack.c.h.b16 %v3742
          %v3938 = vunpack.c.l.b16 %v3743
          %v3939 = vunpack.c.h.b16 %v3743
          %v3940 = vunpack.c.l.b16 %v3744
          %v3941 = vunpack.c.h.b16 %v3744
          %v3942 = vunpack.c.l.b16 %v3745
          %v3943 = vunpack.c.h.b16 %v3745
          %v3944 = vunpack.c.l.b16 %v3746
          %v3945 = vunpack.c.h.b16 %v3746
          %v3946 = vunpack.c.l.b16 %v3747
          %v3947 = vunpack.c.h.b16 %v3747
          %v3948 = vunpack.c.l.b16 %v3748
          %v3949 = vunpack.c.h.b16 %v3748
          %v3950 = vunpack.c.l.b16 %v3749
          %v3951 = vunpack.c.h.b16 %v3749
          %v3952 = vpack.c.b16 %v3828, %v3824
          %v3953 = vpack.c.b16 %v3829, %v3825
          %v3954 = vpack.c.b16 %v3830, %v3826
          %v3955 = vpack.c.b16 %v3831, %v3827
          %v3956 = vpack.c.b16 %v3836, %v3832
          %v3957 = vpack.c.b16 %v3837, %v3833
          %v3958 = vpack.c.b16 %v3838, %v3834
          %v3959 = vpack.c.b16 %v3839, %v3835
          %v3960 = vpack.c.b16 %v3844, %v3840
          %v3961 = vpack.c.b16 %v3845, %v3841
          %v3962 = vpack.c.b16 %v3846, %v3842
          %v3963 = vpack.c.b16 %v3847, %v3843
          %v3964 = vpack.c.b16 %v3852, %v3848
          %v3965 = vpack.c.b16 %v3853, %v3849
          %v3966 = vpack.c.b16 %v3854, %v3850
          %v3967 = vpack.c.b16 %v3855, %v3851
          %v3968 = vpack.c.b16 %v3860, %v3856
          %v3969 = vpack.c.b16 %v3861, %v3857
          %v3970 = vpack.c.b16 %v3862, %v3858
          %v3971 = vpack.c.b16 %v3863, %v3859
          %v3972 = vpack.c.b16 %v3868, %v3864
          %v3973 = vpack.c.b16 %v3869, %v3865
          %v3974 = vpack.c.b16 %v3870, %v3866
          %v3975 = vpack.c.b16 %v3871, %v3867
          %v3976 = vpack.c.b16 %v3876, %v3872
          %v3977 = vpack.c.b16 %v3877, %v3873
          %v3978 = vpack.c.b16 %v3878, %v3874
          %v3979 = vpack.c.b16 %v3879, %v3875
          %v3980 = vpack.c.b16 %v3884, %v3880
          %v3981 = vpack.c.b16 %v3885, %v3881
          %v3982 = vpack.c.b16 %v3886, %v3882
          %v3983 = vpack.c.b16 %v3887, %v3883
          %v3984 = vpack.c.b16 %v3892, %v3888
          %v3985 = vpack.c.b16 %v3893, %v3889
          %v3986 = vpack.c.b16 %v3894, %v3890
          %v3987 = vpack.c.b16 %v3895, %v3891
          %v3988 = vpack.c.b16 %v3900, %v3896
          %v3989 = vpack.c.b16 %v3901, %v3897
          %v3990 = vpack.c.b16 %v3902, %v3898
          %v3991 = vpack.c.b16 %v3903, %v3899
          %v3992 = vpack.c.b16 %v3908, %v3904
          %v3993 = vpack.c.b16 %v3909, %v3905
          %v3994 = vpack.c.b16 %v3910, %v3906
          %v3995 = vpack.c.b16 %v3911, %v3907
          %v3996 = vpack.c.b16 %v3916, %v3912
          %v3997 = vpack.c.b16 %v3917, %v3913
          %v3998 = vpack.c.b16 %v3918, %v3914
          %v3999 = vpack.c.b16 %v3919, %v3915
          %v4000 = vpack.c.b16 %v3924, %v3920
          %v4001 = vpack.c.b16 %v3925, %v3921
          %v4002 = vpack.c.b16 %v3926, %v3922
          %v4003 = vpack.c.b16 %v3927, %v3923
          %v4004 = vpack.c.b16 %v3932, %v3928
          %v4005 = vpack.c.b16 %v3933, %v3929
          %v4006 = vpack.c.b16 %v3934, %v3930
          %v4007 = vpack.c.b16 %v3935, %v3931
          %v4008 = vpack.c.b16 %v3940, %v3936
          %v4009 = vpack.c.b16 %v3941, %v3937
          %v4010 = vpack.c.b16 %v3942, %v3938
          %v4011 = vpack.c.b16 %v3943, %v3939
          %v4012 = vpack.c.b16 %v3948, %v3944
          %v4013 = vpack.c.b16 %v3949, %v3945
          %v4014 = vpack.c.b16 %v3950, %v3946
          %v4015 = vpack.c.b16 %v3951, %v3947
          %4080 = vmatpush.bf16.msra.mxu0 %v3980
          %4081 = vmatpush.bf16.msra.mxu0 %v3976
          %4082 = vmatpush.bf16.msra.mxu0 %v3972
          %4083 = vmatpush.bf16.msra.mxu0 %v3968
          %4084 = vmatpush.bf16.msra.mxu0 %v3964
          %4085 = vmatpush.bf16.msra.mxu0 %v3960
          %4086 = vmatpush.bf16.msra.mxu0 %v3956
          %4087 = vmatpush.bf16.msra.mxu0 %v3952
          %4088 = vmatmul.bf16.gmra.mxu0 %v3682
          %v4089 = vpop.f32.mrf.mxu0
          %v4090 = vadd.f32 %v3752, %v4089
          %v4091 = vpop.f32.mrf.mxu0
          %v4092 = vadd.f32 %v3752, %v4091
          %4093 = vmatmul.bf16.gmra.mxu0 %v3684
          %v4094 = vpop.f32.mrf.mxu0
          %v4095 = vadd.f32 %v3752, %v4094
          %v4096 = vpop.f32.mrf.mxu0
          %v4097 = vadd.f32 %v3752, %v4096
          %4098 = vdwg.mxu0
          %4099 = vmatpush.bf16.msra.mxu0 %v4012
          %4100 = vmatpush.bf16.msra.mxu0 %v4008
          %4101 = vmatpush.bf16.msra.mxu0 %v4004
          %4102 = vmatpush.bf16.msra.mxu0 %v4000
          %4103 = vmatpush.bf16.msra.mxu0 %v3996
          %4104 = vmatpush.bf16.msra.mxu0 %v3992
          %4105 = vmatpush.bf16.msra.mxu0 %v3988
          %4106 = vmatpush.bf16.msra.mxu0 %v3984
          %4107 = vmatmul.bf16.gmra.mxu0 %v3683
          %v4108 = vpop.f32.mrf.mxu0
          %v4109 = vadd.f32 %v4090, %v4108
          %v4110 = vpop.f32.mrf.mxu0
          %v4111 = vadd.f32 %v4092, %v4110
          %4112 = vmatmul.bf16.gmra.mxu0 %v3685
          %v4113 = vpop.f32.mrf.mxu0
          %v4114 = vadd.f32 %v4095, %v4113
          %v4115 = vpop.f32.mrf.mxu0
          %v4116 = vadd.f32 %v4097, %v4115
          %4117 = vdwg.mxu0
          %4118 = vmatpush.bf16.msra.mxu0 %v3981
          %4119 = vmatpush.bf16.msra.mxu0 %v3977
          %4120 = vmatpush.bf16.msra.mxu0 %v3973
          %4121 = vmatpush.bf16.msra.mxu0 %v3969
          %4122 = vmatpush.bf16.msra.mxu0 %v3965
          %4123 = vmatpush.bf16.msra.mxu0 %v3961
          %4124 = vmatpush.bf16.msra.mxu0 %v3957
          %4125 = vmatpush.bf16.msra.mxu0 %v3953
          %4126 = vmatmul.bf16.gmra.mxu0 %v3682
          %v4127 = vpop.f32.mrf.mxu0
          %v4128 = vadd.f32 %v3753, %v4127
          %v4129 = vpop.f32.mrf.mxu0
          %v4130 = vadd.f32 %v3753, %v4129
          %4131 = vmatmul.bf16.gmra.mxu0 %v3684
          %v4132 = vpop.f32.mrf.mxu0
          %v4133 = vadd.f32 %v3753, %v4132
          %v4134 = vpop.f32.mrf.mxu0
          %v4135 = vadd.f32 %v3753, %v4134
          %4136 = vdwg.mxu0
          %4137 = vmatpush.bf16.msra.mxu0 %v4013
          %4138 = vmatpush.bf16.msra.mxu0 %v4009
          %4139 = vmatpush.bf16.msra.mxu0 %v4005
          %4140 = vmatpush.bf16.msra.mxu0 %v4001
          %4141 = vmatpush.bf16.msra.mxu0 %v3997
          %4142 = vmatpush.bf16.msra.mxu0 %v3993
          %4143 = vmatpush.bf16.msra.mxu0 %v3989
          %4144 = vmatpush.bf16.msra.mxu0 %v3985
          %4145 = vmatmul.bf16.gmra.mxu0 %v3683
          %v4146 = vpop.f32.mrf.mxu0
          %v4147 = vadd.f32 %v4128, %v4146
          %v4148 = vpop.f32.mrf.mxu0
          %v4149 = vadd.f32 %v4130, %v4148
          %4150 = vmatmul.bf16.gmra.mxu0 %v3685
          %v4151 = vpop.f32.mrf.mxu0
          %v4152 = vadd.f32 %v4133, %v4151
          %v4153 = vpop.f32.mrf.mxu0
          %v4154 = vadd.f32 %v4135, %v4153
          %4155 = vdwg.mxu0
          %4156 = vmatpush.bf16.msra.mxu0 %v3982
          %4157 = vmatpush.bf16.msra.mxu0 %v3978
          %4158 = vmatpush.bf16.msra.mxu0 %v3974
          %4159 = vmatpush.bf16.msra.mxu0 %v3970
          %4160 = vmatpush.bf16.msra.mxu0 %v3966
          %4161 = vmatpush.bf16.msra.mxu0 %v3962
          %4162 = vmatpush.bf16.msra.mxu0 %v3958
          %4163 = vmatpush.bf16.msra.mxu0 %v3954
          %4164 = vmatmul.bf16.gmra.mxu0 %v3682
          %v4165 = vpop.f32.mrf.mxu0
          %v4166 = vadd.f32 %v3754, %v4165
          %v4167 = vpop.f32.mrf.mxu0
          %v4168 = vadd.f32 %v3754, %v4167
          %4169 = vmatmul.bf16.gmra.mxu0 %v3684
          %v4170 = vpop.f32.mrf.mxu0
          %v4171 = vadd.f32 %v3754, %v4170
          %v4172 = vpop.f32.mrf.mxu0
          %v4173 = vadd.f32 %v3754, %v4172
          %4174 = vdwg.mxu0
          %4175 = vmatpush.bf16.msra.mxu0 %v4014
          %4176 = vmatpush.bf16.msra.mxu0 %v4010
          %4177 = vmatpush.bf16.msra.mxu0 %v4006
          %4178 = vmatpush.bf16.msra.mxu0 %v4002
          %4179 = vmatpush.bf16.msra.mxu0 %v3998
          %4180 = vmatpush.bf16.msra.mxu0 %v3994
          %4181 = vmatpush.bf16.msra.mxu0 %v3990
          %4182 = vmatpush.bf16.msra.mxu0 %v3986
          %4183 = vmatmul.bf16.gmra.mxu0 %v3683
          %v4184 = vpop.f32.mrf.mxu0
          %v4185 = vadd.f32 %v4166, %v4184
          %v4186 = vpop.f32.mrf.mxu0
          %v4187 = vadd.f32 %v4168, %v4186
          %4188 = vmatmul.bf16.gmra.mxu0 %v3685
          %v4189 = vpop.f32.mrf.mxu0
          %v4190 = vadd.f32 %v4171, %v4189
          %v4191 = vpop.f32.mrf.mxu0
          %v4192 = vadd.f32 %v4173, %v4191
          %4193 = vdwg.mxu0
          %4194 = vmatpush.bf16.msra.mxu0 %v3983
          %4195 = vmatpush.bf16.msra.mxu0 %v3979
          %4196 = vmatpush.bf16.msra.mxu0 %v3975
          %4197 = vmatpush.bf16.msra.mxu0 %v3971
          %4198 = vmatpush.bf16.msra.mxu0 %v3967
          %4199 = vmatpush.bf16.msra.mxu0 %v3963
          %4200 = vmatpush.bf16.msra.mxu0 %v3959
          %4201 = vmatpush.bf16.msra.mxu0 %v3955
          %4202 = vmatmul.bf16.gmra.mxu0 %v3682
          %v4203 = vpop.f32.mrf.mxu0
          %v4204 = vadd.f32 %v3755, %v4203
          %v4205 = vpop.f32.mrf.mxu0
          %v4206 = vadd.f32 %v3755, %v4205
          %4207 = vmatmul.bf16.gmra.mxu0 %v3684
          %v4208 = vpop.f32.mrf.mxu0
          %v4209 = vadd.f32 %v3755, %v4208
          %v4210 = vpop.f32.mrf.mxu0
          %v4211 = vadd.f32 %v3755, %v4210
          %4212 = vdwg.mxu0
          %4213 = vmatpush.bf16.msra.mxu0 %v4015
          %4214 = vmatpush.bf16.msra.mxu0 %v4011
          %4215 = vmatpush.bf16.msra.mxu0 %v4007
          %4216 = vmatpush.bf16.msra.mxu0 %v4003
          %4217 = vmatpush.bf16.msra.mxu0 %v3999
          %4218 = vmatpush.bf16.msra.mxu0 %v3995
          %4219 = vmatpush.bf16.msra.mxu0 %v3991
          %4220 = vmatpush.bf16.msra.mxu0 %v3987
          %4221 = vmatmul.bf16.gmra.mxu0 %v3683
          %v4222 = vpop.f32.mrf.mxu0
          %v4223 = vadd.f32 %v4204, %v4222
          %v4224 = vpop.f32.mrf.mxu0
          %v4225 = vadd.f32 %v4206, %v4224
          %4226 = vmatmul.bf16.gmra.mxu0 %v3685
          %v4227 = vpop.f32.mrf.mxu0
          %v4228 = vadd.f32 %v4209, %v4227
          %v4229 = vpop.f32.mrf.mxu0
          %v4230 = vadd.f32 %v4211, %v4229
          %4231 = vdwg.mxu0
          %v4232 = vmax.f32 %v4109, 0.0
          %v4233 = vmax.f32 %v4147, 0.0
          %v4234 = vmax.f32 %v4185, 0.0
          %v4235 = vmax.f32 %v4223, 0.0
          %v4236 = vmax.f32 %v4111, 0.0
          %v4237 = vmax.f32 %v4149, 0.0
          %v4238 = vmax.f32 %v4187, 0.0
          %v4239 = vmax.f32 %v4225, 0.0
          %v4240 = vmax.f32 %v4114, 0.0
          %v4241 = vmax.f32 %v4152, 0.0
          %v4242 = vmax.f32 %v4190, 0.0
          %v4243 = vmax.f32 %v4228, 0.0
          %v4244 = vmax.f32 %v4116, 0.0
          %v4245 = vmax.f32 %v4154, 0.0
          %v4246 = vmax.f32 %v4192, 0.0
          %v4247 = vmax.f32 %v4230, 0.0
          %v4248 = vpack.c.bf16 %v4236, %v4232
          %v4249 = vpack.c.bf16 %v4237, %v4233
          %v4250 = vpack.c.bf16 %v4238, %v4234
          %v4251 = vpack.c.bf16 %v4239, %v4235
          %v4252 = vpack.c.bf16 %v4244, %v4240
          %v4253 = vpack.c.bf16 %v4245, %v4241
          %v4254 = vpack.c.bf16 %v4246, %v4242
          %v4255 = vpack.c.bf16 %v4247, %v4243
          %v4256 = vld [vmem:[%s1100] sm:$0xff]
          %v4257 = vld [vmem:[%s1100 + $0x8] sm:$0xff]
          %v4258 = vld [vmem:[%s1100 + $0x10] sm:$0xff]
          %v4259 = vld [vmem:[%s1100 + $0x18] sm:$0xff]
          %v4260 = vld [vmem:[%s1100 + $0x20] sm:$0xff]
          %v4261 = vld [vmem:[%s1100 + $0x28] sm:$0xff]
          %v4262 = vld [vmem:[%s1100 + $0x30] sm:$0xff]
          %v4263 = vld [vmem:[%s1100 + $0x38] sm:$0xff]
          %v4264 = vld [vmem:[%s1100 + $0x40] sm:$0xff]
          %v4265 = vld [vmem:[%s1100 + $0x48] sm:$0xff]
          %v4266 = vld [vmem:[%s1100 + $0x50] sm:$0xff]
          %v4267 = vld [vmem:[%s1100 + $0x58] sm:$0xff]
          %v4268 = vld [vmem:[%s1100 + $0x60] sm:$0xff]
          %v4269 = vld [vmem:[%s1100 + $0x68] sm:$0xff]
          %v4270 = vld [vmem:[%s1100 + $0x70] sm:$0xff]
          %v4271 = vld [vmem:[%s1100 + $0x78] sm:$0xff]
          %v4272 = vld [vmem:[%s1100 + $0x80] sm:$0xff]
          %v4273 = vld [vmem:[%s1100 + $0x88] sm:$0xff]
          %v4274 = vld [vmem:[%s1100 + $0x90] sm:$0xff]
          %v4275 = vld [vmem:[%s1100 + $0x98] sm:$0xff]
          %v4276 = vld [vmem:[%s1100 + $0xa0] sm:$0xff]
          %v4277 = vld [vmem:[%s1100 + $0xa8] sm:$0xff]
          %v4278 = vld [vmem:[%s1100 + $0xb0] sm:$0xff]
          %v4279 = vld [vmem:[%s1100 + $0xb8] sm:$0xff]
          %v4280 = vld [vmem:[%s1100 + $0xc0] sm:$0xff]
          %v4281 = vld [vmem:[%s1100 + $0xc8] sm:$0xff]
          %v4282 = vld [vmem:[%s1100 + $0xd0] sm:$0xff]
          %v4283 = vld [vmem:[%s1100 + $0xd8] sm:$0xff]
          %v4284 = vld [vmem:[%s1100 + $0xe0] sm:$0xff]
          %v4285 = vld [vmem:[%s1100 + $0xe8] sm:$0xff]
          %v4286 = vld [vmem:[%s1100 + $0xf0] sm:$0xff]
          %v4287 = vld [vmem:[%s1100 + $0xf8] sm:$0xff]
          %v4288 = vld [vmem:[%s1100 + $0x100] sm:$0xff]
          %v4289 = vld [vmem:[%s1100 + $0x108] sm:$0xff]
          %v4290 = vld [vmem:[%s1100 + $0x110] sm:$0xff]
          %v4291 = vld [vmem:[%s1100 + $0x118] sm:$0xff]
          %v4292 = vld [vmem:[%s1100 + $0x120] sm:$0xff]
          %v4293 = vld [vmem:[%s1100 + $0x128] sm:$0xff]
          %v4294 = vld [vmem:[%s1100 + $0x130] sm:$0xff]
          %v4295 = vld [vmem:[%s1100 + $0x138] sm:$0xff]
          %v4296 = vld [vmem:[%s1100 + $0x140] sm:$0xff]
          %v4297 = vld [vmem:[%s1100 + $0x148] sm:$0xff]
          %v4298 = vld [vmem:[%s1100 + $0x150] sm:$0xff]
          %v4299 = vld [vmem:[%s1100 + $0x158] sm:$0xff]
          %v4300 = vld [vmem:[%s1100 + $0x160] sm:$0xff]
          %v4301 = vld [vmem:[%s1100 + $0x168] sm:$0xff]
          %v4302 = vld [vmem:[%s1100 + $0x170] sm:$0xff]
          %v4303 = vld [vmem:[%s1100 + $0x178] sm:$0xff]
          %v4304 = vld [vmem:[%s1100 + $0x180] sm:$0xff]
          %v4305 = vld [vmem:[%s1100 + $0x188] sm:$0xff]
          %v4306 = vld [vmem:[%s1100 + $0x190] sm:$0xff]
          %v4307 = vld [vmem:[%s1100 + $0x198] sm:$0xff]
          %v4308 = vld [vmem:[%s1100 + $0x1a0] sm:$0xff]
          %v4309 = vld [vmem:[%s1100 + $0x1a8] sm:$0xff]
          %v4310 = vld [vmem:[%s1100 + $0x1b0] sm:$0xff]
          %v4311 = vld [vmem:[%s1100 + $0x1b8] sm:$0xff]
          %v4312 = vld [vmem:[%s1100 + $0x1c0] sm:$0xff]
          %v4313 = vld [vmem:[%s1100 + $0x1c8] sm:$0xff]
          %v4314 = vld [vmem:[%s1100 + $0x1d0] sm:$0xff]
          %v4315 = vld [vmem:[%s1100 + $0x1d8] sm:$0xff]
          %v4316 = vld [vmem:[%s1100 + $0x1e0] sm:$0xff]
          %v4317 = vld [vmem:[%s1100 + $0x1e8] sm:$0xff]
          %v4318 = vld [vmem:[%s1100 + $0x1f0] sm:$0xff]
          %v4319 = vld [vmem:[%s1100 + $0x1f8] sm:$0xff]
          %v4320 = vld [vmem:[%s1110] sm:$0x3]
          %v4322 = vperm.slane %v4320, 0
          %v4323 = vperm.slane %v4320, 1
          %v4390 = vunpack.c.l.b16 %v4256
          %v4391 = vunpack.c.h.b16 %v4256
          %v4392 = vunpack.c.l.b16 %v4257
          %v4393 = vunpack.c.h.b16 %v4257
          %v4394 = vunpack.c.l.b16 %v4258
          %v4395 = vunpack.c.h.b16 %v4258
          %v4396 = vunpack.c.l.b16 %v4259
          %v4397 = vunpack.c.h.b16 %v4259
          %v4398 = vunpack.c.l.b16 %v4260
          %v4399 = vunpack.c.h.b16 %v4260
          %v4400 = vunpack.c.l.b16 %v4261
          %v4401 = vunpack.c.h.b16 %v4261
          %v4402 = vunpack.c.l.b16 %v4262
          %v4403 = vunpack.c.h.b16 %v4262
          %v4404 = vunpack.c.l.b16 %v4263
          %v4405 = vunpack.c.h.b16 %v4263
          %v4406 = vunpack.c.l.b16 %v4264
          %v4407 = vunpack.c.h.b16 %v4264
          %v4408 = vunpack.c.l.b16 %v4265
          %v4409 = vunpack.c.h.b16 %v4265
          %v4410 = vunpack.c.l.b16 %v4266
          %v4411 = vunpack.c.h.b16 %v4266
          %v4412 = vunpack.c.l.b16 %v4267
          %v4413 = vunpack.c.h.b16 %v4267
          %v4414 = vunpack.c.l.b16 %v4268
          %v4415 = vunpack.c.h.b16 %v4268
          %v4416 = vunpack.c.l.b16 %v4269
          %v4417 = vunpack.c.h.b16 %v4269
          %v4418 = vunpack.c.l.b16 %v4270
          %v4419 = vunpack.c.h.b16 %v4270
          %v4420 = vunpack.c.l.b16 %v4271
          %v4421 = vunpack.c.h.b16 %v4271
          %v4422 = vunpack.c.l.b16 %v4272
          %v4423 = vunpack.c.h.b16 %v4272
          %v4424 = vunpack.c.l.b16 %v4273
          %v4425 = vunpack.c.h.b16 %v4273
          %v4426 = vunpack.c.l.b16 %v4274
          %v4427 = vunpack.c.h.b16 %v4274
          %v4428 = vunpack.c.l.b16 %v4275
          %v4429 = vunpack.c.h.b16 %v4275
          %v4430 = vunpack.c.l.b16 %v4276
          %v4431 = vunpack.c.h.b16 %v4276
          %v4432 = vunpack.c.l.b16 %v4277
          %v4433 = vunpack.c.h.b16 %v4277
          %v4434 = vunpack.c.l.b16 %v4278
          %v4435 = vunpack.c.h.b16 %v4278
          %v4436 = vunpack.c.l.b16 %v4279
          %v4437 = vunpack.c.h.b16 %v4279
          %v4438 = vunpack.c.l.b16 %v4280
          %v4439 = vunpack.c.h.b16 %v4280
          %v4440 = vunpack.c.l.b16 %v4281
          %v4441 = vunpack.c.h.b16 %v4281
          %v4442 = vunpack.c.l.b16 %v4282
          %v4443 = vunpack.c.h.b16 %v4282
          %v4444 = vunpack.c.l.b16 %v4283
          %v4445 = vunpack.c.h.b16 %v4283
          %v4446 = vunpack.c.l.b16 %v4284
          %v4447 = vunpack.c.h.b16 %v4284
          %v4448 = vunpack.c.l.b16 %v4285
          %v4449 = vunpack.c.h.b16 %v4285
          %v4450 = vunpack.c.l.b16 %v4286
          %v4451 = vunpack.c.h.b16 %v4286
          %v4452 = vunpack.c.l.b16 %v4287
          %v4453 = vunpack.c.h.b16 %v4287
          %v4454 = vunpack.c.l.b16 %v4288
          %v4455 = vunpack.c.h.b16 %v4288
          %v4456 = vunpack.c.l.b16 %v4289
          %v4457 = vunpack.c.h.b16 %v4289
          %v4458 = vunpack.c.l.b16 %v4290
          %v4459 = vunpack.c.h.b16 %v4290
          %v4460 = vunpack.c.l.b16 %v4291
          %v4461 = vunpack.c.h.b16 %v4291
          %v4462 = vunpack.c.l.b16 %v4292
          %v4463 = vunpack.c.h.b16 %v4292
          %v4464 = vunpack.c.l.b16 %v4293
          %v4465 = vunpack.c.h.b16 %v4293
          %v4466 = vunpack.c.l.b16 %v4294
          %v4467 = vunpack.c.h.b16 %v4294
          %v4468 = vunpack.c.l.b16 %v4295
          %v4469 = vunpack.c.h.b16 %v4295
          %v4470 = vunpack.c.l.b16 %v4296
          %v4471 = vunpack.c.h.b16 %v4296
          %v4472 = vunpack.c.l.b16 %v4297
          %v4473 = vunpack.c.h.b16 %v4297
          %v4474 = vunpack.c.l.b16 %v4298
          %v4475 = vunpack.c.h.b16 %v4298
          %v4476 = vunpack.c.l.b16 %v4299
          %v4477 = vunpack.c.h.b16 %v4299
          %v4478 = vunpack.c.l.b16 %v4300
          %v4479 = vunpack.c.h.b16 %v4300
          %v4480 = vunpack.c.l.b16 %v4301
          %v4481 = vunpack.c.h.b16 %v4301
          %v4482 = vunpack.c.l.b16 %v4302
          %v4483 = vunpack.c.h.b16 %v4302
          %v4484 = vunpack.c.l.b16 %v4303
          %v4485 = vunpack.c.h.b16 %v4303
          %v4486 = vunpack.c.l.b16 %v4304
          %v4487 = vunpack.c.h.b16 %v4304
          %v4488 = vunpack.c.l.b16 %v4305
          %v4489 = vunpack.c.h.b16 %v4305
          %v4490 = vunpack.c.l.b16 %v4306
          %v4491 = vunpack.c.h.b16 %v4306
          %v4492 = vunpack.c.l.b16 %v4307
          %v4493 = vunpack.c.h.b16 %v4307
          %v4494 = vunpack.c.l.b16 %v4308
          %v4495 = vunpack.c.h.b16 %v4308
          %v4496 = vunpack.c.l.b16 %v4309
          %v4497 = vunpack.c.h.b16 %v4309
          %v4498 = vunpack.c.l.b16 %v4310
          %v4499 = vunpack.c.h.b16 %v4310
          %v4500 = vunpack.c.l.b16 %v4311
          %v4501 = vunpack.c.h.b16 %v4311
          %v4502 = vunpack.c.l.b16 %v4312
          %v4503 = vunpack.c.h.b16 %v4312
          %v4504 = vunpack.c.l.b16 %v4313
          %v4505 = vunpack.c.h.b16 %v4313
          %v4506 = vunpack.c.l.b16 %v4314
          %v4507 = vunpack.c.h.b16 %v4314
          %v4508 = vunpack.c.l.b16 %v4315
          %v4509 = vunpack.c.h.b16 %v4315
          %v4510 = vunpack.c.l.b16 %v4316
          %v4511 = vunpack.c.h.b16 %v4316
          %v4512 = vunpack.c.l.b16 %v4317
          %v4513 = vunpack.c.h.b16 %v4317
          %v4514 = vunpack.c.l.b16 %v4318
          %v4515 = vunpack.c.h.b16 %v4318
          %v4516 = vunpack.c.l.b16 %v4319
          %v4517 = vunpack.c.h.b16 %v4319
          %v4518 = vpack.c.b16 %v4392, %v4390
          %v4519 = vpack.c.b16 %v4393, %v4391
          %v4520 = vpack.c.b16 %v4396, %v4394
          %v4521 = vpack.c.b16 %v4397, %v4395
          %v4522 = vpack.c.b16 %v4400, %v4398
          %v4523 = vpack.c.b16 %v4401, %v4399
          %v4524 = vpack.c.b16 %v4404, %v4402
          %v4525 = vpack.c.b16 %v4405, %v4403
          %v4526 = vpack.c.b16 %v4408, %v4406
          %v4527 = vpack.c.b16 %v4409, %v4407
          %v4528 = vpack.c.b16 %v4412, %v4410
          %v4529 = vpack.c.b16 %v4413, %v4411
          %v4530 = vpack.c.b16 %v4416, %v4414
          %v4531 = vpack.c.b16 %v4417, %v4415
          %v4532 = vpack.c.b16 %v4420, %v4418
          %v4533 = vpack.c.b16 %v4421, %v4419
          %v4534 = vpack.c.b16 %v4424, %v4422
          %v4535 = vpack.c.b16 %v4425, %v4423
          %v4536 = vpack.c.b16 %v4428, %v4426
          %v4537 = vpack.c.b16 %v4429, %v4427
          %v4538 = vpack.c.b16 %v4432, %v4430
          %v4539 = vpack.c.b16 %v4433, %v4431
          %v4540 = vpack.c.b16 %v4436, %v4434
          %v4541 = vpack.c.b16 %v4437, %v4435
          %v4542 = vpack.c.b16 %v4440, %v4438
          %v4543 = vpack.c.b16 %v4441, %v4439
          %v4544 = vpack.c.b16 %v4444, %v4442
          %v4545 = vpack.c.b16 %v4445, %v4443
          %v4546 = vpack.c.b16 %v4448, %v4446
          %v4547 = vpack.c.b16 %v4449, %v4447
          %v4548 = vpack.c.b16 %v4452, %v4450
          %v4549 = vpack.c.b16 %v4453, %v4451
          %v4550 = vpack.c.b16 %v4456, %v4454
          %v4551 = vpack.c.b16 %v4457, %v4455
          %v4552 = vpack.c.b16 %v4460, %v4458
          %v4553 = vpack.c.b16 %v4461, %v4459
          %v4554 = vpack.c.b16 %v4464, %v4462
          %v4555 = vpack.c.b16 %v4465, %v4463
          %v4556 = vpack.c.b16 %v4468, %v4466
          %v4557 = vpack.c.b16 %v4469, %v4467
          %v4558 = vpack.c.b16 %v4472, %v4470
          %v4559 = vpack.c.b16 %v4473, %v4471
          %v4560 = vpack.c.b16 %v4476, %v4474
          %v4561 = vpack.c.b16 %v4477, %v4475
          %v4562 = vpack.c.b16 %v4480, %v4478
          %v4563 = vpack.c.b16 %v4481, %v4479
          %v4564 = vpack.c.b16 %v4484, %v4482
          %v4565 = vpack.c.b16 %v4485, %v4483
          %v4566 = vpack.c.b16 %v4488, %v4486
          %v4567 = vpack.c.b16 %v4489, %v4487
          %v4568 = vpack.c.b16 %v4492, %v4490
          %v4569 = vpack.c.b16 %v4493, %v4491
          %v4570 = vpack.c.b16 %v4496, %v4494
          %v4571 = vpack.c.b16 %v4497, %v4495
          %v4572 = vpack.c.b16 %v4500, %v4498
          %v4573 = vpack.c.b16 %v4501, %v4499
          %v4574 = vpack.c.b16 %v4504, %v4502
          %v4575 = vpack.c.b16 %v4505, %v4503
          %v4576 = vpack.c.b16 %v4508, %v4506
          %v4577 = vpack.c.b16 %v4509, %v4507
          %v4578 = vpack.c.b16 %v4512, %v4510
          %v4579 = vpack.c.b16 %v4513, %v4511
          %v4580 = vpack.c.b16 %v4516, %v4514
          %v4581 = vpack.c.b16 %v4517, %v4515
          %4646 = vmatpush.bf16.msra.mxu0 %v4532
          %4647 = vmatpush.bf16.msra.mxu0 %v4530
          %4648 = vmatpush.bf16.msra.mxu0 %v4528
          %4649 = vmatpush.bf16.msra.mxu0 %v4526
          %4650 = vmatpush.bf16.msra.mxu0 %v4524
          %4651 = vmatpush.bf16.msra.mxu0 %v4522
          %4652 = vmatpush.bf16.msra.mxu0 %v4520
          %4653 = vmatpush.bf16.msra.mxu0 %v4518
          %4654 = vmatmul.bf16.gmra.mxu0 %v4248
          %v4655 = vpop.f32.mrf.mxu0
          %v4656 = vadd.f32 %v4322, %v4655
          %v4657 = vpop.f32.mrf.mxu0
          %v4658 = vadd.f32 %v4322, %v4657
          %4659 = vmatmul.bf16.gmra.mxu0 %v4252
          %v4660 = vpop.f32.mrf.mxu0
          %v4661 = vadd.f32 %v4322, %v4660
          %v4662 = vpop.f32.mrf.mxu0
          %v4663 = vadd.f32 %v4322, %v4662
          %4664 = vdwg.mxu0
          %4665 = vmatpush.bf16.msra.mxu0 %v4548
          %4666 = vmatpush.bf16.msra.mxu0 %v4546
          %4667 = vmatpush.bf16.msra.mxu0 %v4544
          %4668 = vmatpush.bf16.msra.mxu0 %v4542
          %4669 = vmatpush.bf16.msra.mxu0 %v4540
          %4670 = vmatpush.bf16.msra.mxu0 %v4538
          %4671 = vmatpush.bf16.msra.mxu0 %v4536
          %4672 = vmatpush.bf16.msra.mxu0 %v4534
          %4673 = vmatmul.bf16.gmra.mxu0 %v4249
          %v4674 = vpop.f32.mrf.mxu0
          %v4675 = vadd.f32 %v4656, %v4674
          %v4676 = vpop.f32.mrf.mxu0
          %v4677 = vadd.f32 %v4658, %v4676
          %4678 = vmatmul.bf16.gmra.mxu0 %v4253
          %v4679 = vpop.f32.mrf.mxu0
          %v4680 = vadd.f32 %v4661, %v4679
          %v4681 = vpop.f32.mrf.mxu0
          %v4682 = vadd.f32 %v4663, %v4681
          %4683 = vdwg.mxu0
          %4684 = vmatpush.bf16.msra.mxu0 %v4564
          %4685 = vmatpush.bf16.msra.mxu0 %v4562
          %4686 = vmatpush.bf16.msra.mxu0 %v4560
          %4687 = vmatpush.bf16.msra.mxu0 %v4558
          %4688 = vmatpush.bf16.msra.mxu0 %v4556
          %4689 = vmatpush.bf16.msra.mxu0 %v4554
          %4690 = vmatpush.bf16.msra.mxu0 %v4552
          %4691 = vmatpush.bf16.msra.mxu0 %v4550
          %4692 = vmatmul.bf16.gmra.mxu0 %v4250
          %v4693 = vpop.f32.mrf.mxu0
          %v4694 = vadd.f32 %v4675, %v4693
          %v4695 = vpop.f32.mrf.mxu0
          %v4696 = vadd.f32 %v4677, %v4695
          %4697 = vmatmul.bf16.gmra.mxu0 %v4254
          %v4698 = vpop.f32.mrf.mxu0
          %v4699 = vadd.f32 %v4680, %v4698
          %v4700 = vpop.f32.mrf.mxu0
          %v4701 = vadd.f32 %v4682, %v4700
          %4702 = vdwg.mxu0
          %4703 = vmatpush.bf16.msra.mxu0 %v4580
          %4704 = vmatpush.bf16.msra.mxu0 %v4578
          %4705 = vmatpush.bf16.msra.mxu0 %v4576
          %4706 = vmatpush.bf16.msra.mxu0 %v4574
          %4707 = vmatpush.bf16.msra.mxu0 %v4572
          %4708 = vmatpush.bf16.msra.mxu0 %v4570
          %4709 = vmatpush.bf16.msra.mxu0 %v4568
          %4710 = vmatpush.bf16.msra.mxu0 %v4566
          %4711 = vmatmul.bf16.gmra.mxu0 %v4251
          %v4712 = vpop.f32.mrf.mxu0
          %v4713 = vadd.f32 %v4694, %v4712
          %v4714 = vpop.f32.mrf.mxu0
          %v4715 = vadd.f32 %v4696, %v4714
          %4716 = vmatmul.bf16.gmra.mxu0 %v4255
          %v4717 = vpop.f32.mrf.mxu0
          %v4718 = vadd.f32 %v4699, %v4717
          %v4719 = vpop.f32.mrf.mxu0
          %v4720 = vadd.f32 %v4701, %v4719
          %4721 = vdwg.mxu0
          %4722 = vmatpush.bf16.msra.mxu0 %v4533
          %4723 = vmatpush.bf16.msra.mxu0 %v4531
          %4724 = vmatpush.bf16.msra.mxu0 %v4529
          %4725 = vmatpush.bf16.msra.mxu0 %v4527
          %4726 = vmatpush.bf16.msra.mxu0 %v4525
          %4727 = vmatpush.bf16.msra.mxu0 %v4523
          %4728 = vmatpush.bf16.msra.mxu0 %v4521
          %4729 = vmatpush.bf16.msra.mxu0 %v4519
          %4730 = vmatmul.bf16.gmra.mxu0 %v4248
          %v4731 = vpop.f32.mrf.mxu0
          %v4732 = vadd.f32 %v4323, %v4731
          %v4733 = vpop.f32.mrf.mxu0
          %v4734 = vadd.f32 %v4323, %v4733
          %4735 = vmatmul.bf16.gmra.mxu0 %v4252
          %v4736 = vpop.f32.mrf.mxu0
          %v4737 = vadd.f32 %v4323, %v4736
          %v4738 = vpop.f32.mrf.mxu0
          %v4739 = vadd.f32 %v4323, %v4738
          %4740 = vdwg.mxu0
          %4741 = vmatpush.bf16.msra.mxu0 %v4549
          %4742 = vmatpush.bf16.msra.mxu0 %v4547
          %4743 = vmatpush.bf16.msra.mxu0 %v4545
          %4744 = vmatpush.bf16.msra.mxu0 %v4543
          %4745 = vmatpush.bf16.msra.mxu0 %v4541
          %4746 = vmatpush.bf16.msra.mxu0 %v4539
          %4747 = vmatpush.bf16.msra.mxu0 %v4537
          %4748 = vmatpush.bf16.msra.mxu0 %v4535
          %4749 = vmatmul.bf16.gmra.mxu0 %v4249
          %v4750 = vpop.f32.mrf.mxu0
          %v4751 = vadd.f32 %v4732, %v4750
          %v4752 = vpop.f32.mrf.mxu0
          %v4753 = vadd.f32 %v4734, %v4752
          %4754 = vmatmul.bf16.gmra.mxu0 %v4253
          %v4755 = vpop.f32.mrf.mxu0
          %v4756 = vadd.f32 %v4737, %v4755
          %v4757 = vpop.f32.mrf.mxu0
          %v4758 = vadd.f32 %v4739, %v4757
          %4759 = vdwg.mxu0
          %4760 = vmatpush.bf16.msra.mxu0 %v4565
          %4761 = vmatpush.bf16.msra.mxu0 %v4563
          %4762 = vmatpush.bf16.msra.mxu0 %v4561
          %4763 = vmatpush.bf16.msra.mxu0 %v4559
          %4764 = vmatpush.bf16.msra.mxu0 %v4557
          %4765 = vmatpush.bf16.msra.mxu0 %v4555
          %4766 = vmatpush.bf16.msra.mxu0 %v4553
          %4767 = vmatpush.bf16.msra.mxu0 %v4551
          %4768 = vmatmul.bf16.gmra.mxu0 %v4250
          %v4769 = vpop.f32.mrf.mxu0
          %v4770 = vadd.f32 %v4751, %v4769
          %v4771 = vpop.f32.mrf.mxu0
          %v4772 = vadd.f32 %v4753, %v4771
          %4773 = vmatmul.bf16.gmra.mxu0 %v4254
          %v4774 = vpop.f32.mrf.mxu0
          %v4775 = vadd.f32 %v4756, %v4774
          %v4776 = vpop.f32.mrf.mxu0
          %v4777 = vadd.f32 %v4758, %v4776
          %4778 = vdwg.mxu0
          %4779 = vmatpush.bf16.msra.mxu0 %v4581
          %4780 = vmatpush.bf16.msra.mxu0 %v4579
          %4781 = vmatpush.bf16.msra.mxu0 %v4577
          %4782 = vmatpush.bf16.msra.mxu0 %v4575
          %4783 = vmatpush.bf16.msra.mxu0 %v4573
          %4784 = vmatpush.bf16.msra.mxu0 %v4571
          %4785 = vmatpush.bf16.msra.mxu0 %v4569
          %4786 = vmatpush.bf16.msra.mxu0 %v4567
          %4787 = vmatmul.bf16.gmra.mxu0 %v4251
          %v4788 = vpop.f32.mrf.mxu0
          %v4789 = vadd.f32 %v4770, %v4788
          %v4790 = vpop.f32.mrf.mxu0
          %v4791 = vadd.f32 %v4772, %v4790
          %4792 = vmatmul.bf16.gmra.mxu0 %v4255
          %v4793 = vpop.f32.mrf.mxu0
          %v4794 = vadd.f32 %v4775, %v4793
          %v4795 = vpop.f32.mrf.mxu0
          %v4796 = vadd.f32 %v4777, %v4795
          %4797 = vdwg.mxu0
          %v4798 = vadd.f32 %v3674, %v4713
          %v4799 = vadd.f32 %v3675, %v4789
          %v4800 = vadd.f32 %v3676, %v4715
          %v4801 = vadd.f32 %v3677, %v4791
          %v4802 = vadd.f32 %v3678, %v4718
          %v4803 = vadd.f32 %v3679, %v4794
          %v4804 = vadd.f32 %v3680, %v4720
          %v4805 = vadd.f32 %v3681, %v4796
          %v4806 = vld [vmem:[%s1120] sm:$0x3]
          %v4807 = vld [vmem:[%s1294] sm:$0x3]
          %v4808 = vadd.f32 %v4798, %v4799
          %4809 = vadd.xlane.f32.xlu0 %v4808
          %v4810 = vpop.xlane.xlu0 %4809
          %v4811 = vadd.f32 %v4800, %v4801
          %4812 = vadd.xlane.f32.xlu0 %v4811
          %v4813 = vpop.xlane.xlu0 %4812
          %v4814 = vadd.f32 %v4802, %v4803
          %4815 = vadd.xlane.f32.xlu0 %v4814
          %v4816 = vpop.xlane.xlu0 %4815
          %v4817 = vadd.f32 %v4804, %v4805
          %4818 = vadd.xlane.f32.xlu0 %v4817
          %v4819 = vpop.xlane.xlu0 %4818
          %v4820 = vmul.f32 %v4810, %v3567
          %v4821 = vmul.f32 %v4813, %v3567
          %v4822 = vmul.f32 %v4816, %v3567
          %v4823 = vmul.f32 %v4819, %v3567
          %v4824 = vsub.f32 %v4798, %v4820
          %v4825 = vsub.f32 %v4799, %v4820
          %v4826 = vsub.f32 %v4800, %v4821
          %v4827 = vsub.f32 %v4801, %v4821
          %v4828 = vsub.f32 %v4802, %v4822
          %v4829 = vsub.f32 %v4803, %v4822
          %v4830 = vsub.f32 %v4804, %v4823
          %v4831 = vsub.f32 %v4805, %v4823
          %v4832 = vmul.f32 %v4824, %v4824
          %v4833 = vmul.f32 %v4825, %v4825
          %v4834 = vmul.f32 %v4826, %v4826
          %v4835 = vmul.f32 %v4827, %v4827
          %v4836 = vmul.f32 %v4828, %v4828
          %v4837 = vmul.f32 %v4829, %v4829
          %v4838 = vmul.f32 %v4830, %v4830
          %v4839 = vmul.f32 %v4831, %v4831
          %v4840 = vadd.f32 %v4832, %v4833
          %4841 = vadd.xlane.f32.xlu0 %v4840
          %v4842 = vpop.xlane.xlu0 %4841
          %v4843 = vadd.f32 %v4834, %v4835
          %4844 = vadd.xlane.f32.xlu0 %v4843
          %v4845 = vpop.xlane.xlu0 %4844
          %v4846 = vadd.f32 %v4836, %v4837
          %4847 = vadd.xlane.f32.xlu0 %v4846
          %v4848 = vpop.xlane.xlu0 %4847
          %v4849 = vadd.f32 %v4838, %v4839
          %4850 = vadd.xlane.f32.xlu0 %v4849
          %v4851 = vpop.xlane.xlu0 %4850
          %v4852 = vmul.f32 %v4842, %v3567
          %v4853 = vmul.f32 %v4845, %v3567
          %v4854 = vmul.f32 %v4848, %v3567
          %v4855 = vmul.f32 %v4851, %v3567
          %v4856 = vadd.f32 %v4852, 1e-05
          %v4857 = vadd.f32 %v4853, 1e-05
          %v4858 = vadd.f32 %v4854, 1e-05
          %v4859 = vadd.f32 %v4855, 1e-05
          %v4860 = vrsqrt.pop %v4856
          %v4861 = vmul.f32 %v4860, %v4856
          %v4862 = vmul.f32 %v4861, %v4860
          %v4863 = vmul.f32 0.5, %v4862
          %v4864 = vsub.f32 1.5, %v4863
          %v4865 = vmul.f32 %v4860, %v4864
          %vm4866 = vweird.f32 %v4856
          %vm4867 = vweird.f32 %v4860
          %vm4868 = vmor %vm4866, %vm4867
          %v4869 = vsel %vm4868, %v4860, %v4865
          %v4870 = vrsqrt.pop %v4857
          %v4871 = vmul.f32 %v4870, %v4857
          %v4872 = vmul.f32 %v4871, %v4870
          %v4873 = vmul.f32 0.5, %v4872
          %v4874 = vsub.f32 1.5, %v4873
          %v4875 = vmul.f32 %v4870, %v4874
          %vm4876 = vweird.f32 %v4857
          %vm4877 = vweird.f32 %v4870
          %vm4878 = vmor %vm4876, %vm4877
          %v4879 = vsel %vm4878, %v4870, %v4875
          %v4880 = vrsqrt.pop %v4858
          %v4881 = vmul.f32 %v4880, %v4858
          %v4882 = vmul.f32 %v4881, %v4880
          %v4883 = vmul.f32 0.5, %v4882
          %v4884 = vsub.f32 1.5, %v4883
          %v4885 = vmul.f32 %v4880, %v4884
          %vm4886 = vweird.f32 %v4858
          %vm4887 = vweird.f32 %v4880
          %vm4888 = vmor %vm4886, %vm4887
          %v4889 = vsel %vm4888, %v4880, %v4885
          %v4890 = vrsqrt.pop %v4859
          %v4891 = vmul.f32 %v4890, %v4859
          %v4892 = vmul.f32 %v4891, %v4890
          %v4893 = vmul.f32 0.5, %v4892
          %v4894 = vsub.f32 1.5, %v4893
          %v4895 = vmul.f32 %v4890, %v4894
          %vm4896 = vweird.f32 %v4859
          %vm4897 = vweird.f32 %v4890
          %vm4898 = vmor %vm4896, %vm4897
          %v4899 = vsel %vm4898, %v4890, %v4895
          %v4900 = vmul.f32 %v4824, %v4869
          %v4901 = vmul.f32 %v4825, %v4869
          %v4902 = vmul.f32 %v4826, %v4879
          %v4903 = vmul.f32 %v4827, %v4879
          %v4904 = vmul.f32 %v4828, %v4889
          %v4905 = vmul.f32 %v4829, %v4889
          %v4906 = vmul.f32 %v4830, %v4899
          %v4907 = vmul.f32 %v4831, %v4899
          %v4909 = vperm.slane %v4806, 0
          %v4910 = vperm.slane %v4806, 1
          %v4913 = vmul.f32 %v4900, %v4909
          %v4914 = vmul.f32 %v4901, %v4910
          %v4915 = vmul.f32 %v4902, %v4909
          %v4916 = vmul.f32 %v4903, %v4910
          %v4917 = vmul.f32 %v4904, %v4909
          %v4918 = vmul.f32 %v4905, %v4910
          %v4919 = vmul.f32 %v4906, %v4909
          %v4920 = vmul.f32 %v4907, %v4910
          %v4922 = vperm.slane %v4807, 0
          %v4923 = vperm.slane %v4807, 1
          %v4926 = vadd.f32 %v4913, %v4922
          %v4927 = vadd.f32 %v4914, %v4923
          %v4928 = vadd.f32 %v4915, %v4922
          %v4929 = vadd.f32 %v4916, %v4923
          %v4930 = vadd.f32 %v4917, %v4922
          %v4931 = vadd.f32 %v4918, %v4923
          %v4932 = vadd.f32 %v4919, %v4922
          %v4933 = vadd.f32 %v4920, %v4923
          %4934 = vst [vmem:[#allocation2] sm:$0xff] %v4926
          %4935 = vst [vmem:[#allocation2 + $0x8] sm:$0xff] %v4927
          %4936 = vst [vmem:[#allocation2 + $0x10] sm:$0xff] %v4928
          %4937 = vst [vmem:[#allocation2 + $0x18] sm:$0xff] %v4929
          %4938 = vst [vmem:[#allocation2 + $0x20] sm:$0xff] %v4930
          %4939 = vst [vmem:[#allocation2 + $0x28] sm:$0xff] %v4931
          %4940 = vst [vmem:[#allocation2 + $0x30] sm:$0xff] %v4932
          %4941 = vst [vmem:[#allocation2 + $0x38] sm:$0xff] %v4933
        $region180: #{tpu_custom_call.1} parent=103 // pred_fallthru
          _
        %p4942 = scmp.eq.s32.totalorder %s41, 2
        // Predicated region
        $region181: #{tpu_custom_call.1} parent=103 // pred_check
          %p4943 = pneg %p4942
        $region182: #{tpu_custom_call.1} parent=103 // pred_check_branch
          %4945 = sbr.rel (%p4943) target = $region184
        $region183: #{tpu_custom_call.1} parent=103 // pred_region
          %v4946 = vld [vmem:[#allocation2] sm:$0xf]
          %v4947 = vld [vmem:[#allocation2 + $0x8] sm:$0xf]
          %v4948 = vld [vmem:[#allocation2 + $0x20] sm:$0xf]
          %v4949 = vld [vmem:[#allocation2 + $0x28] sm:$0xf]
          %v4952 = vrot.slane %v4948, 4
          %v4953 = vrot.slane %v4949, 4
          %vm4956 = vcmask 1043456
          %v4957 = vsel %vm4956, %v4946, %v4952
          %v4958 = vsel %vm4956, %v4947, %v4953
          %v4959 = vld [vmem:[#allocation20] sm:$0x3]
          %v4960 = vld [vmem:[%s15] sm:$0x3]
          %v4961 = vadd.f32 %v4957, %v4958
          %4962 = vadd.xlane.f32.xlu0 %v4961
          %v4963 = vpop.xlane.xlu0 %4962
          %v4964 = vrcp.pop 256.0
          %v4965 = vmul.f32 256.0, %v4964
          %v4966 = vsub.f32 1.0, %v4965
          %v4967 = vmul.f32 %v4964, %v4966
          %v4968 = vadd.f32 %v4964, %v4967
          %vm4969 = vweird.f32 %v4964
          %v4970 = vsel %vm4969, %v4964, %v4968
          %v4971 = vmul.f32 %v4963, %v4970
          %v4972 = vsub.f32 %v4957, %v4971
          %v4973 = vsub.f32 %v4958, %v4971
          %v4974 = vmul.f32 %v4972, %v4972
          %v4975 = vmul.f32 %v4973, %v4973
          %v4976 = vadd.f32 %v4974, %v4975
          %4977 = vadd.xlane.f32.xlu0 %v4976
          %v4978 = vpop.xlane.xlu0 %4977
          %v4979 = vmul.f32 %v4978, %v4970
          %v4980 = vadd.f32 %v4979, 1e-05
          %v4981 = vrsqrt.pop %v4980
          %v4982 = vmul.f32 %v4981, %v4980
          %v4983 = vmul.f32 %v4982, %v4981
          %v4984 = vmul.f32 0.5, %v4983
          %v4985 = vsub.f32 1.5, %v4984
          %v4986 = vmul.f32 %v4981, %v4985
          %vm4987 = vweird.f32 %v4980
          %vm4988 = vweird.f32 %v4981
          %vm4989 = vmor %vm4987, %vm4988
          %v4990 = vsel %vm4989, %v4981, %v4986
          %v4991 = vmul.f32 %v4972, %v4990
          %v4992 = vmul.f32 %v4973, %v4990
          %v4994 = vperm.slane %v4959, 0
          %v4995 = vperm.slane %v4959, 1
          %v4998 = vmul.f32 %v4991, %v4994
          %v4999 = vmul.f32 %v4992, %v4995
          %v5001 = vperm.slane %v4960, 0
          %v5002 = vperm.slane %v4960, 1
          %v5005 = vadd.f32 %v4998, %v5001
          %v5006 = vadd.f32 %v4999, %v5002
          %v5007 = vld [vmem:[#allocation21] sm:$0xff]
          %v5008 = vld [vmem:[#allocation21 + $0x8] sm:$0xff]
          %v5009 = vld [vmem:[#allocation21 + $0x10] sm:$0xff]
          %v5010 = vld [vmem:[#allocation21 + $0x18] sm:$0xff]
          %v5011 = vld [vmem:[#allocation21 + $0x20] sm:$0xff]
          %v5012 = vld [vmem:[#allocation21 + $0x28] sm:$0xff]
          %v5013 = vld [vmem:[#allocation21 + $0x30] sm:$0xff]
          %v5014 = vld [vmem:[#allocation21 + $0x38] sm:$0xff]
          %v5015 = vld [vmem:[#allocation21 + $0x40] sm:$0xff]
          %v5016 = vld [vmem:[#allocation21 + $0x48] sm:$0xff]
          %v5017 = vld [vmem:[#allocation21 + $0x50] sm:$0xff]
          %v5018 = vld [vmem:[#allocation21 + $0x58] sm:$0xff]
          %v5019 = vld [vmem:[#allocation21 + $0x60] sm:$0xff]
          %v5020 = vld [vmem:[#allocation21 + $0x68] sm:$0xff]
          %v5021 = vld [vmem:[#allocation21 + $0x70] sm:$0xff]
          %v5022 = vld [vmem:[#allocation21 + $0x78] sm:$0xff]
          %v5023 = vld [vmem:[#allocation21 + $0x80] sm:$0xff]
          %v5024 = vld [vmem:[#allocation21 + $0x88] sm:$0xff]
          %v5025 = vld [vmem:[#allocation21 + $0x90] sm:$0xff]
          %v5026 = vld [vmem:[#allocation21 + $0x98] sm:$0xff]
          %v5027 = vld [vmem:[#allocation21 + $0xa0] sm:$0xff]
          %v5028 = vld [vmem:[#allocation21 + $0xa8] sm:$0xff]
          %v5029 = vld [vmem:[#allocation21 + $0xb0] sm:$0xff]
          %v5030 = vld [vmem:[#allocation21 + $0xb8] sm:$0xff]
          %v5031 = vld [vmem:[#allocation21 + $0xc0] sm:$0xff]
          %v5032 = vld [vmem:[#allocation21 + $0xc8] sm:$0xff]
          %v5033 = vld [vmem:[#allocation21 + $0xd0] sm:$0xff]
          %v5034 = vld [vmem:[#allocation21 + $0xd8] sm:$0xff]
          %v5035 = vld [vmem:[#allocation21 + $0xe0] sm:$0xff]
          %v5036 = vld [vmem:[#allocation21 + $0xe8] sm:$0xff]
          %v5037 = vld [vmem:[#allocation21 + $0xf0] sm:$0xff]
          %v5038 = vld [vmem:[#allocation21 + $0xf8] sm:$0xff]
          %v5039 = vld [vmem:[#allocation23] sm:$0x1]
          %v5041 = vperm.slane %v5039, 0
          %5043 = vmatpush.msra.mxu0 %v5022
          %5044 = vmatpush.msra.mxu0 %v5021
          %5045 = vmatpush.msra.mxu0 %v5020
          %5046 = vmatpush.msra.mxu0 %v5019
          %5047 = vmatpush.msra.mxu0 %v5018
          %5048 = vmatpush.msra.mxu0 %v5017
          %5049 = vmatpush.msra.mxu0 %v5016
          %5050 = vmatpush.msra.mxu0 %v5015
          %5051 = vmatpush.msra.mxu0 %v5014
          %5052 = vmatpush.msra.mxu0 %v5013
          %5053 = vmatpush.msra.mxu0 %v5012
          %5054 = vmatpush.msra.mxu0 %v5011
          %5055 = vmatpush.msra.mxu0 %v5010
          %5056 = vmatpush.msra.mxu0 %v5009
          %5057 = vmatpush.msra.mxu0 %v5008
          %5058 = vmatpush.msra.mxu0 %v5007
          %5059 = vmatmul.f32.gmra.mxu0 %v5005
          %v5060 = vpop.f32.mrf.mxu0
          %v5061 = vadd.f32 %v5041, %v5060
          %5062 = vdwg.mxu0
          %5063 = vmatpush.msra.mxu0 %v5038
          %5064 = vmatpush.msra.mxu0 %v5037
          %5065 = vmatpush.msra.mxu0 %v5036
          %5066 = vmatpush.msra.mxu0 %v5035
          %5067 = vmatpush.msra.mxu0 %v5034
          %5068 = vmatpush.msra.mxu0 %v5033
          %5069 = vmatpush.msra.mxu0 %v5032
          %5070 = vmatpush.msra.mxu0 %v5031
          %5071 = vmatpush.msra.mxu0 %v5030
          %5072 = vmatpush.msra.mxu0 %v5029
          %5073 = vmatpush.msra.mxu0 %v5028
          %5074 = vmatpush.msra.mxu0 %v5027
          %5075 = vmatpush.msra.mxu0 %v5026
          %5076 = vmatpush.msra.mxu0 %v5025
          %5077 = vmatpush.msra.mxu0 %v5024
          %5078 = vmatpush.msra.mxu0 %v5023
          %5079 = vmatmul.f32.gmra.mxu0 %v5006
          %v5080 = vpop.f32.mrf.mxu0
          %v5081 = vadd.f32 %v5061, %v5080
          %5082 = vdwg.mxu0
          %v5083 = vld [vmem:[#allocation26] sm:$0xff]
          %v5084 = vld [vmem:[#allocation26 + $0x8] sm:$0xff]
          %v5085 = vld [vmem:[#allocation26 + $0x10] sm:$0xff]
          %v5086 = vld [vmem:[#allocation26 + $0x18] sm:$0xff]
          %v5087 = vld [vmem:[#allocation26 + $0x20] sm:$0xff]
          %v5088 = vld [vmem:[#allocation26 + $0x28] sm:$0xff]
          %v5089 = vld [vmem:[#allocation26 + $0x30] sm:$0xff]
          %v5090 = vld [vmem:[#allocation26 + $0x38] sm:$0xff]
          %v5091 = vld [vmem:[#allocation26 + $0x40] sm:$0xff]
          %v5092 = vld [vmem:[#allocation26 + $0x48] sm:$0xff]
          %v5093 = vld [vmem:[#allocation26 + $0x50] sm:$0xff]
          %v5094 = vld [vmem:[#allocation26 + $0x58] sm:$0xff]
          %v5095 = vld [vmem:[#allocation26 + $0x60] sm:$0xff]
          %v5096 = vld [vmem:[#allocation26 + $0x68] sm:$0xff]
          %v5097 = vld [vmem:[#allocation26 + $0x70] sm:$0xff]
          %v5098 = vld [vmem:[#allocation26 + $0x78] sm:$0xff]
          %v5099 = vmul.f32 %v5081, %v5081
          %5100 = vadd.xlane.f32.xlu0 %v5099
          %v5101 = vpop.xlane.xlu0 %5100
          %v5102 = vmul.f32 %v5083, %v5083
          %v5103 = vmul.f32 %v5084, %v5084
          %v5104 = vmul.f32 %v5085, %v5085
          %v5105 = vmul.f32 %v5086, %v5086
          %v5106 = vmul.f32 %v5087, %v5087
          %v5107 = vmul.f32 %v5088, %v5088
          %v5108 = vmul.f32 %v5089, %v5089
          %v5109 = vmul.f32 %v5090, %v5090
          %v5110 = vmul.f32 %v5091, %v5091
          %v5111 = vmul.f32 %v5092, %v5092
          %v5112 = vmul.f32 %v5093, %v5093
          %v5113 = vmul.f32 %v5094, %v5094
          %v5114 = vmul.f32 %v5095, %v5095
          %v5115 = vmul.f32 %v5096, %v5096
          %v5116 = vmul.f32 %v5097, %v5097
          %v5117 = vmul.f32 %v5098, %v5098
          %5118 = vadd.xlane.f32.xlu0 %v5102
          %v5119 = vpop.xlane.xlu0 %5118
          %5120 = vadd.xlane.f32.xlu0 %v5103
          %v5121 = vpop.xlane.xlu0 %5120
          %5122 = vadd.xlane.f32.xlu0 %v5104
          %v5123 = vpop.xlane.xlu0 %5122
          %5124 = vadd.xlane.f32.xlu0 %v5105
          %v5125 = vpop.xlane.xlu0 %5124
          %5126 = vadd.xlane.f32.xlu0 %v5106
          %v5127 = vpop.xlane.xlu0 %5126
          %5128 = vadd.xlane.f32.xlu0 %v5107
          %v5129 = vpop.xlane.xlu0 %5128
          %5130 = vadd.xlane.f32.xlu0 %v5108
          %v5131 = vpop.xlane.xlu0 %5130
          %5132 = vadd.xlane.f32.xlu0 %v5109
          %v5133 = vpop.xlane.xlu0 %5132
          %5134 = vadd.xlane.f32.xlu0 %v5110
          %v5135 = vpop.xlane.xlu0 %5134
          %5136 = vadd.xlane.f32.xlu0 %v5111
          %v5137 = vpop.xlane.xlu0 %5136
          %5138 = vadd.xlane.f32.xlu0 %v5112
          %v5139 = vpop.xlane.xlu0 %5138
          %5140 = vadd.xlane.f32.xlu0 %v5113
          %v5141 = vpop.xlane.xlu0 %5140
          %5142 = vadd.xlane.f32.xlu0 %v5114
          %v5143 = vpop.xlane.xlu0 %5142
          %5144 = vadd.xlane.f32.xlu0 %v5115
          %v5145 = vpop.xlane.xlu0 %5144
          %5146 = vadd.xlane.f32.xlu0 %v5116
          %v5147 = vpop.xlane.xlu0 %5146
          %5148 = vadd.xlane.f32.xlu0 %v5117
          %v5149 = vpop.xlane.xlu0 %5148
          %5150 = vmatpush.xpose.msra.mxu0 %v5098
          %5151 = vmatpush.xpose.msra.mxu0 %v5097
          %5152 = vmatpush.xpose.msra.mxu0 %v5096
          %5153 = vmatpush.xpose.msra.mxu0 %v5095
          %5154 = vmatpush.xpose.msra.mxu0 %v5094
          %5155 = vmatpush.xpose.msra.mxu0 %v5093
          %5156 = vmatpush.xpose.msra.mxu0 %v5092
          %5157 = vmatpush.xpose.msra.mxu0 %v5091
          %5158 = vmatpush.xpose.msra.mxu0 %v5090
          %5159 = vmatpush.xpose.msra.mxu0 %v5089
          %5160 = vmatpush.xpose.msra.mxu0 %v5088
          %5161 = vmatpush.xpose.msra.mxu0 %v5087
          %5162 = vmatpush.xpose.msra.mxu0 %v5086
          %5163 = vmatpush.xpose.msra.mxu0 %v5085
          %5164 = vmatpush.xpose.msra.mxu0 %v5084
          %5165 = vmatpush.xpose.msra.mxu0 %v5083
          %5166 = vmatmul.f32.gmra.mxu0 %v5081
          %v5167 = vpop.f32.mrf.mxu0
          %v5168 = vadd.f32 0.0, %v5167
          %5169 = vdwg.mxu0
          %v5186 = vlaneseq
          %v5187 = vand.u32 %v5186, 127
          %v5188 = vperm.slane %v5119, %v5187
          %v5189 = vadd.s32 %v5187, 4294967288
          %v5190 = vperm.slane %v5121, %v5189
          %vm5191 = vcmask 130112
          %v5192 = vsel %vm5191, %v5190, %v5188
          %v5193 = vadd.s32 %v5187, 4294967280
          %v5194 = vperm.slane %v5123, %v5193
          %vm5195 = vcmask 195712
          %v5196 = vsel %vm5195, %v5194, %v5192
          %v5197 = vadd.s32 %v5187, 4294967272
          %v5198 = vperm.slane %v5125, %v5197
          %vm5199 = vcmask 261312
          %v5200 = vsel %vm5199, %v5198, %v5196
          %v5201 = vadd.s32 %v5187, 4294967264
          %v5202 = vperm.slane %v5127, %v5201
          %vm5203 = vcmask 326912
          %v5204 = vsel %vm5203, %v5202, %v5200
          %v5205 = vadd.s32 %v5187, 4294967256
          %v5206 = vperm.slane %v5129, %v5205
          %vm5207 = vcmask 392512
          %v5208 = vsel %vm5207, %v5206, %v5204
          %v5209 = vadd.s32 %v5187, 4294967248
          %v5210 = vperm.slane %v5131, %v5209
          %vm5211 = vcmask 458112
          %v5212 = vsel %vm5211, %v5210, %v5208
          %v5213 = vadd.s32 %v5187, 4294967240
          %v5214 = vperm.slane %v5133, %v5213
          %vm5215 = vcmask 523712
          %v5216 = vsel %vm5215, %v5214, %v5212
          %v5217 = vadd.s32 %v5187, 4294967232
          %v5218 = vperm.slane %v5135, %v5217
          %vm5219 = vcmask 589312
          %v5220 = vsel %vm5219, %v5218, %v5216
          %v5221 = vadd.s32 %v5187, 4294967224
          %v5222 = vperm.slane %v5137, %v5221
          %vm5223 = vcmask 654912
          %v5224 = vsel %vm5223, %v5222, %v5220
          %v5225 = vadd.s32 %v5187, 4294967216
          %v5226 = vperm.slane %v5139, %v5225
          %vm5227 = vcmask 720512
          %v5228 = vsel %vm5227, %v5226, %v5224
          %v5229 = vadd.s32 %v5187, 4294967208
          %v5230 = vperm.slane %v5141, %v5229
          %vm5231 = vcmask 786112
          %v5232 = vsel %vm5231, %v5230, %v5228
          %v5233 = vadd.s32 %v5187, 4294967200
          %v5234 = vperm.slane %v5143, %v5233
          %vm5235 = vcmask 851712
          %v5236 = vsel %vm5235, %v5234, %v5232
          %v5237 = vadd.s32 %v5187, 4294967192
          %v5238 = vperm.slane %v5145, %v5237
          %vm5239 = vcmask 917312
          %v5240 = vsel %vm5239, %v5238, %v5236
          %v5241 = vadd.s32 %v5187, 4294967184
          %v5242 = vperm.slane %v5147, %v5241
          %vm5243 = vcmask 982912
          %v5244 = vsel %vm5243, %v5242, %v5240
          %v5245 = vadd.s32 %v5187, 4294967176
          %v5246 = vperm.slane %v5149, %v5245
          %vm5247 = vcmask 1048512
          %v5248 = vsel %vm5247, %v5246, %v5244
          %vm5249 = vcmask 1042434
          %v5250 = vsel %vm5249, %v5248, %v5248
          %vm5251 = vcmask 1043459
          %v5252 = vsel %vm5251, %v5248, %v5250
          %vm5253 = vcmask 1044484
          %v5254 = vsel %vm5253, %v5248, %v5252
          %vm5255 = vcmask 1045509
          %v5256 = vsel %vm5255, %v5248, %v5254
          %vm5257 = vcmask 1046534
          %v5258 = vsel %vm5257, %v5248, %v5256
          %vm5259 = vcmask 1047559
          %v5260 = vsel %vm5259, %v5248, %v5258
          %v5262 = vadd.f32 %v5101, %v5260
          %v5263 = vmul.f32 %v5168, 2.0
          %v5264 = vsub.f32 %v5262, %v5263
          %vm5265 = vcmp.lt.s32.totalorder %v5187, 100
          %v5266 = vsel %vm5265, %v5264, 1e+30
          %5267 = vmin.xlane.f32.xlu0 %v5266
          %v5268 = vpop.xlane.xlu0 %5267
          %vm5269 = vcmp.le.f32.partialorder %v5266, %v5268
          %v5270 = vsel %vm5269, %v5187, 128
          %v5271 = vand.u32 %v5270, 65535
          %v5272 = vshra.s32 %v5270, 16
          %v5273 = vcvt.s32.f32 %v5271
          %v5274 = vcvt.s32.f32 %v5272
          %5275 = vmin.xlane.f32.xlu0 %v5274
          %v5276 = vpop.xlane.xlu0 %5275
          %vm5277 = vcmp.eq.f32.partialorder %v5274, %v5276
          %v5278 = vsel %vm5277, %v5273, inf
          %5279 = vmin.xlane.f32.xlu0 %v5278
          %v5280 = vpop.xlane.xlu0 %5279
          %v5281 = vcvt.f32.s32 %v5280
          %v5282 = vcvt.f32.s32 %v5276
          %v5283 = vshll.u32 %v5282, 16
          %v5284 = vadd.s32 %v5283, %v5281
          %vm5285 = vcmp.eq.s32.totalorder %v5187, %v5284
          %v5286 = vsel %vm5285, 1, 0
          %v5287 = vcvt.s32.f32 %v5286
          %5288 = vmatpush.msra.mxu0 %v5098
          %5289 = vmatpush.msra.mxu0 %v5097
          %5290 = vmatpush.msra.mxu0 %v5096
          %5291 = vmatpush.msra.mxu0 %v5095
          %5292 = vmatpush.msra.mxu0 %v5094
          %5293 = vmatpush.msra.mxu0 %v5093
          %5294 = vmatpush.msra.mxu0 %v5092
          %5295 = vmatpush.msra.mxu0 %v5091
          %5296 = vmatpush.msra.mxu0 %v5090
          %5297 = vmatpush.msra.mxu0 %v5089
          %5298 = vmatpush.msra.mxu0 %v5088
          %5299 = vmatpush.msra.mxu0 %v5087
          %5300 = vmatpush.msra.mxu0 %v5086
          %5301 = vmatpush.msra.mxu0 %v5085
          %5302 = vmatpush.msra.mxu0 %v5084
          %5303 = vmatpush.msra.mxu0 %v5083
          %5304 = vmatmul.f32.gmra.mxu0 %v5287
          %v5305 = vpop.f32.mrf.mxu0
          %v5306 = vadd.f32 0.0, %v5305
          %5307 = vdwg.mxu0
          %v5308 = vsub.f32 %v5306, %v5081
          %v5309 = vmul.f32 %v5308, %v5308
          %5310 = vadd.xlane.f32.xlu0 %v5309
          %v5311 = vpop.xlane.xlu0 %5310
          %v5312 = vrot.slane %v5311, 4
          %v5313 = vadd.f32 %v5311, %v5312
          %v5314 = vrot.slane %v5313, 2
          %v5315 = vadd.f32 %v5313, %v5314
          %v5316 = vrot.slane %v5315, 1
          %v5317 = vadd.f32 %v5315, %v5316
          %s5318 = vtos %v5317
          %v5319 = vrcp.pop 1024.0
          %v5320 = vmul.f32 1024.0, %v5319
          %v5321 = vsub.f32 1.0, %v5320
          %v5322 = vmul.f32 %v5319, %v5321
          %v5323 = vadd.f32 %v5319, %v5322
          %vm5324 = vweird.f32 %v5319
          %v5325 = vsel %vm5324, %v5319, %v5323
          %s5326 = vtos %v5325
          %s5327 = smul.f32 %s5318, %s5326
          %s5328 = smul.f32 %s5327, 0.25
          %vm5329 = vcmask 7168
          %5330 = vst.msk [vmem:[%s22] sm:$0xff] %vm5329, %v5284
          %v5331 = vstv %s5328
          %vm5332 = vcmask 0
          %5333 = vst.msk [vmem:[#allocation28] sm:$0x1] %vm5332, %v5331
          %v5334 = vld [vmem:[#allocation24] sm:$0xff]
          %v5335 = vld [vmem:[#allocation24 + $0x8] sm:$0xff]
          %v5336 = vld [vmem:[#allocation24 + $0x10] sm:$0xff]
          %v5337 = vld [vmem:[#allocation24 + $0x18] sm:$0xff]
          %v5338 = vld [vmem:[#allocation24 + $0x20] sm:$0xff]
          %v5339 = vld [vmem:[#allocation24 + $0x28] sm:$0xff]
          %v5340 = vld [vmem:[#allocation24 + $0x30] sm:$0xff]
          %v5341 = vld [vmem:[#allocation24 + $0x38] sm:$0xff]
          %v5342 = vld [vmem:[#allocation24 + $0x40] sm:$0xff]
          %v5343 = vld [vmem:[#allocation24 + $0x48] sm:$0xff]
          %v5344 = vld [vmem:[#allocation24 + $0x50] sm:$0xff]
          %v5345 = vld [vmem:[#allocation24 + $0x58] sm:$0xff]
          %v5346 = vld [vmem:[#allocation24 + $0x60] sm:$0xff]
          %v5347 = vld [vmem:[#allocation24 + $0x68] sm:$0xff]
          %v5348 = vld [vmem:[#allocation24 + $0x70] sm:$0xff]
          %v5349 = vld [vmem:[#allocation24 + $0x78] sm:$0xff]
          %v5350 = vld [vmem:[#allocation24 + $0x80] sm:$0xff]
          %v5351 = vld [vmem:[#allocation24 + $0x88] sm:$0xff]
          %v5352 = vld [vmem:[#allocation24 + $0x90] sm:$0xff]
          %v5353 = vld [vmem:[#allocation24 + $0x98] sm:$0xff]
          %v5354 = vld [vmem:[#allocation24 + $0xa0] sm:$0xff]
          %v5355 = vld [vmem:[#allocation24 + $0xa8] sm:$0xff]
          %v5356 = vld [vmem:[#allocation24 + $0xb0] sm:$0xff]
          %v5357 = vld [vmem:[#allocation24 + $0xb8] sm:$0xff]
          %v5358 = vld [vmem:[#allocation24 + $0xc0] sm:$0xff]
          %v5359 = vld [vmem:[#allocation24 + $0xc8] sm:$0xff]
          %v5360 = vld [vmem:[#allocation24 + $0xd0] sm:$0xff]
          %v5361 = vld [vmem:[#allocation24 + $0xd8] sm:$0xff]
          %v5362 = vld [vmem:[#allocation24 + $0xe0] sm:$0xff]
          %v5363 = vld [vmem:[#allocation24 + $0xe8] sm:$0xff]
          %v5364 = vld [vmem:[#allocation24 + $0xf0] sm:$0xff]
          %v5365 = vld [vmem:[#allocation24 + $0xf8] sm:$0xff]
          %v5366 = vld [vmem:[%s19] sm:$0x3]
          %v5368 = vperm.slane %v5366, 0
          %v5369 = vperm.slane %v5366, 1
          %5372 = vmatpush.msra.mxu0 %v5364
          %5373 = vmatpush.msra.mxu0 %v5362
          %5374 = vmatpush.msra.mxu0 %v5360
          %5375 = vmatpush.msra.mxu0 %v5358
          %5376 = vmatpush.msra.mxu0 %v5356
          %5377 = vmatpush.msra.mxu0 %v5354
          %5378 = vmatpush.msra.mxu0 %v5352
          %5379 = vmatpush.msra.mxu0 %v5350
          %5380 = vmatpush.msra.mxu0 %v5348
          %5381 = vmatpush.msra.mxu0 %v5346
          %5382 = vmatpush.msra.mxu0 %v5344
          %5383 = vmatpush.msra.mxu0 %v5342
          %5384 = vmatpush.msra.mxu0 %v5340
          %5385 = vmatpush.msra.mxu0 %v5338
          %5386 = vmatpush.msra.mxu0 %v5336
          %5387 = vmatpush.msra.mxu0 %v5334
          %5388 = vmatmul.f32.gmra.mxu0 %v5306
          %v5389 = vpop.f32.mrf.mxu0
          %v5390 = vadd.f32 %v5368, %v5389
          %5391 = vdwg.mxu0
          %5392 = vmatpush.msra.mxu0 %v5365
          %5393 = vmatpush.msra.mxu0 %v5363
          %5394 = vmatpush.msra.mxu0 %v5361
          %5395 = vmatpush.msra.mxu0 %v5359
          %5396 = vmatpush.msra.mxu0 %v5357
          %5397 = vmatpush.msra.mxu0 %v5355
          %5398 = vmatpush.msra.mxu0 %v5353
          %5399 = vmatpush.msra.mxu0 %v5351
          %5400 = vmatpush.msra.mxu0 %v5349
          %5401 = vmatpush.msra.mxu0 %v5347
          %5402 = vmatpush.msra.mxu0 %v5345
          %5403 = vmatpush.msra.mxu0 %v5343
          %5404 = vmatpush.msra.mxu0 %v5341
          %5405 = vmatpush.msra.mxu0 %v5339
          %5406 = vmatpush.msra.mxu0 %v5337
          %5407 = vmatpush.msra.mxu0 %v5335
          %5408 = vmatmul.f32.gmra.mxu0 %v5306
          %v5409 = vpop.f32.mrf.mxu0
          %v5410 = vadd.f32 %v5369, %v5409
          %5411 = vdwg.mxu0
          %5412 = vst [vmem:[#allocation27] sm:$0xff] %v5390
          %5413 = vst [vmem:[#allocation27 + $0x8] sm:$0xff] %v5410
        $region184: #{tpu_custom_call.1} parent=103 // pred_fallthru
          _
        // Predicated region
        $region185: #{tpu_custom_call.1} parent=103 // pred_check
          %p5414 = pneg %p603
        $region186: #{tpu_custom_call.1} parent=103 // pred_check_branch
          %5416 = sbr.rel (%p5414) target = $region188
        $region187: #{tpu_custom_call.1} parent=103 // pred_region
          %5418 = vsyncadd [#allocation7], 0
          %s5420 = sshll.u32 [#allocation27], 4
          %s5421 = int_to_ptr.vmem [resolvable:$true] %s5420
          %s5422 = sshll.u32 %s21, 4
          %s5423 = int_to_ptr.hbm [resolvable:$true] %s5422
          %5425 = dma.vmem_to_hbm [thread:$0]  %s5421, 256, %s5423, [#allocation7]
        $region188: #{tpu_custom_call.1} parent=103 // pred_fallthru
          _
        // Predicated region
        $region189: #{tpu_custom_call.1} parent=103 // pred_check
          %p5426 = pneg %p624
        $region190: #{tpu_custom_call.1} parent=103 // pred_check_branch
          %5428 = sbr.rel (%p5426) target = $region192
        $region191: #{tpu_custom_call.1} parent=103 // pred_region
          _
        $region192: #{tpu_custom_call.1} parent=103 // pred_fallthru
          _
        // Predicated region
        $region193: #{tpu_custom_call.1} parent=103 // pred_check
          %p5429 = pneg %p645
        $region194: #{tpu_custom_call.1} parent=103 // pred_check_branch
          %5431 = sbr.rel (%p5429) target = $region196
        $region195: #{tpu_custom_call.1} parent=103 // pred_region
          %5433 = vsyncadd [#allocation29], 0
          %s5435 = sshll.u32 [#allocation28], 4
          %s5436 = int_to_ptr.vmem [resolvable:$true] %s5435
          %s5437 = sshll.u32 %s23, 4
          %s5438 = int_to_ptr.hbm [resolvable:$true] %s5437
          %5440 = dma.vmem_to_hbm [thread:$0]  %s5436, 16, %s5438, [#allocation29]
        $region196: #{tpu_custom_call.1} parent=103 // pred_fallthru
          _
        // Predicated region
        $region197: #{tpu_custom_call.1} parent=103 // pred_check
          %p5441 = pneg %p603
        $region198: #{tpu_custom_call.1} parent=103 // pred_check_branch
          %5443 = sbr.rel (%p5441) target = $region200
        $region199: #{tpu_custom_call.1} parent=103 // pred_region
          %5445 = dma.done [#allocation7], 256
        $region200: #{tpu_custom_call.1} parent=103 // pred_fallthru
          _
        // Predicated region
        $region201: #{tpu_custom_call.1} parent=103 // pred_check
          %p5446 = pneg %p624
        $region202: #{tpu_custom_call.1} parent=103 // pred_check_branch
          %5448 = sbr.rel (%p5446) target = $region204
        $region203: #{tpu_custom_call.1} parent=103 // pred_region
          _
        $region204: #{tpu_custom_call.1} parent=103 // pred_fallthru
          _
        // Predicated region
        $region205: #{tpu_custom_call.1} parent=103 // pred_check
          %p5449 = pneg %p645
        $region206: #{tpu_custom_call.1} parent=103 // pred_check_branch
          %5451 = sbr.rel (%p5449) target = $region208
        $region207: #{tpu_custom_call.1} parent=103 // pred_region
          %5453 = dma.done [#allocation29], 16
        $region208: #{tpu_custom_call.1} parent=103 // pred_fallthru
          _
      $region104: #{tpu_custom_call.1} parent=5 // pred_fallthru
        _
      %p5454 = scmp.le.s32.totalorder 2, %s36
      // Predicated region
      $region209: #{tpu_custom_call.1} parent=5 // pred_check
        %p5455 = pneg %p5454
      $region210: #{tpu_custom_call.1} parent=5 // pred_check_branch
        %5457 = sbr.rel (%p5455) target = $region212
      $region211: #{tpu_custom_call.1} parent=5 // pred_region
        %s5458 = ssub.s32 %s36, 2
      $region212: #{tpu_custom_call.1} parent=5 // pred_fallthru
        _
    $region6: #{tpu_custom_call.1} parent=1 // loop_footer
      %s40 = sadd.s32 1, %s36
    $region7: #{tpu_custom_call.1} parent=1 // loop_footer_branch
      %35 = sbr.rel target = $region3
    $region8: #{tpu_custom_call.1} parent=1 // loop_exit
      _
    %5459 = vsyncpa [#allocation6], 1
    %s5460 = scalar_lea.sflag [#allocation6], 1
    %5461 = vsyncpa %s5460, 1
    %5462 = vsyncpa [#allocation9], 1
    %5463 = vsyncpa [#allocation22], 1
    %5464 = vsyncpa [#allocation25], 1
    %5465 = vsyncpa [#allocation7], 1
    %s5466 = scalar_lea.sflag [#allocation7], 1
    %5467 = vsyncpa %s5466, 1
    %5468 = vsyncpa [#allocation29], 1

</llo_original>
